<compile_context>
chip_gen: v6e
topology: v6e:2x2x1
jax: 0.10.0
libtpu: 0.0.40
codegen_flags: <defaults>
</compile_context>

<pallas_src>
import numpy as np
import jax
import jax.numpy as jnp
from jax.experimental import pallas as pl
from jax.experimental.pallas import tpu as pltpu

# ----------------------------- static architecture ----------------------------- #
NUM_CLASSES = 3
PRIORS_PER_LOC = 2
SOURCE_LAYER_INDEXES = [2, 4]

BASE_CFG = [(4, 8, 1), (8, 8, 2), (8, 16, 1), (16, 16, 2)]   # (cin, cout, stride)
EXTRAS_CFG = [(16, 16, 2), (16, 16, 2)]
TRUNK_CFG = BASE_CFG + EXTRAS_CFG
SOURCE_STAGES = (1, 3, 4, 5)                                  # trunk stages feeding heads
HEAD_COUT = PRIORS_PER_LOC * (NUM_CLASSES + 4)                # fused cls(6)+reg(8)=14

BATCH = 2
LANES = 128          # lane width of every activation / M block / bias row / output
L_BLK = 32           # rows reserved per L tap block in the packed L array
L_LANES = 32         # lane width of the packed L array (max padded activation rows)


def _conv_out_hw(h, s):
    return (h + 2 - 3) // s + 1


def _pad8(n):
    return max(8, -(-n // 8) * 8)


def _active_row_taps(h_in, h_out, stride):
    """Row taps kh whose L matrix is not identically zero (prune pure padding taps)."""
    taps = []
    for kh in range(3):
        if any(0 <= stride * o + kh - 1 < h_in for o in range(h_out)):
            taps.append(kh)
    return taps


def _build_plan():
    """Static per-stage metadata: shapes, padded row counts, packed-array offsets."""
    plan, tap_idx, m_off = [], 0, 0
    h = 16
    r_in_pad = _pad8(BATCH * h)
    src = []
    for si, (cin, cout, stride) in enumerate(TRUNK_CFG):
        h_out = _conv_out_hw(h, stride)
        taps = _active_row_taps(h, h_out, stride)
        st = dict(h_in=h, h_out=h_out, cin=cin, cout=cout, stride=stride,
                  r_in_pad=r_in_pad, r_out_pad=_pad8(BATCH * h_out),
                  k_in=h * cin, n_out=h_out * cout, relu=True,
                  taps=[(kh, (tap_idx + j) * L_BLK, m_off + j * h * cin)
                        for j, kh in enumerate(taps)])
        tap_idx += len(taps)
        m_off += len(taps) * h * cin
        plan.append(st)
        if si in SOURCE_STAGES:
            src.append((h_out, cout, st["r_out_pad"]))
        h = h_out
        r_in_pad = st["r_out_pad"]
    for (hs, cs, rpad) in src:                                # fused cls+reg headers
        taps = _active_row_taps(hs, hs, 1)
        st = dict(h_in=hs, h_out=hs, cin=cs, cout=HEAD_COUT, stride=1,
                  r_in_pad=rpad, r_out_pad=_pad8(BATCH * hs),
                  k_in=hs * cs, n_out=hs * HEAD_COUT, relu=False,
                  taps=[(kh, (tap_idx + j) * L_BLK, m_off + j * hs * cs)
                        for j, kh in enumerate(taps)])
        tap_idx += len(taps)
        m_off += len(taps) * hs * cs
        plan.append(st)
    return plan, tap_idx, m_off


PLAN, NUM_TAPS, M_ROWS = _build_plan()
OUT_ROWS_TOTAL = sum(PLAN[6 + i]["r_out_pad"] for i in range(4))   # 16+8+8+8 = 40


# ------------------------------ Pallas kernel ------------------------------ #
def _ssd_fused_kernel(x_ref, l_ref, m_ref, b_ref, out_ref):
    """Whole SSD forward (both batch elements), fully VMEM-resident.

    x_ref : (32, 128) bf16   batch-stacked, lane-padded input
    l_ref : (27*32, 32) bf16 packed block-diagonal row-tap matrices
    m_ref : (1904, 128) bf16 packed column-tap/weight matrices
    b_ref : (80, 128)  f32   bias rows (one per stage, 8-row stride)
    out_ref: (40, 128) f32   head outputs, lane-dense slab
    """

    def conv(a, si):
        st = PLAN[si]
        r_out, r_in, k = st["r_out_pad"], st["r_in_pad"], st["k_in"]
        acc = b_ref[si * 8:si * 8 + 1, :]                      # (1,128) f32, broadcasts
        for (_kh, loff, moff) in st["taps"]:
            l = l_ref[loff:loff + r_out, 0:r_in]               # (r_out, r_in) bf16
            rows = jnp.dot(l, a, preferred_element_type=jnp.float32)
            rows = rows[:, 0:k].astype(jnp.bfloat16)           # exact: L is 0/1 selection
            acc = acc + jnp.dot(rows, m_ref[moff:moff + k, :],
                                preferred_element_type=jnp.float32)
        if st["relu"]:
            acc = jnp.maximum(acc, 0.0)
        return acc                                             # (r_out, 128) f32

    a = x_ref[...]                                             # (32, 128) bf16
    a = conv(a, 0).astype(jnp.bfloat16)                        # base0
    h0 = a = conv(a, 1).astype(jnp.bfloat16)                   # base1  -> source 0
    a = conv(a, 2).astype(jnp.bfloat16)                        # base2
    h1 = a = conv(a, 3).astype(jnp.bfloat16)                   # base3  -> source 1
    h2 = a = conv(a, 4).astype(jnp.bfloat16)                   # extra0 -> source 2
    h3 = conv(a, 5).astype(jnp.bfloat16)                       # extra1 -> source 3

    row = 0
    for i, src in enumerate((h0, h1, h2, h3)):
        o = conv(src, 6 + i)                                   # fused cls+reg header
        out_ref[row:row + o.shape[0], :] = o                   # full-lane, 8-aligned store
        row += o.shape[0]


# --------------------------- parameter generation --------------------------- #
def make_conv_params(key, kh, kw, cin, cout):
    k1, k2 = jax.random.split(key)
    fan_in = float(kh * kw * cin)
    w = jax.random.normal(k1, (kh, kw, cin, cout), jnp.float32) / jnp.sqrt(fan_in)
    b = 0.01 * jax.random.normal(k2, (cout,), jnp.float32)
    return w, b


def build_ssd_params(seed=0):
    key = jax.random.PRNGKey(seed)
    keys = iter(jax.random.split(key, 32))
    base = []
    for cin, cout, s in BASE_CFG:
        w, b = make_conv_params(next(keys), 3, 3, cin, cout)
        base.append((w, b, s))
    extras = []
    for cin, cout, s in EXTRAS_CFG:
        w, b = make_conv_params(next(keys), 3, 3, cin, cout)
        extras.append((w, b, s))
    cls_heads, reg_heads = [], []
    for si in SOURCE_STAGES:
        cin = TRUNK_CFG[si][1]
        cls_heads.append(make_conv_params(next(keys), 3, 3, cin,
                                          PRIORS_PER_LOC * NUM_CLASSES))
        reg_heads.append(make_conv_params(next(keys), 3, 3, cin,
                                          PRIORS_PER_LOC * 4))
    return {"base": base, "extras": extras, "cls": cls_heads, "reg": reg_heads}


# ---------------- conv -> packed (L, M, bias) parameter arrays --------------- #
def _single_L(h_in, h_out, stride, kh):
    L = np.zeros((h_out, h_in), np.float32)
    for o in range(h_out):
        i = stride * o + kh - 1
        if 0 <= i < h_in:
            L[o, i] = 1.0
    return L


def _col_sel(w_in, w_out, stride, kw):
    S = np.zeros((w_out, w_in), np.float32)
    for o in range(w_out):
        i = stride * o + kw - 1
        if 0 <= i < w_in:
            S[o, i] = 1.0
    return S


def build_fused_params(params):
    """Fold every conv (base, extras, fused cls+reg headers) into 3 packed arrays."""
    convs = []
    for (w, b, _s) in params["base"] + params["extras"]:
        convs.append((np.asarray(w), np.asarray(b)))
    for i in range(4):
        wc, bc = params["cls"][i]
        wr, br = params["reg"][i]
        convs.append((np.concatenate([np.asarray(wc), np.asarray(wr)], axis=3),
                      np.concatenate([np.asarray(bc), np.asarray(br)], axis=0)))

    l_pack = np.zeros((NUM_TAPS * L_BLK, L_LANES), np.float32)
    m_pack = np.zeros((M_ROWS, LANES), np.float32)
    b_pack = np.zeros((len(PLAN) * 8, LANES), np.float32)

    for si, st in enumerate(PLAN):
        w, b = convs[si]
        h_in, h_out, stride = st["h_in"], st["h_out"], st["stride"]
        cin, cout = st["cin"], st["cout"]
        assert w.shape == (3, 3, cin, cout)
        b_pack[si * 8, :st["n_out"]] = np.tile(b, h_out)
        sel = np.stack([_col_sel(h_in, h_out, stride, kw) for kw in range(3)])
        for (kh, loff, moff) in st["taps"]:
            ls = _single_L(h_in, h_out, stride, kh)
            for bb in range(BATCH):                    # batch block-diagonal
                l_pack[loff + bb * h_out: loff + (bb + 1) * h_out,
                       bb * h_in: (bb + 1) * h_in] = ls
            # M[kh][iw*Cin+ci, ow*Cout+co] = w[kh, iw - stride*ow + 1, ci, co] (0 if OOB)
            mk = np.einsum("kow,kic->wioc", sel, w[kh]).reshape(h_in * cin,
                                                                h_out * cout)
            m_pack[moff:moff + st["k_in"], :st["n_out"]] = mk

    return (jnp.asarray(l_pack, dtype=jnp.bfloat16),
            jnp.asarray(m_pack, dtype=jnp.bfloat16),
            jnp.asarray(b_pack, dtype=jnp.float32))


# ------------------------------- SSD forward -------------------------------- #
@jax.jit
def ssd_forward(x_nchw, fused):
    """Fused SSD forward. Returns (confidences (B,170,3), locations (B,170,4))."""
    l_pack, m_pack, b_pack = fused
    B, C, H, W = x_nchw.shape
    assert B == BATCH
    # NCHW -> row-packed, batch-stacked, lane-padded (B*H, 128) bf16.
    xp = jnp.transpose(x_nchw, (0, 2, 3, 1)).reshape(B * H, W * C)
    xp = jnp.pad(xp, ((0, 0), (0, LANES - W * C))).astype(jnp.bfloat16)

    out = pl.pallas_call(
        _ssd_fused_kernel,
        out_shape=jax.ShapeDtypeStruct((OUT_ROWS_TOTAL, LANES), jnp.float32),
        grid=(1,),
        in_specs=[pl.BlockSpec((B * H, LANES), lambda i: (0, 0)),
                  pl.BlockSpec(l_pack.shape, lambda i: (0, 0)),
                  pl.BlockSpec(m_pack.shape, lambda i: (0, 0)),
                  pl.BlockSpec(b_pack.shape, lambda i: (0, 0))],
        out_specs=pl.BlockSpec((OUT_ROWS_TOTAL, LANES), lambda i: (0, 0)),
        compiler_params=pltpu.CompilerParams(dimension_semantics=("arbitrary",)),
    )(xp, l_pack, m_pack, b_pack)

    # Unpack the lane-dense slab into PyTorch's (B, num_priors, C) layout.
    confs, locs = [], []
    row = 0
    for i in range(4):
        st = PLAN[6 + i]
        hw = st["h_out"]
        blk = out[row:row + B * hw, :hw * HEAD_COUT].reshape(B, hw, hw, HEAD_COUT)
        confs.append(blk[..., :PRIORS_PER_LOC * NUM_CLASSES].reshape(B, -1, NUM_CLASSES))
        locs.append(blk[..., PRIORS_PER_LOC * NUM_CLASSES:].reshape(B, -1, 4))
        row += st["r_out_pad"]
    # is_test=False path: raw (confidences, locations), matching the reference.
    # TODO(synk): is_test=True post-processing (softmax + prior-box decode) not implemented.
    return jnp.concatenate(confs, axis=1), jnp.concatenate(locs, axis=1)


# -------------------------- pure-JAX reference model ------------------------- #
def _conv_ref(x, w, b, stride, relu):
    out = jax.lax.conv_general_dilated(
        x, w, window_strides=(stride, stride), padding=((1, 1), (1, 1)),
        dimension_numbers=("NHWC", "HWIO", "NHWC"),
        precision=jax.lax.Precision.HIGHEST)
    out = out + b
    return jnp.maximum(out, 0.0) if relu else out


def ssd_forward_ref(x_nchw, params):
    x = jnp.transpose(x_nchw, (0, 2, 3, 1))
    confs, locs = [], []
    header_index, start, end = 0, 0, 0
    for end in SOURCE_LAYER_INDEXES:
        for li in range(start, end):
            w, b, s = params["base"][li]
            x = _conv_ref(x, w, b, s, True)
        start = end
        wc, bc = params["cls"][header_index]
        wr, br = params["reg"][header_index]
        conf = _conv_ref(x, wc, bc, 1, False)
        loc = _conv_ref(x, wr, br, 1, False)
        confs.append(conf.reshape(conf.shape[0], -1, NUM_CLASSES))
        locs.append(loc.reshape(loc.shape[0], -1, 4))
        header_index += 1
    for li in range(end, len(params["base"])):
        w, b, s = params["base"][li]
        x = _conv_ref(x, w, b, s, True)
    for (w, b, s) in params["extras"]:
        x = _conv_ref(x, w, b, s, True)
        wc, bc = params["cls"][header_index]
        wr, br = params["reg"][header_index]
        conf = _conv_ref(x, wc, bc, 1, False)
        loc = _conv_ref(x, wr, br, 1, False)
        confs.append(conf.reshape(conf.shape[0], -1, NUM_CLASSES))
        locs.append(loc.reshape(loc.shape[0], -1, 4))
        header_index += 1
    return jnp.concatenate(confs, axis=1), jnp.concatenate(locs, axis=1)


# ----------------------------------- main ------------------------------------ #
if __name__ == "__main__":
    key = jax.random.PRNGKey(0)
    x = jax.random.normal(key, (2, 4, 16, 16), jnp.float32)   # NCHW like PyTorch
    params = build_ssd_params(seed=0)
    fused = build_fused_params(params)

    conf, loc = ssd_forward(x, fused)
    conf = jax.block_until_ready(conf)
    loc = jax.block_until_ready(loc)

    # 2 priors/loc over 8x8 + 4x4 + 2x2 + 1x1 feature maps => 170 priors
    assert conf.shape == (2, 170, NUM_CLASSES), conf.shape
    assert loc.shape == (2, 170, 4), loc.shape
    assert jnp.all(jnp.isfinite(conf)) and jnp.all(jnp.isfinite(loc))

    # Numerical sanity check against a pure-JAX/XLA reference of the same network
    # (loose tolerance: kernel uses bf16 operands with f32 accumulation).
    conf_ref, loc_ref = ssd_forward_ref(x, params)
    assert jnp.allclose(conf, conf_ref, atol=5e-2, rtol=5e-2), \
        float(jnp.max(jnp.abs(conf - conf_ref)))
    assert jnp.allclose(loc, loc_ref, atol=5e-2, rtol=5e-2), \
        float(jnp.max(jnp.abs(loc - loc_ref)))

    print("KERNEL_OK")
</pallas_src>

<mosaic_0001>
module attributes {stable_mosaic.version = 11 : i64} {
  func.func @_ssd_fused_kernel(%arg0: i32, %arg1: memref<32x128xbf16, #tpu.memory_space<vmem>>, %arg2: memref<864x32xbf16, #tpu.memory_space<vmem>>, %arg3: memref<1904x128xbf16, #tpu.memory_space<vmem>>, %arg4: memref<80x128xf32, #tpu.memory_space<vmem>>, %arg5: memref<40x128xf32, #tpu.memory_space<vmem>>) attributes {dimension_semantics = [#tpu.dimension_semantics<arbitrary>], iteration_bounds = array<i64: 1>, scalar_prefetch = 0 : i64, scratch_operands = 0 : i64, tpu.core_type = #tpu.core_type<tc>, window_params = [{pipeline_mode = #tpu.pipeline_mode<synchronous>, transform_indices = @transform_0, window_bounds = array<i64: 32, 128>}, {pipeline_mode = #tpu.pipeline_mode<synchronous>, transform_indices = @transform_1, window_bounds = array<i64: 864, 32>}, {pipeline_mode = #tpu.pipeline_mode<synchronous>, transform_indices = @transform_2, window_bounds = array<i64: 1904, 128>}, {pipeline_mode = #tpu.pipeline_mode<synchronous>, transform_indices = @transform_3, window_bounds = array<i64: 80, 128>}, {pipeline_mode = #tpu.pipeline_mode<synchronous>, transform_indices = @transform_4, window_bounds = array<i64: 40, 128>}]} {
    %c0 = arith.constant 0 : index
    %c0_0 = arith.constant 0 : index
    %0 = vector.load %arg1[%c0, %c0_0] : memref<32x128xbf16, #tpu.memory_space<vmem>>, vector<32x128xbf16>
    %c0_1 = arith.constant 0 : index
    %c0_2 = arith.constant 0 : index
    %1 = vector.load %arg4[%c0_1, %c0_2] : memref<80x128xf32, #tpu.memory_space<vmem>>, vector<1x128xf32>
    %c0_3 = arith.constant 0 : index
    %c0_4 = arith.constant 0 : index
    %2 = vector.load %arg2[%c0_3, %c0_4] : memref<864x32xbf16, #tpu.memory_space<vmem>>, vector<32x32xbf16>
    %cst = arith.constant dense<0.000000e+00> : vector<32x128xf32>
    %3 = tpu.matmul %2, %0, %cst {dimension_numbers = #tpu.dot_dimension_numbers<[1], [0], [0], [1], [0, 0, 1, 1], [], []>} : vector<32x32xbf16>, vector<32x128xbf16>, vector<32x128xf32> -> vector<32x128xf32>
    %4 = vector.extract_strided_slice %3 {offsets = [0, 0], sizes = [32, 64], strides = [1, 1]} : vector<32x128xf32> to vector<32x64xf32>
    %5 = arith.truncf %4 : vector<32x64xf32> to vector<32x64xbf16>
    %c0_5 = arith.constant 0 : index
    %c0_6 = arith.constant 0 : index
    %6 = vector.load %arg3[%c0_5, %c0_6] : memref<1904x128xbf16, #tpu.memory_space<vmem>>, vector<64x128xbf16>
    %cst_7 = arith.constant dense<0.000000e+00> : vector<32x128xf32>
    %7 = tpu.matmul %5, %6, %cst_7 {dimension_numbers = #tpu.dot_dimension_numbers<[1], [0], [0], [1], [0, 0, 1, 1], [], []>} : vector<32x64xbf16>, vector<64x128xbf16>, vector<32x128xf32> -> vector<32x128xf32>
    %8 = vector.broadcast %1 : vector<1x128xf32> to vector<32x128xf32>
    %9 = arith.addf %8, %7 : vector<32x128xf32>
    %c32 = arith.constant 32 : index
    %c0_8 = arith.constant 0 : index
    %10 = vector.load %arg2[%c32, %c0_8] : memref<864x32xbf16, #tpu.memory_space<vmem>>, vector<32x32xbf16>
    %cst_9 = arith.constant dense<0.000000e+00> : vector<32x128xf32>
    %11 = tpu.matmul %10, %0, %cst_9 {dimension_numbers = #tpu.dot_dimension_numbers<[1], [0], [0], [1], [0, 0, 1, 1], [], []>} : vector<32x32xbf16>, vector<32x128xbf16>, vector<32x128xf32> -> vector<32x128xf32>
    %12 = vector.extract_strided_slice %11 {offsets = [0, 0], sizes = [32, 64], strides = [1, 1]} : vector<32x128xf32> to vector<32x64xf32>
    %13 = arith.truncf %12 : vector<32x64xf32> to vector<32x64xbf16>
    %c64 = arith.constant 64 : index
    %c0_10 = arith.constant 0 : index
    %14 = vector.load %arg3[%c64, %c0_10] : memref<1904x128xbf16, #tpu.memory_space<vmem>>, vector<64x128xbf16>
    %cst_11 = arith.constant dense<0.000000e+00> : vector<32x128xf32>
    %15 = tpu.matmul %13, %14, %cst_11 {dimension_numbers = #tpu.dot_dimension_numbers<[1], [0], [0], [1], [0, 0, 1, 1], [], []>} : vector<32x64xbf16>, vector<64x128xbf16>, vector<32x128xf32> -> vector<32x128xf32>
    %16 = arith.addf %9, %15 : vector<32x128xf32>
    %c64_12 = arith.constant 64 : index
    %c0_13 = arith.constant 0 : index
    %17 = vector.load %arg2[%c64_12, %c0_13] : memref<864x32xbf16, #tpu.memory_space<vmem>>, vector<32x32xbf16>
    %cst_14 = arith.constant dense<0.000000e+00> : vector<32x128xf32>
    %18 = tpu.matmul %17, %0, %cst_14 {dimension_numbers = #tpu.dot_dimension_numbers<[1], [0], [0], [1], [0, 0, 1, 1], [], []>} : vector<32x32xbf16>, vector<32x128xbf16>, vector<32x128xf32> -> vector<32x128xf32>
    %19 = vector.extract_strided_slice %18 {offsets = [0, 0], sizes = [32, 64], strides = [1, 1]} : vector<32x128xf32> to vector<32x64xf32>
    %20 = arith.truncf %19 : vector<32x64xf32> to vector<32x64xbf16>
    %c128 = arith.constant 128 : index
    %c0_15 = arith.constant 0 : index
    %21 = vector.load %arg3[%c128, %c0_15] : memref<1904x128xbf16, #tpu.memory_space<vmem>>, vector<64x128xbf16>
    %cst_16 = arith.constant dense<0.000000e+00> : vector<32x128xf32>
    %22 = tpu.matmul %20, %21, %cst_16 {dimension_numbers = #tpu.dot_dimension_numbers<[1], [0], [0], [1], [0, 0, 1, 1], [], []>} : vector<32x64xbf16>, vector<64x128xbf16>, vector<32x128xf32> -> vector<32x128xf32>
    %23 = arith.addf %16, %22 : vector<32x128xf32>
    %cst_17 = arith.constant 0.000000e+00 : f32
    %24 = vector.broadcast %cst_17 : f32 to vector<32x128xf32>
    %25 = arith.maximumf %23, %24 : vector<32x128xf32>
    %26 = arith.truncf %25 : vector<32x128xf32> to vector<32x128xbf16>
    %c8 = arith.constant 8 : index
    %c0_18 = arith.constant 0 : index
    %27 = vector.load %arg4[%c8, %c0_18] : memref<80x128xf32, #tpu.memory_space<vmem>>, vector<1x128xf32>
    %c96 = arith.constant 96 : index
    %c0_19 = arith.constant 0 : index
    %28 = vector.load %arg2[%c96, %c0_19] : memref<864x32xbf16, #tpu.memory_space<vmem>>, vector<16x32xbf16>
    %cst_20 = arith.constant dense<0.000000e+00> : vector<16x128xf32>
    %29 = tpu.matmul %28, %26, %cst_20 {dimension_numbers = #tpu.dot_dimension_numbers<[1], [0], [0], [1], [0, 0, 1, 1], [], []>} : vector<16x32xbf16>, vector<32x128xbf16>, vector<16x128xf32> -> vector<16x128xf32>
    %30 = arith.truncf %29 : vector<16x128xf32> to vector<16x128xbf16>
    %c192 = arith.constant 192 : index
    %c0_21 = arith.constant 0 : index
    %31 = vector.load %arg3[%c192, %c0_21] : memref<1904x128xbf16, #tpu.memory_space<vmem>>, vector<128x128xbf16>
    %cst_22 = arith.constant dense<0.000000e+00> : vector<16x128xf32>
    %32 = tpu.matmul %30, %31, %cst_22 {dimension_numbers = #tpu.dot_dimension_numbers<[1], [0], [0], [1], [0, 0, 1, 1], [], []>} : vector<16x128xbf16>, vector<128x128xbf16>, vector<16x128xf32> -> vector<16x128xf32>
    %33 = vector.broadcast %27 : vector<1x128xf32> to vector<16x128xf32>
    %34 = arith.addf %33, %32 : vector<16x128xf32>
    %c128_23 = arith.constant 128 : index
    %c0_24 = arith.constant 0 : index
    %35 = vector.load %arg2[%c128_23, %c0_24] : memref<864x32xbf16, #tpu.memory_space<vmem>>, vector<16x32xbf16>
    %cst_25 = arith.constant dense<0.000000e+00> : vector<16x128xf32>
    %36 = tpu.matmul %35, %26, %cst_25 {dimension_numbers = #tpu.dot_dimension_numbers<[1], [0], [0], [1], [0, 0, 1, 1], [], []>} : vector<16x32xbf16>, vector<32x128xbf16>, vector<16x128xf32> -> vector<16x128xf32>
    %37 = arith.truncf %36 : vector<16x128xf32> to vector<16x128xbf16>
    %c320 = arith.constant 320 : index
    %c0_26 = arith.constant 0 : index
    %38 = vector.load %arg3[%c320, %c0_26] : memref<1904x128xbf16, #tpu.memory_space<vmem>>, vector<128x128xbf16>
    %cst_27 = arith.constant dense<0.000000e+00> : vector<16x128xf32>
    %39 = tpu.matmul %37, %38, %cst_27 {dimension_numbers = #tpu.dot_dimension_numbers<[1], [0], [0], [1], [0, 0, 1, 1], [], []>} : vector<16x128xbf16>, vector<128x128xbf16>, vector<16x128xf32> -> vector<16x128xf32>
    %40 = arith.addf %34, %39 : vector<16x128xf32>
    %c160 = arith.constant 160 : index
    %c0_28 = arith.constant 0 : index
    %41 = vector.load %arg2[%c160, %c0_28] : memref<864x32xbf16, #tpu.memory_space<vmem>>, vector<16x32xbf16>
    %cst_29 = arith.constant dense<0.000000e+00> : vector<16x128xf32>
    %42 = tpu.matmul %41, %26, %cst_29 {dimension_numbers = #tpu.dot_dimension_numbers<[1], [0], [0], [1], [0, 0, 1, 1], [], []>} : vector<16x32xbf16>, vector<32x128xbf16>, vector<16x128xf32> -> vector<16x128xf32>
    %43 = arith.truncf %42 : vector<16x128xf32> to vector<16x128xbf16>
    %c448 = arith.constant 448 : index
    %c0_30 = arith.constant 0 : index
    %44 = vector.load %arg3[%c448, %c0_30] : memref<1904x128xbf16, #tpu.memory_space<vmem>>, vector<128x128xbf16>
    %cst_31 = arith.constant dense<0.000000e+00> : vector<16x128xf32>
    %45 = tpu.matmul %43, %44, %cst_31 {dimension_numbers = #tpu.dot_dimension_numbers<[1], [0], [0], [1], [0, 0, 1, 1], [], []>} : vector<16x128xbf16>, vector<128x128xbf16>, vector<16x128xf32> -> vector<16x128xf32>
    %46 = arith.addf %40, %45 : vector<16x128xf32>
    %cst_32 = arith.constant 0.000000e+00 : f32
    %47 = vector.broadcast %cst_32 : f32 to vector<16x128xf32>
    %48 = arith.maximumf %46, %47 : vector<16x128xf32>
    %49 = arith.truncf %48 : vector<16x128xf32> to vector<16x128xbf16>
    %c16 = arith.constant 16 : index
    %c0_33 = arith.constant 0 : index
    %50 = vector.load %arg4[%c16, %c0_33] : memref<80x128xf32, #tpu.memory_space<vmem>>, vector<1x128xf32>
    %c192_34 = arith.constant 192 : index
    %c0_35 = arith.constant 0 : index
    %51 = vector.load %arg2[%c192_34, %c0_35] : memref<864x32xbf16, #tpu.memory_space<vmem>>, vector<16x16xbf16>
    %cst_36 = arith.constant dense<0.000000e+00> : vector<16x128xf32>
    %52 = tpu.matmul %51, %49, %cst_36 {dimension_numbers = #tpu.dot_dimension_numbers<[1], [0], [0], [1], [0, 0, 1, 1], [], []>} : vector<16x16xbf16>, vector<16x128xbf16>, vector<16x128xf32> -> vector<16x128xf32>
    %53 = vector.extract_strided_slice %52 {offsets = [0, 0], sizes = [16, 64], strides = [1, 1]} : vector<16x128xf32> to vector<16x64xf32>
    %54 = arith.truncf %53 : vector<16x64xf32> to vector<16x64xbf16>
    %c576 = arith.constant 576 : index
    %c0_37 = arith.constant 0 : index
    %55 = vector.load %arg3[%c576, %c0_37] : memref<1904x128xbf16, #tpu.memory_space<vmem>>, vector<64x128xbf16>
    %cst_38 = arith.constant dense<0.000000e+00> : vector<16x128xf32>
    %56 = tpu.matmul %54, %55, %cst_38 {dimension_numbers = #tpu.dot_dimension_numbers<[1], [0], [0], [1], [0, 0, 1, 1], [], []>} : vector<16x64xbf16>, vector<64x128xbf16>, vector<16x128xf32> -> vector<16x128xf32>
    %57 = vector.broadcast %50 : vector<1x128xf32> to vector<16x128xf32>
    %58 = arith.addf %57, %56 : vector<16x128xf32>
    %c224 = arith.constant 224 : index
    %c0_39 = arith.constant 0 : index
    %59 = vector.load %arg2[%c224, %c0_39] : memref<864x32xbf16, #tpu.memory_space<vmem>>, vector<16x16xbf16>
    %cst_40 = arith.constant dense<0.000000e+00> : vector<16x128xf32>
    %60 = tpu.matmul %59, %49, %cst_40 {dimension_numbers = #tpu.dot_dimension_numbers<[1], [0], [0], [1], [0, 0, 1, 1], [], []>} : vector<16x16xbf16>, vector<16x128xbf16>, vector<16x128xf32> -> vector<16x128xf32>
    %61 = vector.extract_strided_slice %60 {offsets = [0, 0], sizes = [16, 64], strides = [1, 1]} : vector<16x128xf32> to vector<16x64xf32>
    %62 = arith.truncf %61 : vector<16x64xf32> to vector<16x64xbf16>
    %c640 = arith.constant 640 : index
    %c0_41 = arith.constant 0 : index
    %63 = vector.load %arg3[%c640, %c0_41] : memref<1904x128xbf16, #tpu.memory_space<vmem>>, vector<64x128xbf16>
    %cst_42 = arith.constant dense<0.000000e+00> : vector<16x128xf32>
    %64 = tpu.matmul %62, %63, %cst_42 {dimension_numbers = #tpu.dot_dimension_numbers<[1], [0], [0], [1], [0, 0, 1, 1], [], []>} : vector<16x64xbf16>, vector<64x128xbf16>, vector<16x128xf32> -> vector<16x128xf32>
    %65 = arith.addf %58, %64 : vector<16x128xf32>
    %c256 = arith.constant 256 : index
    %c0_43 = arith.constant 0 : index
    %66 = vector.load %arg2[%c256, %c0_43] : memref<864x32xbf16, #tpu.memory_space<vmem>>, vector<16x16xbf16>
    %cst_44 = arith.constant dense<0.000000e+00> : vector<16x128xf32>
    %67 = tpu.matmul %66, %49, %cst_44 {dimension_numbers = #tpu.dot_dimension_numbers<[1], [0], [0], [1], [0, 0, 1, 1], [], []>} : vector<16x16xbf16>, vector<16x128xbf16>, vector<16x128xf32> -> vector<16x128xf32>
    %68 = vector.extract_strided_slice %67 {offsets = [0, 0], sizes = [16, 64], strides = [1, 1]} : vector<16x128xf32> to vector<16x64xf32>
    %69 = arith.truncf %68 : vector<16x64xf32> to vector<16x64xbf16>
    %c704 = arith.constant 704 : index
    %c0_45 = arith.constant 0 : index
    %70 = vector.load %arg3[%c704, %c0_45] : memref<1904x128xbf16, #tpu.memory_space<vmem>>, vector<64x128xbf16>
    %cst_46 = arith.constant dense<0.000000e+00> : vector<16x128xf32>
    %71 = tpu.matmul %69, %70, %cst_46 {dimension_numbers = #tpu.dot_dimension_numbers<[1], [0], [0], [1], [0, 0, 1, 1], [], []>} : vector<16x64xbf16>, vector<64x128xbf16>, vector<16x128xf32> -> vector<16x128xf32>
    %72 = arith.addf %65, %71 : vector<16x128xf32>
    %cst_47 = arith.constant 0.000000e+00 : f32
    %73 = vector.broadcast %cst_47 : f32 to vector<16x128xf32>
    %74 = arith.maximumf %72, %73 : vector<16x128xf32>
    %75 = arith.truncf %74 : vector<16x128xf32> to vector<16x128xbf16>
    %c24 = arith.constant 24 : index
    %c0_48 = arith.constant 0 : index
    %76 = vector.load %arg4[%c24, %c0_48] : memref<80x128xf32, #tpu.memory_space<vmem>>, vector<1x128xf32>
    %c288 = arith.constant 288 : index
    %c0_49 = arith.constant 0 : index
    %77 = vector.load %arg2[%c288, %c0_49] : memref<864x32xbf16, #tpu.memory_space<vmem>>, vector<8x16xbf16>
    %cst_50 = arith.constant dense<0.000000e+00> : vector<8x128xf32>
    %78 = tpu.matmul %77, %75, %cst_50 {dimension_numbers = #tpu.dot_dimension_numbers<[1], [0], [0], [1], [0, 0, 1, 1], [], []>} : vector<8x16xbf16>, vector<16x128xbf16>, vector<8x128xf32> -> vector<8x128xf32>
    %79 = arith.truncf %78 : vector<8x128xf32> to vector<8x128xbf16>
    %c768 = arith.constant 768 : index
    %c0_51 = arith.constant 0 : index
    %80 = vector.load %arg3[%c768, %c0_51] : memref<1904x128xbf16, #tpu.memory_space<vmem>>, vector<128x128xbf16>
    %cst_52 = arith.constant dense<0.000000e+00> : vector<8x128xf32>
    %81 = tpu.matmul %79, %80, %cst_52 {dimension_numbers = #tpu.dot_dimension_numbers<[1], [0], [0], [1], [0, 0, 1, 1], [], []>} : vector<8x128xbf16>, vector<128x128xbf16>, vector<8x128xf32> -> vector<8x128xf32>
    %82 = vector.broadcast %76 : vector<1x128xf32> to vector<8x128xf32>
    %83 = arith.addf %82, %81 : vector<8x128xf32>
    %c320_53 = arith.constant 320 : index
    %c0_54 = arith.constant 0 : index
    %84 = vector.load %arg2[%c320_53, %c0_54] : memref<864x32xbf16, #tpu.memory_space<vmem>>, vector<8x16xbf16>
    %cst_55 = arith.constant dense<0.000000e+00> : vector<8x128xf32>
    %85 = tpu.matmul %84, %75, %cst_55 {dimension_numbers = #tpu.dot_dimension_numbers<[1], [0], [0], [1], [0, 0, 1, 1], [], []>} : vector<8x16xbf16>, vector<16x128xbf16>, vector<8x128xf32> -> vector<8x128xf32>
    %86 = arith.truncf %85 : vector<8x128xf32> to vector<8x128xbf16>
    %c896 = arith.constant 896 : index
    %c0_56 = arith.constant 0 : index
    %87 = vector.load %arg3[%c896, %c0_56] : memref<1904x128xbf16, #tpu.memory_space<vmem>>, vector<128x128xbf16>
    %cst_57 = arith.constant dense<0.000000e+00> : vector<8x128xf32>
    %88 = tpu.matmul %86, %87, %cst_57 {dimension_numbers = #tpu.dot_dimension_numbers<[1], [0], [0], [1], [0, 0, 1, 1], [], []>} : vector<8x128xbf16>, vector<128x128xbf16>, vector<8x128xf32> -> vector<8x128xf32>
    %89 = arith.addf %83, %88 : vector<8x128xf32>
    %c352 = arith.constant 352 : index
    %c0_58 = arith.constant 0 : index
    %90 = vector.load %arg2[%c352, %c0_58] : memref<864x32xbf16, #tpu.memory_space<vmem>>, vector<8x16xbf16>
    %cst_59 = arith.constant dense<0.000000e+00> : vector<8x128xf32>
    %91 = tpu.matmul %90, %75, %cst_59 {dimension_numbers = #tpu.dot_dimension_numbers<[1], [0], [0], [1], [0, 0, 1, 1], [], []>} : vector<8x16xbf16>, vector<16x128xbf16>, vector<8x128xf32> -> vector<8x128xf32>
    %92 = arith.truncf %91 : vector<8x128xf32> to vector<8x128xbf16>
    %c1024 = arith.constant 1024 : index
    %c0_60 = arith.constant 0 : index
    %93 = vector.load %arg3[%c1024, %c0_60] : memref<1904x128xbf16, #tpu.memory_space<vmem>>, vector<128x128xbf16>
    %cst_61 = arith.constant dense<0.000000e+00> : vector<8x128xf32>
    %94 = tpu.matmul %92, %93, %cst_61 {dimension_numbers = #tpu.dot_dimension_numbers<[1], [0], [0], [1], [0, 0, 1, 1], [], []>} : vector<8x128xbf16>, vector<128x128xbf16>, vector<8x128xf32> -> vector<8x128xf32>
    %95 = arith.addf %89, %94 : vector<8x128xf32>
    %cst_62 = arith.constant 0.000000e+00 : f32
    %96 = vector.broadcast %cst_62 : f32 to vector<8x128xf32>
    %97 = arith.maximumf %95, %96 : vector<8x128xf32>
    %98 = arith.truncf %97 : vector<8x128xf32> to vector<8x128xbf16>
    %c32_63 = arith.constant 32 : index
    %c0_64 = arith.constant 0 : index
    %99 = vector.load %arg4[%c32_63, %c0_64] : memref<80x128xf32, #tpu.memory_space<vmem>>, vector<1x128xf32>
    %c384 = arith.constant 384 : index
    %c0_65 = arith.constant 0 : index
    %100 = vector.load %arg2[%c384, %c0_65] : memref<864x32xbf16, #tpu.memory_space<vmem>>, vector<8x8xbf16>
    %cst_66 = arith.constant dense<0.000000e+00> : vector<8x128xf32>
    %101 = tpu.matmul %100, %98, %cst_66 {dimension_numbers = #tpu.dot_dimension_numbers<[1], [0], [0], [1], [0, 0, 1, 1], [], []>} : vector<8x8xbf16>, vector<8x128xbf16>, vector<8x128xf32> -> vector<8x128xf32>
    %102 = vector.extract_strided_slice %101 {offsets = [0, 0], sizes = [8, 64], strides = [1, 1]} : vector<8x128xf32> to vector<8x64xf32>
    %103 = arith.truncf %102 : vector<8x64xf32> to vector<8x64xbf16>
    %c1152 = arith.constant 1152 : index
    %c0_67 = arith.constant 0 : index
    %104 = vector.load %arg3[%c1152, %c0_67] : memref<1904x128xbf16, #tpu.memory_space<vmem>>, vector<64x128xbf16>
    %cst_68 = arith.constant dense<0.000000e+00> : vector<8x128xf32>
    %105 = tpu.matmul %103, %104, %cst_68 {dimension_numbers = #tpu.dot_dimension_numbers<[1], [0], [0], [1], [0, 0, 1, 1], [], []>} : vector<8x64xbf16>, vector<64x128xbf16>, vector<8x128xf32> -> vector<8x128xf32>
    %106 = vector.broadcast %99 : vector<1x128xf32> to vector<8x128xf32>
    %107 = arith.addf %106, %105 : vector<8x128xf32>
    %c416 = arith.constant 416 : index
    %c0_69 = arith.constant 0 : index
    %108 = vector.load %arg2[%c416, %c0_69] : memref<864x32xbf16, #tpu.memory_space<vmem>>, vector<8x8xbf16>
    %cst_70 = arith.constant dense<0.000000e+00> : vector<8x128xf32>
    %109 = tpu.matmul %108, %98, %cst_70 {dimension_numbers = #tpu.dot_dimension_numbers<[1], [0], [0], [1], [0, 0, 1, 1], [], []>} : vector<8x8xbf16>, vector<8x128xbf16>, vector<8x128xf32> -> vector<8x128xf32>
    %110 = vector.extract_strided_slice %109 {offsets = [0, 0], sizes = [8, 64], strides = [1, 1]} : vector<8x128xf32> to vector<8x64xf32>
    %111 = arith.truncf %110 : vector<8x64xf32> to vector<8x64xbf16>
    %c1216 = arith.constant 1216 : index
    %c0_71 = arith.constant 0 : index
    %112 = vector.load %arg3[%c1216, %c0_71] : memref<1904x128xbf16, #tpu.memory_space<vmem>>, vector<64x128xbf16>
    %cst_72 = arith.constant dense<0.000000e+00> : vector<8x128xf32>
    %113 = tpu.matmul %111, %112, %cst_72 {dimension_numbers = #tpu.dot_dimension_numbers<[1], [0], [0], [1], [0, 0, 1, 1], [], []>} : vector<8x64xbf16>, vector<64x128xbf16>, vector<8x128xf32> -> vector<8x128xf32>
    %114 = arith.addf %107, %113 : vector<8x128xf32>
    %c448_73 = arith.constant 448 : index
    %c0_74 = arith.constant 0 : index
    %115 = vector.load %arg2[%c448_73, %c0_74] : memref<864x32xbf16, #tpu.memory_space<vmem>>, vector<8x8xbf16>
    %cst_75 = arith.constant dense<0.000000e+00> : vector<8x128xf32>
    %116 = tpu.matmul %115, %98, %cst_75 {dimension_numbers = #tpu.dot_dimension_numbers<[1], [0], [0], [1], [0, 0, 1, 1], [], []>} : vector<8x8xbf16>, vector<8x128xbf16>, vector<8x128xf32> -> vector<8x128xf32>
    %117 = vector.extract_strided_slice %116 {offsets = [0, 0], sizes = [8, 64], strides = [1, 1]} : vector<8x128xf32> to vector<8x64xf32>
    %118 = arith.truncf %117 : vector<8x64xf32> to vector<8x64xbf16>
    %c1280 = arith.constant 1280 : index
    %c0_76 = arith.constant 0 : index
    %119 = vector.load %arg3[%c1280, %c0_76] : memref<1904x128xbf16, #tpu.memory_space<vmem>>, vector<64x128xbf16>
    %cst_77 = arith.constant dense<0.000000e+00> : vector<8x128xf32>
    %120 = tpu.matmul %118, %119, %cst_77 {dimension_numbers = #tpu.dot_dimension_numbers<[1], [0], [0], [1], [0, 0, 1, 1], [], []>} : vector<8x64xbf16>, vector<64x128xbf16>, vector<8x128xf32> -> vector<8x128xf32>
    %121 = arith.addf %114, %120 : vector<8x128xf32>
    %cst_78 = arith.constant 0.000000e+00 : f32
    %122 = vector.broadcast %cst_78 : f32 to vector<8x128xf32>
    %123 = arith.maximumf %121, %122 : vector<8x128xf32>
    %124 = arith.truncf %123 : vector<8x128xf32> to vector<8x128xbf16>
    %c40 = arith.constant 40 : index
    %c0_79 = arith.constant 0 : index
    %125 = vector.load %arg4[%c40, %c0_79] : memref<80x128xf32, #tpu.memory_space<vmem>>, vector<1x128xf32>
    %c480 = arith.constant 480 : index
    %c0_80 = arith.constant 0 : index
    %126 = vector.load %arg2[%c480, %c0_80] : memref<864x32xbf16, #tpu.memory_space<vmem>>, vector<8x8xbf16>
    %cst_81 = arith.constant dense<0.000000e+00> : vector<8x128xf32>
    %127 = tpu.matmul %126, %124, %cst_81 {dimension_numbers = #tpu.dot_dimension_numbers<[1], [0], [0], [1], [0, 0, 1, 1], [], []>} : vector<8x8xbf16>, vector<8x128xbf16>, vector<8x128xf32> -> vector<8x128xf32>
    %128 = vector.extract_strided_slice %127 {offsets = [0, 0], sizes = [8, 32], strides = [1, 1]} : vector<8x128xf32> to vector<8x32xf32>
    %129 = arith.truncf %128 : vector<8x32xf32> to vector<8x32xbf16>
    %c1344 = arith.constant 1344 : index
    %c0_82 = arith.constant 0 : index
    %130 = vector.load %arg3[%c1344, %c0_82] : memref<1904x128xbf16, #tpu.memory_space<vmem>>, vector<32x128xbf16>
    %cst_83 = arith.constant dense<0.000000e+00> : vector<8x128xf32>
    %131 = tpu.matmul %129, %130, %cst_83 {dimension_numbers = #tpu.dot_dimension_numbers<[1], [0], [0], [1], [0, 0, 1, 1], [], []>} : vector<8x32xbf16>, vector<32x128xbf16>, vector<8x128xf32> -> vector<8x128xf32>
    %132 = vector.broadcast %125 : vector<1x128xf32> to vector<8x128xf32>
    %133 = arith.addf %132, %131 : vector<8x128xf32>
    %c512 = arith.constant 512 : index
    %c0_84 = arith.constant 0 : index
    %134 = vector.load %arg2[%c512, %c0_84] : memref<864x32xbf16, #tpu.memory_space<vmem>>, vector<8x8xbf16>
    %cst_85 = arith.constant dense<0.000000e+00> : vector<8x128xf32>
    %135 = tpu.matmul %134, %124, %cst_85 {dimension_numbers = #tpu.dot_dimension_numbers<[1], [0], [0], [1], [0, 0, 1, 1], [], []>} : vector<8x8xbf16>, vector<8x128xbf16>, vector<8x128xf32> -> vector<8x128xf32>
    %136 = vector.extract_strided_slice %135 {offsets = [0, 0], sizes = [8, 32], strides = [1, 1]} : vector<8x128xf32> to vector<8x32xf32>
    %137 = arith.truncf %136 : vector<8x32xf32> to vector<8x32xbf16>
    %c1376 = arith.constant 1376 : index
    %c0_86 = arith.constant 0 : index
    %138 = vector.load %arg3[%c1376, %c0_86] : memref<1904x128xbf16, #tpu.memory_space<vmem>>, vector<32x128xbf16>
    %cst_87 = arith.constant dense<0.000000e+00> : vector<8x128xf32>
    %139 = tpu.matmul %137, %138, %cst_87 {dimension_numbers = #tpu.dot_dimension_numbers<[1], [0], [0], [1], [0, 0, 1, 1], [], []>} : vector<8x32xbf16>, vector<32x128xbf16>, vector<8x128xf32> -> vector<8x128xf32>
    %140 = arith.addf %133, %139 : vector<8x128xf32>
    %cst_88 = arith.constant 0.000000e+00 : f32
    %141 = vector.broadcast %cst_88 : f32 to vector<8x128xf32>
    %142 = arith.maximumf %140, %141 : vector<8x128xf32>
    %143 = arith.truncf %142 : vector<8x128xf32> to vector<8x128xbf16>
    %c48 = arith.constant 48 : index
    %c0_89 = arith.constant 0 : index
    %144 = vector.load %arg4[%c48, %c0_89] : memref<80x128xf32, #tpu.memory_space<vmem>>, vector<1x128xf32>
    %c544 = arith.constant 544 : index
    %c0_90 = arith.constant 0 : index
    %145 = vector.load %arg2[%c544, %c0_90] : memref<864x32xbf16, #tpu.memory_space<vmem>>, vector<16x16xbf16>
    %cst_91 = arith.constant dense<0.000000e+00> : vector<16x128xf32>
    %146 = tpu.matmul %145, %49, %cst_91 {dimension_numbers = #tpu.dot_dimension_numbers<[1], [0], [0], [1], [0, 0, 1, 1], [], []>} : vector<16x16xbf16>, vector<16x128xbf16>, vector<16x128xf32> -> vector<16x128xf32>
    %147 = vector.extract_strided_slice %146 {offsets = [0, 0], sizes = [16, 64], strides = [1, 1]} : vector<16x128xf32> to vector<16x64xf32>
    %148 = arith.truncf %147 : vector<16x64xf32> to vector<16x64xbf16>
    %c1408 = arith.constant 1408 : index
    %c0_92 = arith.constant 0 : index
    %149 = vector.load %arg3[%c1408, %c0_92] : memref<1904x128xbf16, #tpu.memory_space<vmem>>, vector<64x128xbf16>
    %cst_93 = arith.constant dense<0.000000e+00> : vector<16x128xf32>
    %150 = tpu.matmul %148, %149, %cst_93 {dimension_numbers = #tpu.dot_dimension_numbers<[1], [0], [0], [1], [0, 0, 1, 1], [], []>} : vector<16x64xbf16>, vector<64x128xbf16>, vector<16x128xf32> -> vector<16x128xf32>
    %151 = vector.broadcast %144 : vector<1x128xf32> to vector<16x128xf32>
    %152 = arith.addf %151, %150 : vector<16x128xf32>
    %c576_94 = arith.constant 576 : index
    %c0_95 = arith.constant 0 : index
    %153 = vector.load %arg2[%c576_94, %c0_95] : memref<864x32xbf16, #tpu.memory_space<vmem>>, vector<16x16xbf16>
    %cst_96 = arith.constant dense<0.000000e+00> : vector<16x128xf32>
    %154 = tpu.matmul %153, %49, %cst_96 {dimension_numbers = #tpu.dot_dimension_numbers<[1], [0], [0], [1], [0, 0, 1, 1], [], []>} : vector<16x16xbf16>, vector<16x128xbf16>, vector<16x128xf32> -> vector<16x128xf32>
    %155 = vector.extract_strided_slice %154 {offsets = [0, 0], sizes = [16, 64], strides = [1, 1]} : vector<16x128xf32> to vector<16x64xf32>
    %156 = arith.truncf %155 : vector<16x64xf32> to vector<16x64xbf16>
    %c1472 = arith.constant 1472 : index
    %c0_97 = arith.constant 0 : index
    %157 = vector.load %arg3[%c1472, %c0_97] : memref<1904x128xbf16, #tpu.memory_space<vmem>>, vector<64x128xbf16>
    %cst_98 = arith.constant dense<0.000000e+00> : vector<16x128xf32>
    %158 = tpu.matmul %156, %157, %cst_98 {dimension_numbers = #tpu.dot_dimension_numbers<[1], [0], [0], [1], [0, 0, 1, 1], [], []>} : vector<16x64xbf16>, vector<64x128xbf16>, vector<16x128xf32> -> vector<16x128xf32>
    %159 = arith.addf %152, %158 : vector<16x128xf32>
    %c608 = arith.constant 608 : index
    %c0_99 = arith.constant 0 : index
    %160 = vector.load %arg2[%c608, %c0_99] : memref<864x32xbf16, #tpu.memory_space<vmem>>, vector<16x16xbf16>
    %cst_100 = arith.constant dense<0.000000e+00> : vector<16x128xf32>
    %161 = tpu.matmul %160, %49, %cst_100 {dimension_numbers = #tpu.dot_dimension_numbers<[1], [0], [0], [1], [0, 0, 1, 1], [], []>} : vector<16x16xbf16>, vector<16x128xbf16>, vector<16x128xf32> -> vector<16x128xf32>
    %162 = vector.extract_strided_slice %161 {offsets = [0, 0], sizes = [16, 64], strides = [1, 1]} : vector<16x128xf32> to vector<16x64xf32>
    %163 = arith.truncf %162 : vector<16x64xf32> to vector<16x64xbf16>
    %c1536 = arith.constant 1536 : index
    %c0_101 = arith.constant 0 : index
    %164 = vector.load %arg3[%c1536, %c0_101] : memref<1904x128xbf16, #tpu.memory_space<vmem>>, vector<64x128xbf16>
    %cst_102 = arith.constant dense<0.000000e+00> : vector<16x128xf32>
    %165 = tpu.matmul %163, %164, %cst_102 {dimension_numbers = #tpu.dot_dimension_numbers<[1], [0], [0], [1], [0, 0, 1, 1], [], []>} : vector<16x64xbf16>, vector<64x128xbf16>, vector<16x128xf32> -> vector<16x128xf32>
    %166 = arith.addf %159, %165 : vector<16x128xf32>
    %c0_103 = arith.constant 0 : index
    %c0_104 = arith.constant 0 : index
    %167 = vector.load %arg5[%c0_103, %c0_104] : memref<40x128xf32, #tpu.memory_space<vmem>>, vector<16x128xf32>
    tpu.vector_store %arg5[%c0_103, %c0_104], %166 {strides = array<i32>} : memref<40x128xf32, #tpu.memory_space<vmem>>, vector<16x128xf32>,
    %c56 = arith.constant 56 : index
    %c0_105 = arith.constant 0 : index
    %168 = vector.load %arg4[%c56, %c0_105] : memref<80x128xf32, #tpu.memory_space<vmem>>, vector<1x128xf32>
    %c640_106 = arith.constant 640 : index
    %c0_107 = arith.constant 0 : index
    %169 = vector.load %arg2[%c640_106, %c0_107] : memref<864x32xbf16, #tpu.memory_space<vmem>>, vector<8x8xbf16>
    %cst_108 = arith.constant dense<0.000000e+00> : vector<8x128xf32>
    %170 = tpu.matmul %169, %98, %cst_108 {dimension_numbers = #tpu.dot_dimension_numbers<[1], [0], [0], [1], [0, 0, 1, 1], [], []>} : vector<8x8xbf16>, vector<8x128xbf16>, vector<8x128xf32> -> vector<8x128xf32>
    %171 = vector.extract_strided_slice %170 {offsets = [0, 0], sizes = [8, 64], strides = [1, 1]} : vector<8x128xf32> to vector<8x64xf32>
    %172 = arith.truncf %171 : vector<8x64xf32> to vector<8x64xbf16>
    %c1600 = arith.constant 1600 : index
    %c0_109 = arith.constant 0 : index
    %173 = vector.load %arg3[%c1600, %c0_109] : memref<1904x128xbf16, #tpu.memory_space<vmem>>, vector<64x128xbf16>
    %cst_110 = arith.constant dense<0.000000e+00> : vector<8x128xf32>
    %174 = tpu.matmul %172, %173, %cst_110 {dimension_numbers = #tpu.dot_dimension_numbers<[1], [0], [0], [1], [0, 0, 1, 1], [], []>} : vector<8x64xbf16>, vector<64x128xbf16>, vector<8x128xf32> -> vector<8x128xf32>
    %175 = vector.broadcast %168 : vector<1x128xf32> to vector<8x128xf32>
    %176 = arith.addf %175, %174 : vector<8x128xf32>
    %c672 = arith.constant 672 : index
    %c0_111 = arith.constant 0 : index
    %177 = vector.load %arg2[%c672, %c0_111] : memref<864x32xbf16, #tpu.memory_space<vmem>>, vector<8x8xbf16>
    %cst_112 = arith.constant dense<0.000000e+00> : vector<8x128xf32>
    %178 = tpu.matmul %177, %98, %cst_112 {dimension_numbers = #tpu.dot_dimension_numbers<[1], [0], [0], [1], [0, 0, 1, 1], [], []>} : vector<8x8xbf16>, vector<8x128xbf16>, vector<8x128xf32> -> vector<8x128xf32>
    %179 = vector.extract_strided_slice %178 {offsets = [0, 0], sizes = [8, 64], strides = [1, 1]} : vector<8x128xf32> to vector<8x64xf32>
    %180 = arith.truncf %179 : vector<8x64xf32> to vector<8x64xbf16>
    %c1664 = arith.constant 1664 : index
    %c0_113 = arith.constant 0 : index
    %181 = vector.load %arg3[%c1664, %c0_113] : memref<1904x128xbf16, #tpu.memory_space<vmem>>, vector<64x128xbf16>
    %cst_114 = arith.constant dense<0.000000e+00> : vector<8x128xf32>
    %182 = tpu.matmul %180, %181, %cst_114 {dimension_numbers = #tpu.dot_dimension_numbers<[1], [0], [0], [1], [0, 0, 1, 1], [], []>} : vector<8x64xbf16>, vector<64x128xbf16>, vector<8x128xf32> -> vector<8x128xf32>
    %183 = arith.addf %176, %182 : vector<8x128xf32>
    %c704_115 = arith.constant 704 : index
    %c0_116 = arith.constant 0 : index
    %184 = vector.load %arg2[%c704_115, %c0_116] : memref<864x32xbf16, #tpu.memory_space<vmem>>, vector<8x8xbf16>
    %cst_117 = arith.constant dense<0.000000e+00> : vector<8x128xf32>
    %185 = tpu.matmul %184, %98, %cst_117 {dimension_numbers = #tpu.dot_dimension_numbers<[1], [0], [0], [1], [0, 0, 1, 1], [], []>} : vector<8x8xbf16>, vector<8x128xbf16>, vector<8x128xf32> -> vector<8x128xf32>
    %186 = vector.extract_strided_slice %185 {offsets = [0, 0], sizes = [8, 64], strides = [1, 1]} : vector<8x128xf32> to vector<8x64xf32>
    %187 = arith.truncf %186 : vector<8x64xf32> to vector<8x64xbf16>
    %c1728 = arith.constant 1728 : index
    %c0_118 = arith.constant 0 : index
    %188 = vector.load %arg3[%c1728, %c0_118] : memref<1904x128xbf16, #tpu.memory_space<vmem>>, vector<64x128xbf16>
    %cst_119 = arith.constant dense<0.000000e+00> : vector<8x128xf32>
    %189 = tpu.matmul %187, %188, %cst_119 {dimension_numbers = #tpu.dot_dimension_numbers<[1], [0], [0], [1], [0, 0, 1, 1], [], []>} : vector<8x64xbf16>, vector<64x128xbf16>, vector<8x128xf32> -> vector<8x128xf32>
    %190 = arith.addf %183, %189 : vector<8x128xf32>
    %c16_120 = arith.constant 16 : index
    %c0_121 = arith.constant 0 : index
    %191 = vector.load %arg5[%c16_120, %c0_121] : memref<40x128xf32, #tpu.memory_space<vmem>>, vector<8x128xf32>
    tpu.vector_store %arg5[%c16_120, %c0_121], %190 {strides = array<i32>} : memref<40x128xf32, #tpu.memory_space<vmem>>, vector<8x128xf32>,
    %c64_122 = arith.constant 64 : index
    %c0_123 = arith.constant 0 : index
    %192 = vector.load %arg4[%c64_122, %c0_123] : memref<80x128xf32, #tpu.memory_space<vmem>>, vector<1x128xf32>
    %c736 = arith.constant 736 : index
    %c0_124 = arith.constant 0 : index
    %193 = vector.load %arg2[%c736, %c0_124] : memref<864x32xbf16, #tpu.memory_space<vmem>>, vector<8x8xbf16>
    %cst_125 = arith.constant dense<0.000000e+00> : vector<8x128xf32>
    %194 = tpu.matmul %193, %124, %cst_125 {dimension_numbers = #tpu.dot_dimension_numbers<[1], [0], [0], [1], [0, 0, 1, 1], [], []>} : vector<8x8xbf16>, vector<8x128xbf16>, vector<8x128xf32> -> vector<8x128xf32>
    %195 = vector.extract_strided_slice %194 {offsets = [0, 0], sizes = [8, 32], strides = [1, 1]} : vector<8x128xf32> to vector<8x32xf32>
    %196 = arith.truncf %195 : vector<8x32xf32> to vector<8x32xbf16>
    %c1792 = arith.constant 1792 : index
    %c0_126 = arith.constant 0 : index
    %197 = vector.load %arg3[%c1792, %c0_126] : memref<1904x128xbf16, #tpu.memory_space<vmem>>, vector<32x128xbf16>
    %cst_127 = arith.constant dense<0.000000e+00> : vector<8x128xf32>
    %198 = tpu.matmul %196, %197, %cst_127 {dimension_numbers = #tpu.dot_dimension_numbers<[1], [0], [0], [1], [0, 0, 1, 1], [], []>} : vector<8x32xbf16>, vector<32x128xbf16>, vector<8x128xf32> -> vector<8x128xf32>
    %199 = vector.broadcast %192 : vector<1x128xf32> to vector<8x128xf32>
    %200 = arith.addf %199, %198 : vector<8x128xf32>
    %c768_128 = arith.constant 768 : index
    %c0_129 = arith.constant 0 : index
    %201 = vector.load %arg2[%c768_128, %c0_129] : memref<864x32xbf16, #tpu.memory_space<vmem>>, vector<8x8xbf16>
    %cst_130 = arith.constant dense<0.000000e+00> : vector<8x128xf32>
    %202 = tpu.matmul %201, %124, %cst_130 {dimension_numbers = #tpu.dot_dimension_numbers<[1], [0], [0], [1], [0, 0, 1, 1], [], []>} : vector<8x8xbf16>, vector<8x128xbf16>, vector<8x128xf32> -> vector<8x128xf32>
    %203 = vector.extract_strided_slice %202 {offsets = [0, 0], sizes = [8, 32], strides = [1, 1]} : vector<8x128xf32> to vector<8x32xf32>
    %204 = arith.truncf %203 : vector<8x32xf32> to vector<8x32xbf16>
    %c1824 = arith.constant 1824 : index
    %c0_131 = arith.constant 0 : index
    %205 = vector.load %arg3[%c1824, %c0_131] : memref<1904x128xbf16, #tpu.memory_space<vmem>>, vector<32x128xbf16>
    %cst_132 = arith.constant dense<0.000000e+00> : vector<8x128xf32>
    %206 = tpu.matmul %204, %205, %cst_132 {dimension_numbers = #tpu.dot_dimension_numbers<[1], [0], [0], [1], [0, 0, 1, 1], [], []>} : vector<8x32xbf16>, vector<32x128xbf16>, vector<8x128xf32> -> vector<8x128xf32>
    %207 = arith.addf %200, %206 : vector<8x128xf32>
    %c800 = arith.constant 800 : index
    %c0_133 = arith.constant 0 : index
    %208 = vector.load %arg2[%c800, %c0_133] : memref<864x32xbf16, #tpu.memory_space<vmem>>, vector<8x8xbf16>
    %cst_134 = arith.constant dense<0.000000e+00> : vector<8x128xf32>
    %209 = tpu.matmul %208, %124, %cst_134 {dimension_numbers = #tpu.dot_dimension_numbers<[1], [0], [0], [1], [0, 0, 1, 1], [], []>} : vector<8x8xbf16>, vector<8x128xbf16>, vector<8x128xf32> -> vector<8x128xf32>
    %210 = vector.extract_strided_slice %209 {offsets = [0, 0], sizes = [8, 32], strides = [1, 1]} : vector<8x128xf32> to vector<8x32xf32>
    %211 = arith.truncf %210 : vector<8x32xf32> to vector<8x32xbf16>
    %c1856 = arith.constant 1856 : index
    %c0_135 = arith.constant 0 : index
    %212 = vector.load %arg3[%c1856, %c0_135] : memref<1904x128xbf16, #tpu.memory_space<vmem>>, vector<32x128xbf16>
    %cst_136 = arith.constant dense<0.000000e+00> : vector<8x128xf32>
    %213 = tpu.matmul %211, %212, %cst_136 {dimension_numbers = #tpu.dot_dimension_numbers<[1], [0], [0], [1], [0, 0, 1, 1], [], []>} : vector<8x32xbf16>, vector<32x128xbf16>, vector<8x128xf32> -> vector<8x128xf32>
    %214 = arith.addf %207, %213 : vector<8x128xf32>
    %c24_137 = arith.constant 24 : index
    %c0_138 = arith.constant 0 : index
    %215 = vector.load %arg5[%c24_137, %c0_138] : memref<40x128xf32, #tpu.memory_space<vmem>>, vector<8x128xf32>
    tpu.vector_store %arg5[%c24_137, %c0_138], %214 {strides = array<i32>} : memref<40x128xf32, #tpu.memory_space<vmem>>, vector<8x128xf32>,
    %c72 = arith.constant 72 : index
    %c0_139 = arith.constant 0 : index
    %216 = vector.load %arg4[%c72, %c0_139] : memref<80x128xf32, #tpu.memory_space<vmem>>, vector<1x128xf32>
    %c832 = arith.constant 832 : index
    %c0_140 = arith.constant 0 : index
    %217 = vector.load %arg2[%c832, %c0_140] : memref<864x32xbf16, #tpu.memory_space<vmem>>, vector<8x8xbf16>
    %cst_141 = arith.constant dense<0.000000e+00> : vector<8x128xf32>
    %218 = tpu.matmul %217, %143, %cst_141 {dimension_numbers = #tpu.dot_dimension_numbers<[1], [0], [0], [1], [0, 0, 1, 1], [], []>} : vector<8x8xbf16>, vector<8x128xbf16>, vector<8x128xf32> -> vector<8x128xf32>
    %219 = vector.extract_strided_slice %218 {offsets = [0, 0], sizes = [8, 16], strides = [1, 1]} : vector<8x128xf32> to vector<8x16xf32>
    %220 = arith.truncf %219 : vector<8x16xf32> to vector<8x16xbf16>
    %c1888 = arith.constant 1888 : index
    %c0_142 = arith.constant 0 : index
    %221 = vector.load %arg3[%c1888, %c0_142] : memref<1904x128xbf16, #tpu.memory_space<vmem>>, vector<16x128xbf16>
    %cst_143 = arith.constant dense<0.000000e+00> : vector<8x128xf32>
    %222 = tpu.matmul %220, %221, %cst_143 {dimension_numbers = #tpu.dot_dimension_numbers<[1], [0], [0], [1], [0, 0, 1, 1], [], []>} : vector<8x16xbf16>, vector<16x128xbf16>, vector<8x128xf32> -> vector<8x128xf32>
    %223 = vector.broadcast %216 : vector<1x128xf32> to vector<8x128xf32>
    %224 = arith.addf %223, %222 : vector<8x128xf32>
    %c32_144 = arith.constant 32 : index
    %c0_145 = arith.constant 0 : index
    %225 = vector.load %arg5[%c32_144, %c0_145] : memref<40x128xf32, #tpu.memory_space<vmem>>, vector<8x128xf32>
    tpu.vector_store %arg5[%c32_144, %c0_145], %224 {strides = array<i32>} : memref<40x128xf32, #tpu.memory_space<vmem>>, vector<8x128xf32>,
    return
  }
  func.func @transform_0(%arg0: i32) -> (i32, i32) {
    %c0_i32 = arith.constant 0 : i32
    %c0_i32_0 = arith.constant 0 : i32
    %c0_i32_1 = arith.constant 0 : i32
    return %c0_i32, %c0_i32_0 : i32, i32
  }
  func.func @transform_1(%arg0: i32) -> (i32, i32) {
    %c0_i32 = arith.constant 0 : i32
    %c0_i32_0 = arith.constant 0 : i32
    %c0_i32_1 = arith.constant 0 : i32
    return %c0_i32, %c0_i32_0 : i32, i32
  }
  func.func @transform_2(%arg0: i32) -> (i32, i32) {
    %c0_i32 = arith.constant 0 : i32
    %c0_i32_0 = arith.constant 0 : i32
    %c0_i32_1 = arith.constant 0 : i32
    return %c0_i32, %c0_i32_0 : i32, i32
  }
  func.func @transform_3(%arg0: i32) -> (i32, i32) {
    %c0_i32 = arith.constant 0 : i32
    %c0_i32_0 = arith.constant 0 : i32
    %c0_i32_1 = arith.constant 0 : i32
    return %c0_i32, %c0_i32_0 : i32, i32
  }
  func.func @transform_4(%arg0: i32) -> (i32, i32) {
    %c0_i32 = arith.constant 0 : i32
    %c0_i32_0 = arith.constant 0 : i32
    %c0_i32_1 = arith.constant 0 : i32
    return %c0_i32, %c0_i32_0 : i32, i32
  }
}

</mosaic_0001>

<llo_original>
// kernel: ssd_forward.1
$region0: #{ssd_forward.1}
  #allocation0 [shape = 'u32[]', space=smem, size = 0x4, offset = 0x4, fixed_abs, tag = 'smem constant byte address 0x4 - core index']
  #allocation1 [shape = 'u32[144,128]{1,0:T(1,128)}', space=vmem, size = 0x12000, scoped, tag = 'internal scratch']
  %s0 = inlined_call_operand.vmem [shape: bf16[32,128], index: 0, kind: input, shape index: {}]
  %s1 = inlined_call_operand.vmem [shape: bf16[864,32], index: 1, kind: input, shape index: {}]
  %s2 = inlined_call_operand.vmem [shape: bf16[1904,128], index: 2, kind: input, shape index: {}]
  %s3 = inlined_call_operand.vmem [shape: f32[80,128], index: 3, kind: input, shape index: {}]
  %s4 = inlined_call_operand.vmem [shape: f32[40,128], index: 4, kind: output, shape index: {}]
  %s5 = sld [smem:[#allocation0]]
  $region26: #{ssd_forward.1} parent=0
    _
  %s7 = ssub.s32 1, %s5
  %s8 = scalar_select 0, %s7, %s5
  // Predicated region
  $region2: #{ssd_forward.1} parent=0 // pred_check
    _
  $region3: #{ssd_forward.1} parent=0 // pred_check_branch
    %10 = sbr.rel (0) target = $region5
  $region4: #{ssd_forward.1} parent=0 // pred_region
    _
  $region5: #{ssd_forward.1} parent=0 // pred_fallthru
    _
  // Predicated region
  $region6: #{ssd_forward.1} parent=0 // pred_check
    _
  $region7: #{ssd_forward.1} parent=0 // pred_check_branch
    %12 = sbr.rel (0) target = $region9
  $region8: #{ssd_forward.1} parent=0 // pred_region
    _
  $region9: #{ssd_forward.1} parent=0 // pred_fallthru
    _
  // Predicated region
  $region10: #{ssd_forward.1} parent=0 // pred_check
    _
  $region11: #{ssd_forward.1} parent=0 // pred_check_branch
    %14 = sbr.rel (0) target = $region13
  $region12: #{ssd_forward.1} parent=0 // pred_region
    _
  $region13: #{ssd_forward.1} parent=0 // pred_fallthru
    _
  // Predicated region
  $region14: #{ssd_forward.1} parent=0 // pred_check
    _
  $region15: #{ssd_forward.1} parent=0 // pred_check_branch
    %16 = sbr.rel (0) target = $region17
  $region16: #{ssd_forward.1} parent=0 // pred_region
    _
  $region17: #{ssd_forward.1} parent=0 // pred_fallthru
    _
  %v18 = vld [vmem:[%s0] sm:$0xf]
  %v19 = vld [vmem:[%s0 + $0x4] sm:$0xf]
  %v20 = vld [vmem:[%s0 + $0x8] sm:$0xf]
  %v21 = vld [vmem:[%s0 + $0xc] sm:$0xf]
  %v22 = vld [vmem:[%s3] sm:$0x1]
  %v23 = vld [vmem:[%s1] sm:$0xf]
  %v24 = vld [vmem:[%s1 + $0x4] sm:$0xf]
  %v25 = vld [vmem:[%s1 + $0x8] sm:$0xf]
  %v26 = vld [vmem:[%s1 + $0xc] sm:$0xf]
  %v31 = vunpack.c.l.b16 %v23
  %v32 = vunpack.c.l.b16 %v24
  %v33 = vunpack.c.l.b16 %v25
  %v34 = vunpack.c.l.b16 %v26
  %v35 = vpack.c.b16 %v32, %v31
  %v36 = vpack.c.b16 %v34, %v33
  %v41 = vunpack.c.l.b16 %v18
  %v42 = vunpack.c.l.b16 %v19
  %v43 = vunpack.c.l.b16 %v20
  %v44 = vunpack.c.l.b16 %v21
  %v45 = vpack.c.b16 %v42, %v41
  %v46 = vpack.c.b16 %v44, %v43
  %vm49 = vcmask 261120
  %v51 = vsel %vm49, %v35, 0
  %v54 = vsel %vm49, %v36, 0
  %56 = vmatprep.subr.bf16.mxu0 0
  %57 = vmatpush1.bf16.msra.mxu0 0
  %58 = vmatprep.subr.bf16.mxu0 0
  %59 = vmatpush1.bf16.msra.mxu0 0
  %60 = vmatprep.subr.bf16.mxu0 0
  %61 = vmatpush1.bf16.msra.mxu0 0
  %62 = vmatprep.subr.bf16.mxu0 0
  %63 = vmatpush1.bf16.msra.mxu0 0
  %64 = vmatprep.subr.bf16.mxu0 0
  %65 = vmatpush1.bf16.msra.mxu0 0
  %66 = vmatprep.subr.bf16.mxu0 0
  %67 = vmatpush1.bf16.msra.mxu0 0
  %68 = vmatprep.subr.bf16.mxu0 0
  %69 = vmatpush1.bf16.msra.mxu0 %v46
  %70 = vmatprep.subr.bf16.mxu0 0
  %71 = vmatpush1.bf16.msra.mxu0 %v45
  %72 = vmatprep.subr.bf16.mxu0 0
  %73 = vmatpush2.bf16.msra.mxu0 0
  %74 = vmatprep.subr.bf16.mxu0 0
  %75 = vmatpush2.bf16.msra.mxu0 0
  %76 = vmatprep.subr.bf16.mxu0 0
  %77 = vmatpush2.bf16.msra.mxu0 0
  %78 = vmatprep.subr.bf16.mxu0 0
  %79 = vmatpush2.bf16.msra.mxu0 0
  %80 = vmatprep.subr.bf16.mxu0 0
  %81 = vmatpush2.bf16.msra.mxu0 0
  %82 = vmatprep.subr.bf16.mxu0 0
  %83 = vmatpush2.bf16.msra.mxu0 0
  %84 = vmatprep.subr.bf16.mxu0 0
  %85 = vmatpush2.bf16.msra.mxu0 0
  %86 = vmatprep.subr.bf16.mxu0 0
  %87 = vmatpush2.bf16.msra.mxu0 0
  %88 = vmatprep.mubr.bf16.mxu0 0
  %89 = vmatmul.mubr.bf16.gmra.mxu0 %v51
  %v90 = vpop.f32.mrf.mxu0
  %v91 = vadd.f32 0.0, %v90
  %v92 = vpop.f32.mrf.mxu0
  %v93 = vpop.f32.mrf.mxu0
  %v94 = vadd.f32 0.0, %v93
  %v95 = vpop.f32.mrf.mxu0
  %96 = vmatprep.mubr.bf16.mxu0 0
  %97 = vmatmul.mubr.bf16.gmra.mxu0 %v54
  %v98 = vpop.f32.mrf.mxu0
  %v99 = vadd.f32 0.0, %v98
  %v100 = vpop.f32.mrf.mxu0
  %v101 = vpop.f32.mrf.mxu0
  %v102 = vadd.f32 0.0, %v101
  %v103 = vpop.f32.mrf.mxu0
  %104 = vdwg.mxu0
  %v105 = vpack.c.bf16 %v94, %v91
  %v106 = vpack.c.bf16 %v102, %v99
  %v107 = vld [vmem:[%s2] sm:$0xf]
  %v108 = vld [vmem:[%s2 + $0x4] sm:$0xf]
  %v109 = vld [vmem:[%s2 + $0x8] sm:$0xf]
  %v110 = vld [vmem:[%s2 + $0xc] sm:$0xf]
  %v111 = vld [vmem:[%s2 + $0x10] sm:$0xf]
  %v112 = vld [vmem:[%s2 + $0x14] sm:$0xf]
  %v113 = vld [vmem:[%s2 + $0x18] sm:$0xf]
  %v114 = vld [vmem:[%s2 + $0x1c] sm:$0xf]
  %v123 = vunpack.c.l.b16 %v107
  %v124 = vunpack.c.l.b16 %v108
  %v125 = vunpack.c.l.b16 %v109
  %v126 = vunpack.c.l.b16 %v110
  %v127 = vunpack.c.l.b16 %v111
  %v128 = vunpack.c.l.b16 %v112
  %v129 = vunpack.c.l.b16 %v113
  %v130 = vunpack.c.l.b16 %v114
  %v131 = vpack.c.b16 %v124, %v123
  %v132 = vpack.c.b16 %v126, %v125
  %v133 = vpack.c.b16 %v128, %v127
  %v134 = vpack.c.b16 %v130, %v129
  %vm139 = vcmask 523264
  %v141 = vsel %vm139, %v105, 0
  %v144 = vsel %vm139, %v106, 0
  %146 = vmatprep.subr.bf16.mxu0 0
  %147 = vmatpush1.bf16.msra.mxu0 0
  %148 = vmatprep.subr.bf16.mxu0 0
  %149 = vmatpush1.bf16.msra.mxu0 0
  %150 = vmatprep.subr.bf16.mxu0 0
  %151 = vmatpush1.bf16.msra.mxu0 0
  %152 = vmatprep.subr.bf16.mxu0 0
  %153 = vmatpush1.bf16.msra.mxu0 0
  %154 = vmatprep.subr.bf16.mxu0 0
  %155 = vmatpush1.bf16.msra.mxu0 %v134
  %156 = vmatprep.subr.bf16.mxu0 0
  %157 = vmatpush1.bf16.msra.mxu0 %v133
  %158 = vmatprep.subr.bf16.mxu0 0
  %159 = vmatpush1.bf16.msra.mxu0 %v132
  %160 = vmatprep.subr.bf16.mxu0 0
  %161 = vmatpush1.bf16.msra.mxu0 %v131
  %162 = vmatprep.subr.bf16.mxu0 0
  %163 = vmatpush2.bf16.msra.mxu0 0
  %164 = vmatprep.subr.bf16.mxu0 0
  %165 = vmatpush2.bf16.msra.mxu0 0
  %166 = vmatprep.subr.bf16.mxu0 0
  %167 = vmatpush2.bf16.msra.mxu0 0
  %168 = vmatprep.subr.bf16.mxu0 0
  %169 = vmatpush2.bf16.msra.mxu0 0
  %170 = vmatprep.subr.bf16.mxu0 0
  %171 = vmatpush2.bf16.msra.mxu0 0
  %172 = vmatprep.subr.bf16.mxu0 0
  %173 = vmatpush2.bf16.msra.mxu0 0
  %174 = vmatprep.subr.bf16.mxu0 0
  %175 = vmatpush2.bf16.msra.mxu0 0
  %176 = vmatprep.subr.bf16.mxu0 0
  %177 = vmatpush2.bf16.msra.mxu0 0
  %178 = vmatprep.mubr.bf16.mxu0 0
  %179 = vmatmul.mubr.bf16.gmra.mxu0 %v141
  %v180 = vpop.f32.mrf.mxu0
  %v181 = vadd.f32 0.0, %v180
  %v182 = vpop.f32.mrf.mxu0
  %v183 = vpop.f32.mrf.mxu0
  %v184 = vadd.f32 0.0, %v183
  %v185 = vpop.f32.mrf.mxu0
  %186 = vmatprep.mubr.bf16.mxu0 0
  %187 = vmatmul.mubr.bf16.gmra.mxu0 %v144
  %v188 = vpop.f32.mrf.mxu0
  %v189 = vadd.f32 0.0, %v188
  %v190 = vpop.f32.mrf.mxu0
  %v191 = vpop.f32.mrf.mxu0
  %v192 = vadd.f32 0.0, %v191
  %v193 = vpop.f32.mrf.mxu0
  %194 = vdwg.mxu0
  %v195 = vlaneseq
  %v196 = vshrl.u32 %v195, 7
  %v197 = vsub.s32 0, %v196
  %v198 = vrot.slane %v22, %v197
  %v199 = vadd.f32 %v198, %v181
  %v200 = vadd.f32 %v198, %v184
  %v201 = vadd.f32 %v198, %v189
  %v202 = vadd.f32 %v198, %v192
  %v203 = vld [vmem:[%s1 + $0x10] sm:$0xf]
  %v204 = vld [vmem:[%s1 + $0x14] sm:$0xf]
  %v205 = vld [vmem:[%s1 + $0x18] sm:$0xf]
  %v206 = vld [vmem:[%s1 + $0x1c] sm:$0xf]
  %v211 = vunpack.c.l.b16 %v203
  %v212 = vunpack.c.l.b16 %v204
  %v213 = vunpack.c.l.b16 %v205
  %v214 = vunpack.c.l.b16 %v206
  %v215 = vpack.c.b16 %v212, %v211
  %v216 = vpack.c.b16 %v214, %v213
  %v218 = vsel %vm49, %v215, 0
  %v221 = vsel %vm49, %v216, 0
  %223 = vmatprep.subr.bf16.mxu0 0
  %224 = vmatpush1.bf16.msra.mxu0 0
  %225 = vmatprep.subr.bf16.mxu0 0
  %226 = vmatpush1.bf16.msra.mxu0 0
  %227 = vmatprep.subr.bf16.mxu0 0
  %228 = vmatpush1.bf16.msra.mxu0 0
  %229 = vmatprep.subr.bf16.mxu0 0
  %230 = vmatpush1.bf16.msra.mxu0 0
  %231 = vmatprep.subr.bf16.mxu0 0
  %232 = vmatpush1.bf16.msra.mxu0 0
  %233 = vmatprep.subr.bf16.mxu0 0
  %234 = vmatpush1.bf16.msra.mxu0 0
  %235 = vmatprep.subr.bf16.mxu0 0
  %236 = vmatpush1.bf16.msra.mxu0 %v46
  %237 = vmatprep.subr.bf16.mxu0 0
  %238 = vmatpush1.bf16.msra.mxu0 %v45
  %239 = vmatprep.subr.bf16.mxu0 0
  %240 = vmatpush2.bf16.msra.mxu0 0
  %241 = vmatprep.subr.bf16.mxu0 0
  %242 = vmatpush2.bf16.msra.mxu0 0
  %243 = vmatprep.subr.bf16.mxu0 0
  %244 = vmatpush2.bf16.msra.mxu0 0
  %245 = vmatprep.subr.bf16.mxu0 0
  %246 = vmatpush2.bf16.msra.mxu0 0
  %247 = vmatprep.subr.bf16.mxu0 0
  %248 = vmatpush2.bf16.msra.mxu0 0
  %249 = vmatprep.subr.bf16.mxu0 0
  %250 = vmatpush2.bf16.msra.mxu0 0
  %251 = vmatprep.subr.bf16.mxu0 0
  %252 = vmatpush2.bf16.msra.mxu0 0
  %253 = vmatprep.subr.bf16.mxu0 0
  %254 = vmatpush2.bf16.msra.mxu0 0
  %255 = vmatprep.mubr.bf16.mxu0 0
  %256 = vmatmul.mubr.bf16.gmra.mxu0 %v218
  %v257 = vpop.f32.mrf.mxu0
  %v258 = vadd.f32 0.0, %v257
  %v259 = vpop.f32.mrf.mxu0
  %v260 = vpop.f32.mrf.mxu0
  %v261 = vadd.f32 0.0, %v260
  %v262 = vpop.f32.mrf.mxu0
  %263 = vmatprep.mubr.bf16.mxu0 0
  %264 = vmatmul.mubr.bf16.gmra.mxu0 %v221
  %v265 = vpop.f32.mrf.mxu0
  %v266 = vadd.f32 0.0, %v265
  %v267 = vpop.f32.mrf.mxu0
  %v268 = vpop.f32.mrf.mxu0
  %v269 = vadd.f32 0.0, %v268
  %v270 = vpop.f32.mrf.mxu0
  %271 = vdwg.mxu0
  %v272 = vpack.c.bf16 %v261, %v258
  %v273 = vpack.c.bf16 %v269, %v266
  %v274 = vld [vmem:[%s2 + $0x20] sm:$0xf]
  %v275 = vld [vmem:[%s2 + $0x24] sm:$0xf]
  %v276 = vld [vmem:[%s2 + $0x28] sm:$0xf]
  %v277 = vld [vmem:[%s2 + $0x2c] sm:$0xf]
  %v278 = vld [vmem:[%s2 + $0x30] sm:$0xf]
  %v279 = vld [vmem:[%s2 + $0x34] sm:$0xf]
  %v280 = vld [vmem:[%s2 + $0x38] sm:$0xf]
  %v281 = vld [vmem:[%s2 + $0x3c] sm:$0xf]
  %v290 = vunpack.c.l.b16 %v274
  %v291 = vunpack.c.l.b16 %v275
  %v292 = vunpack.c.l.b16 %v276
  %v293 = vunpack.c.l.b16 %v277
  %v294 = vunpack.c.l.b16 %v278
  %v295 = vunpack.c.l.b16 %v279
  %v296 = vunpack.c.l.b16 %v280
  %v297 = vunpack.c.l.b16 %v281
  %v298 = vpack.c.b16 %v291, %v290
  %v299 = vpack.c.b16 %v293, %v292
  %v300 = vpack.c.b16 %v295, %v294
  %v301 = vpack.c.b16 %v297, %v296
  %v307 = vsel %vm139, %v272, 0
  %v310 = vsel %vm139, %v273, 0
  %312 = vmatprep.subr.bf16.mxu0 0
  %313 = vmatpush1.bf16.msra.mxu0 0
  %314 = vmatprep.subr.bf16.mxu0 0
  %315 = vmatpush1.bf16.msra.mxu0 0
  %316 = vmatprep.subr.bf16.mxu0 0
  %317 = vmatpush1.bf16.msra.mxu0 0
  %318 = vmatprep.subr.bf16.mxu0 0
  %319 = vmatpush1.bf16.msra.mxu0 0
  %320 = vmatprep.subr.bf16.mxu0 0
  %321 = vmatpush1.bf16.msra.mxu0 %v301
  %322 = vmatprep.subr.bf16.mxu0 0
  %323 = vmatpush1.bf16.msra.mxu0 %v300
  %324 = vmatprep.subr.bf16.mxu0 0
  %325 = vmatpush1.bf16.msra.mxu0 %v299
  %326 = vmatprep.subr.bf16.mxu0 0
  %327 = vmatpush1.bf16.msra.mxu0 %v298
  %328 = vmatprep.subr.bf16.mxu0 0
  %329 = vmatpush2.bf16.msra.mxu0 0
  %330 = vmatprep.subr.bf16.mxu0 0
  %331 = vmatpush2.bf16.msra.mxu0 0
  %332 = vmatprep.subr.bf16.mxu0 0
  %333 = vmatpush2.bf16.msra.mxu0 0
  %334 = vmatprep.subr.bf16.mxu0 0
  %335 = vmatpush2.bf16.msra.mxu0 0
  %336 = vmatprep.subr.bf16.mxu0 0
  %337 = vmatpush2.bf16.msra.mxu0 0
  %338 = vmatprep.subr.bf16.mxu0 0
  %339 = vmatpush2.bf16.msra.mxu0 0
  %340 = vmatprep.subr.bf16.mxu0 0
  %341 = vmatpush2.bf16.msra.mxu0 0
  %342 = vmatprep.subr.bf16.mxu0 0
  %343 = vmatpush2.bf16.msra.mxu0 0
  %344 = vmatprep.mubr.bf16.mxu0 0
  %345 = vmatmul.mubr.bf16.gmra.mxu0 %v307
  %v346 = vpop.f32.mrf.mxu0
  %v347 = vadd.f32 0.0, %v346
  %v348 = vpop.f32.mrf.mxu0
  %v349 = vpop.f32.mrf.mxu0
  %v350 = vadd.f32 0.0, %v349
  %v351 = vpop.f32.mrf.mxu0
  %352 = vmatprep.mubr.bf16.mxu0 0
  %353 = vmatmul.mubr.bf16.gmra.mxu0 %v310
  %v354 = vpop.f32.mrf.mxu0
  %v355 = vadd.f32 0.0, %v354
  %v356 = vpop.f32.mrf.mxu0
  %v357 = vpop.f32.mrf.mxu0
  %v358 = vadd.f32 0.0, %v357
  %v359 = vpop.f32.mrf.mxu0
  %360 = vdwg.mxu0
  %v361 = vadd.f32 %v199, %v347
  %v362 = vadd.f32 %v200, %v350
  %v363 = vadd.f32 %v201, %v355
  %v364 = vadd.f32 %v202, %v358
  %v365 = vld [vmem:[%s1 + $0x20] sm:$0xf]
  %v366 = vld [vmem:[%s1 + $0x24] sm:$0xf]
  %v367 = vld [vmem:[%s1 + $0x28] sm:$0xf]
  %v368 = vld [vmem:[%s1 + $0x2c] sm:$0xf]
  %v373 = vunpack.c.l.b16 %v365
  %v374 = vunpack.c.l.b16 %v366
  %v375 = vunpack.c.l.b16 %v367
  %v376 = vunpack.c.l.b16 %v368
  %v377 = vpack.c.b16 %v374, %v373
  %v378 = vpack.c.b16 %v376, %v375
  %v380 = vsel %vm49, %v377, 0
  %v383 = vsel %vm49, %v378, 0
  %385 = vmatprep.subr.bf16.mxu0 0
  %386 = vmatpush1.bf16.msra.mxu0 0
  %387 = vmatprep.subr.bf16.mxu0 0
  %388 = vmatpush1.bf16.msra.mxu0 0
  %389 = vmatprep.subr.bf16.mxu0 0
  %390 = vmatpush1.bf16.msra.mxu0 0
  %391 = vmatprep.subr.bf16.mxu0 0
  %392 = vmatpush1.bf16.msra.mxu0 0
  %393 = vmatprep.subr.bf16.mxu0 0
  %394 = vmatpush1.bf16.msra.mxu0 0
  %395 = vmatprep.subr.bf16.mxu0 0
  %396 = vmatpush1.bf16.msra.mxu0 0
  %397 = vmatprep.subr.bf16.mxu0 0
  %398 = vmatpush1.bf16.msra.mxu0 %v46
  %399 = vmatprep.subr.bf16.mxu0 0
  %400 = vmatpush1.bf16.msra.mxu0 %v45
  %401 = vmatprep.subr.bf16.mxu0 0
  %402 = vmatpush2.bf16.msra.mxu0 0
  %403 = vmatprep.subr.bf16.mxu0 0
  %404 = vmatpush2.bf16.msra.mxu0 0
  %405 = vmatprep.subr.bf16.mxu0 0
  %406 = vmatpush2.bf16.msra.mxu0 0
  %407 = vmatprep.subr.bf16.mxu0 0
  %408 = vmatpush2.bf16.msra.mxu0 0
  %409 = vmatprep.subr.bf16.mxu0 0
  %410 = vmatpush2.bf16.msra.mxu0 0
  %411 = vmatprep.subr.bf16.mxu0 0
  %412 = vmatpush2.bf16.msra.mxu0 0
  %413 = vmatprep.subr.bf16.mxu0 0
  %414 = vmatpush2.bf16.msra.mxu0 0
  %415 = vmatprep.subr.bf16.mxu0 0
  %416 = vmatpush2.bf16.msra.mxu0 0
  %417 = vmatprep.mubr.bf16.mxu0 0
  %418 = vmatmul.mubr.bf16.gmra.mxu0 %v380
  %v419 = vpop.f32.mrf.mxu0
  %v420 = vadd.f32 0.0, %v419
  %v421 = vpop.f32.mrf.mxu0
  %v422 = vpop.f32.mrf.mxu0
  %v423 = vadd.f32 0.0, %v422
  %v424 = vpop.f32.mrf.mxu0
  %425 = vmatprep.mubr.bf16.mxu0 0
  %426 = vmatmul.mubr.bf16.gmra.mxu0 %v383
  %v427 = vpop.f32.mrf.mxu0
  %v428 = vadd.f32 0.0, %v427
  %v429 = vpop.f32.mrf.mxu0
  %v430 = vpop.f32.mrf.mxu0
  %v431 = vadd.f32 0.0, %v430
  %v432 = vpop.f32.mrf.mxu0
  %433 = vdwg.mxu0
  %v434 = vpack.c.bf16 %v423, %v420
  %v435 = vpack.c.bf16 %v431, %v428
  %v436 = vld [vmem:[%s2 + $0x40] sm:$0xf]
  %v437 = vld [vmem:[%s2 + $0x44] sm:$0xf]
  %v438 = vld [vmem:[%s2 + $0x48] sm:$0xf]
  %v439 = vld [vmem:[%s2 + $0x4c] sm:$0xf]
  %v440 = vld [vmem:[%s2 + $0x50] sm:$0xf]
  %v441 = vld [vmem:[%s2 + $0x54] sm:$0xf]
  %v442 = vld [vmem:[%s2 + $0x58] sm:$0xf]
  %v443 = vld [vmem:[%s2 + $0x5c] sm:$0xf]
  %v452 = vunpack.c.l.b16 %v436
  %v453 = vunpack.c.l.b16 %v437
  %v454 = vunpack.c.l.b16 %v438
  %v455 = vunpack.c.l.b16 %v439
  %v456 = vunpack.c.l.b16 %v440
  %v457 = vunpack.c.l.b16 %v441
  %v458 = vunpack.c.l.b16 %v442
  %v459 = vunpack.c.l.b16 %v443
  %v460 = vpack.c.b16 %v453, %v452
  %v461 = vpack.c.b16 %v455, %v454
  %v462 = vpack.c.b16 %v457, %v456
  %v463 = vpack.c.b16 %v459, %v458
  %v469 = vsel %vm139, %v434, 0
  %v472 = vsel %vm139, %v435, 0
  %474 = vmatprep.subr.bf16.mxu0 0
  %475 = vmatpush1.bf16.msra.mxu0 0
  %476 = vmatprep.subr.bf16.mxu0 0
  %477 = vmatpush1.bf16.msra.mxu0 0
  %478 = vmatprep.subr.bf16.mxu0 0
  %479 = vmatpush1.bf16.msra.mxu0 0
  %480 = vmatprep.subr.bf16.mxu0 0
  %481 = vmatpush1.bf16.msra.mxu0 0
  %482 = vmatprep.subr.bf16.mxu0 0
  %483 = vmatpush1.bf16.msra.mxu0 %v463
  %484 = vmatprep.subr.bf16.mxu0 0
  %485 = vmatpush1.bf16.msra.mxu0 %v462
  %486 = vmatprep.subr.bf16.mxu0 0
  %487 = vmatpush1.bf16.msra.mxu0 %v461
  %488 = vmatprep.subr.bf16.mxu0 0
  %489 = vmatpush1.bf16.msra.mxu0 %v460
  %490 = vmatprep.subr.bf16.mxu0 0
  %491 = vmatpush2.bf16.msra.mxu0 0
  %492 = vmatprep.subr.bf16.mxu0 0
  %493 = vmatpush2.bf16.msra.mxu0 0
  %494 = vmatprep.subr.bf16.mxu0 0
  %495 = vmatpush2.bf16.msra.mxu0 0
  %496 = vmatprep.subr.bf16.mxu0 0
  %497 = vmatpush2.bf16.msra.mxu0 0
  %498 = vmatprep.subr.bf16.mxu0 0
  %499 = vmatpush2.bf16.msra.mxu0 0
  %500 = vmatprep.subr.bf16.mxu0 0
  %501 = vmatpush2.bf16.msra.mxu0 0
  %502 = vmatprep.subr.bf16.mxu0 0
  %503 = vmatpush2.bf16.msra.mxu0 0
  %504 = vmatprep.subr.bf16.mxu0 0
  %505 = vmatpush2.bf16.msra.mxu0 0
  %506 = vmatprep.mubr.bf16.mxu0 0
  %507 = vmatmul.mubr.bf16.gmra.mxu0 %v469
  %v508 = vpop.f32.mrf.mxu0
  %v509 = vadd.f32 0.0, %v508
  %v510 = vpop.f32.mrf.mxu0
  %v511 = vpop.f32.mrf.mxu0
  %v512 = vadd.f32 0.0, %v511
  %v513 = vpop.f32.mrf.mxu0
  %514 = vmatprep.mubr.bf16.mxu0 0
  %515 = vmatmul.mubr.bf16.gmra.mxu0 %v472
  %v516 = vpop.f32.mrf.mxu0
  %v517 = vadd.f32 0.0, %v516
  %v518 = vpop.f32.mrf.mxu0
  %v519 = vpop.f32.mrf.mxu0
  %v520 = vadd.f32 0.0, %v519
  %v521 = vpop.f32.mrf.mxu0
  %522 = vdwg.mxu0
  %v523 = vadd.f32 %v361, %v509
  %v524 = vadd.f32 %v362, %v512
  %v525 = vadd.f32 %v363, %v517
  %v526 = vadd.f32 %v364, %v520
  %v527 = vmax.f32 %v523, 0.0
  %v528 = vmax.f32 %v524, 0.0
  %v529 = vmax.f32 %v525, 0.0
  %v530 = vmax.f32 %v526, 0.0
  %v531 = vpack.c.bf16 %v528, %v527
  %v532 = vpack.c.bf16 %v530, %v529
  %v533 = vld [vmem:[%s3 + $0x8] sm:$0x1]
  %v534 = vld [vmem:[%s1 + $0x30] sm:$0xf]
  %v535 = vld [vmem:[%s1 + $0x34] sm:$0xf]
  %v538 = vunpack.c.l.b16 %v534
  %v539 = vunpack.c.l.b16 %v535
  %v540 = vpack.c.b16 %v539, %v538
  %v542 = vsel %vm49, %v540, 0
  %544 = vmatprep.subr.bf16.mxu0 0
  %545 = vmatpush1.bf16.msra.mxu0 0
  %546 = vmatprep.subr.bf16.mxu0 0
  %547 = vmatpush1.bf16.msra.mxu0 0
  %548 = vmatprep.subr.bf16.mxu0 0
  %549 = vmatpush1.bf16.msra.mxu0 0
  %550 = vmatprep.subr.bf16.mxu0 0
  %551 = vmatpush1.bf16.msra.mxu0 0
  %552 = vmatprep.subr.bf16.mxu0 0
  %553 = vmatpush1.bf16.msra.mxu0 0
  %554 = vmatprep.subr.bf16.mxu0 0
  %555 = vmatpush1.bf16.msra.mxu0 0
  %556 = vmatprep.subr.bf16.mxu0 0
  %557 = vmatpush1.bf16.msra.mxu0 %v532
  %558 = vmatprep.subr.bf16.mxu0 0
  %559 = vmatpush1.bf16.msra.mxu0 %v531
  %560 = vmatprep.subr.bf16.mxu0 0
  %561 = vmatpush2.bf16.msra.mxu0 0
  %562 = vmatprep.subr.bf16.mxu0 0
  %563 = vmatpush2.bf16.msra.mxu0 0
  %564 = vmatprep.subr.bf16.mxu0 0
  %565 = vmatpush2.bf16.msra.mxu0 0
  %566 = vmatprep.subr.bf16.mxu0 0
  %567 = vmatpush2.bf16.msra.mxu0 0
  %568 = vmatprep.subr.bf16.mxu0 0
  %569 = vmatpush2.bf16.msra.mxu0 0
  %570 = vmatprep.subr.bf16.mxu0 0
  %571 = vmatpush2.bf16.msra.mxu0 0
  %572 = vmatprep.subr.bf16.mxu0 0
  %573 = vmatpush2.bf16.msra.mxu0 0
  %574 = vmatprep.subr.bf16.mxu0 0
  %575 = vmatpush2.bf16.msra.mxu0 0
  %576 = vmatprep.mubr.bf16.mxu0 0
  %577 = vmatmul.mubr.bf16.gmra.mxu0 %v542
  %v578 = vpop.f32.mrf.mxu0
  %v579 = vadd.f32 0.0, %v578
  %v580 = vpop.f32.mrf.mxu0
  %v581 = vpop.f32.mrf.mxu0
  %v582 = vadd.f32 0.0, %v581
  %v583 = vpop.f32.mrf.mxu0
  %584 = vdwg.mxu0
  %v585 = vpack.c.bf16 %v582, %v579
  %v586 = vld [vmem:[%s2 + $0x60] sm:$0xf]
  %v587 = vld [vmem:[%s2 + $0x64] sm:$0xf]
  %v588 = vld [vmem:[%s2 + $0x68] sm:$0xf]
  %v589 = vld [vmem:[%s2 + $0x6c] sm:$0xf]
  %v590 = vld [vmem:[%s2 + $0x70] sm:$0xf]
  %v591 = vld [vmem:[%s2 + $0x74] sm:$0xf]
  %v592 = vld [vmem:[%s2 + $0x78] sm:$0xf]
  %v593 = vld [vmem:[%s2 + $0x7c] sm:$0xf]
  %v594 = vld [vmem:[%s2 + $0x80] sm:$0xf]
  %v595 = vld [vmem:[%s2 + $0x84] sm:$0xf]
  %v596 = vld [vmem:[%s2 + $0x88] sm:$0xf]
  %v597 = vld [vmem:[%s2 + $0x8c] sm:$0xf]
  %v598 = vld [vmem:[%s2 + $0x90] sm:$0xf]
  %v599 = vld [vmem:[%s2 + $0x94] sm:$0xf]
  %v600 = vld [vmem:[%s2 + $0x98] sm:$0xf]
  %v601 = vld [vmem:[%s2 + $0x9c] sm:$0xf]
  %v618 = vunpack.c.l.b16 %v586
  %v619 = vunpack.c.l.b16 %v587
  %v620 = vunpack.c.l.b16 %v588
  %v621 = vunpack.c.l.b16 %v589
  %v622 = vunpack.c.l.b16 %v590
  %v623 = vunpack.c.l.b16 %v591
  %v624 = vunpack.c.l.b16 %v592
  %v625 = vunpack.c.l.b16 %v593
  %v626 = vunpack.c.l.b16 %v594
  %v627 = vunpack.c.l.b16 %v595
  %v628 = vunpack.c.l.b16 %v596
  %v629 = vunpack.c.l.b16 %v597
  %v630 = vunpack.c.l.b16 %v598
  %v631 = vunpack.c.l.b16 %v599
  %v632 = vunpack.c.l.b16 %v600
  %v633 = vunpack.c.l.b16 %v601
  %v634 = vpack.c.b16 %v619, %v618
  %v635 = vpack.c.b16 %v621, %v620
  %v636 = vpack.c.b16 %v623, %v622
  %v637 = vpack.c.b16 %v625, %v624
  %v638 = vpack.c.b16 %v627, %v626
  %v639 = vpack.c.b16 %v629, %v628
  %v640 = vpack.c.b16 %v631, %v630
  %v641 = vpack.c.b16 %v633, %v632
  %650 = vmatprep.subr.bf16.mxu0 0
  %651 = vmatpush1.bf16.msra.mxu0 %v641
  %652 = vmatprep.subr.bf16.mxu0 0
  %653 = vmatpush1.bf16.msra.mxu0 %v640
  %654 = vmatprep.subr.bf16.mxu0 0
  %655 = vmatpush1.bf16.msra.mxu0 %v639
  %656 = vmatprep.subr.bf16.mxu0 0
  %657 = vmatpush1.bf16.msra.mxu0 %v638
  %658 = vmatprep.subr.bf16.mxu0 0
  %659 = vmatpush1.bf16.msra.mxu0 %v637
  %660 = vmatprep.subr.bf16.mxu0 0
  %661 = vmatpush1.bf16.msra.mxu0 %v636
  %662 = vmatprep.subr.bf16.mxu0 0
  %663 = vmatpush1.bf16.msra.mxu0 %v635
  %664 = vmatprep.subr.bf16.mxu0 0
  %665 = vmatpush1.bf16.msra.mxu0 %v634
  %666 = vmatprep.subr.bf16.mxu0 0
  %667 = vmatpush2.bf16.msra.mxu0 0
  %668 = vmatprep.subr.bf16.mxu0 0
  %669 = vmatpush2.bf16.msra.mxu0 0
  %670 = vmatprep.subr.bf16.mxu0 0
  %671 = vmatpush2.bf16.msra.mxu0 0
  %672 = vmatprep.subr.bf16.mxu0 0
  %673 = vmatpush2.bf16.msra.mxu0 0
  %674 = vmatprep.subr.bf16.mxu0 0
  %675 = vmatpush2.bf16.msra.mxu0 0
  %676 = vmatprep.subr.bf16.mxu0 0
  %677 = vmatpush2.bf16.msra.mxu0 0
  %678 = vmatprep.subr.bf16.mxu0 0
  %679 = vmatpush2.bf16.msra.mxu0 0
  %680 = vmatprep.subr.bf16.mxu0 0
  %681 = vmatpush2.bf16.msra.mxu0 0
  %682 = vmatprep.mubr.bf16.mxu0 0
  %683 = vmatmul.mubr.bf16.gmra.mxu0 %v585
  %v684 = vpop.f32.mrf.mxu0
  %v685 = vadd.f32 0.0, %v684
  %v686 = vpop.f32.mrf.mxu0
  %v687 = vpop.f32.mrf.mxu0
  %v688 = vadd.f32 0.0, %v687
  %v689 = vpop.f32.mrf.mxu0
  %690 = vdwg.mxu0
  %v691 = vlaneseq
  %v692 = vshrl.u32 %v691, 7
  %v693 = vsub.s32 0, %v692
  %v694 = vrot.slane %v533, %v693
  %v695 = vadd.f32 %v694, %v685
  %v696 = vadd.f32 %v694, %v688
  %v697 = vld [vmem:[%s1 + $0x40] sm:$0xf]
  %v698 = vld [vmem:[%s1 + $0x44] sm:$0xf]
  %v701 = vunpack.c.l.b16 %v697
  %v702 = vunpack.c.l.b16 %v698
  %v703 = vpack.c.b16 %v702, %v701
  %v705 = vsel %vm49, %v703, 0
  %707 = vmatprep.subr.bf16.mxu0 0
  %708 = vmatpush1.bf16.msra.mxu0 0
  %709 = vmatprep.subr.bf16.mxu0 0
  %710 = vmatpush1.bf16.msra.mxu0 0
  %711 = vmatprep.subr.bf16.mxu0 0
  %712 = vmatpush1.bf16.msra.mxu0 0
  %713 = vmatprep.subr.bf16.mxu0 0
  %714 = vmatpush1.bf16.msra.mxu0 0
  %715 = vmatprep.subr.bf16.mxu0 0
  %716 = vmatpush1.bf16.msra.mxu0 0
  %717 = vmatprep.subr.bf16.mxu0 0
  %718 = vmatpush1.bf16.msra.mxu0 0
  %719 = vmatprep.subr.bf16.mxu0 0
  %720 = vmatpush1.bf16.msra.mxu0 %v532
  %721 = vmatprep.subr.bf16.mxu0 0
  %722 = vmatpush1.bf16.msra.mxu0 %v531
  %723 = vmatprep.subr.bf16.mxu0 0
  %724 = vmatpush2.bf16.msra.mxu0 0
  %725 = vmatprep.subr.bf16.mxu0 0
  %726 = vmatpush2.bf16.msra.mxu0 0
  %727 = vmatprep.subr.bf16.mxu0 0
  %728 = vmatpush2.bf16.msra.mxu0 0
  %729 = vmatprep.subr.bf16.mxu0 0
  %730 = vmatpush2.bf16.msra.mxu0 0
  %731 = vmatprep.subr.bf16.mxu0 0
  %732 = vmatpush2.bf16.msra.mxu0 0
  %733 = vmatprep.subr.bf16.mxu0 0
  %734 = vmatpush2.bf16.msra.mxu0 0
  %735 = vmatprep.subr.bf16.mxu0 0
  %736 = vmatpush2.bf16.msra.mxu0 0
  %737 = vmatprep.subr.bf16.mxu0 0
  %738 = vmatpush2.bf16.msra.mxu0 0
  %739 = vmatprep.mubr.bf16.mxu0 0
  %740 = vmatmul.mubr.bf16.gmra.mxu0 %v705
  %v741 = vpop.f32.mrf.mxu0
  %v742 = vadd.f32 0.0, %v741
  %v743 = vpop.f32.mrf.mxu0
  %v744 = vpop.f32.mrf.mxu0
  %v745 = vadd.f32 0.0, %v744
  %v746 = vpop.f32.mrf.mxu0
  %747 = vdwg.mxu0
  %v748 = vpack.c.bf16 %v745, %v742
  %v749 = vld [vmem:[%s2 + $0xa0] sm:$0xf]
  %v750 = vld [vmem:[%s2 + $0xa4] sm:$0xf]
  %v751 = vld [vmem:[%s2 + $0xa8] sm:$0xf]
  %v752 = vld [vmem:[%s2 + $0xac] sm:$0xf]
  %v753 = vld [vmem:[%s2 + $0xb0] sm:$0xf]
  %v754 = vld [vmem:[%s2 + $0xb4] sm:$0xf]
  %v755 = vld [vmem:[%s2 + $0xb8] sm:$0xf]
  %v756 = vld [vmem:[%s2 + $0xbc] sm:$0xf]
  %v757 = vld [vmem:[%s2 + $0xc0] sm:$0xf]
  %v758 = vld [vmem:[%s2 + $0xc4] sm:$0xf]
  %v759 = vld [vmem:[%s2 + $0xc8] sm:$0xf]
  %v760 = vld [vmem:[%s2 + $0xcc] sm:$0xf]
  %v761 = vld [vmem:[%s2 + $0xd0] sm:$0xf]
  %v762 = vld [vmem:[%s2 + $0xd4] sm:$0xf]
  %v763 = vld [vmem:[%s2 + $0xd8] sm:$0xf]
  %v764 = vld [vmem:[%s2 + $0xdc] sm:$0xf]
  %v781 = vunpack.c.l.b16 %v749
  %v782 = vunpack.c.l.b16 %v750
  %v783 = vunpack.c.l.b16 %v751
  %v784 = vunpack.c.l.b16 %v752
  %v785 = vunpack.c.l.b16 %v753
  %v786 = vunpack.c.l.b16 %v754
  %v787 = vunpack.c.l.b16 %v755
  %v788 = vunpack.c.l.b16 %v756
  %v789 = vunpack.c.l.b16 %v757
  %v790 = vunpack.c.l.b16 %v758
  %v791 = vunpack.c.l.b16 %v759
  %v792 = vunpack.c.l.b16 %v760
  %v793 = vunpack.c.l.b16 %v761
  %v794 = vunpack.c.l.b16 %v762
  %v795 = vunpack.c.l.b16 %v763
  %v796 = vunpack.c.l.b16 %v764
  %v797 = vpack.c.b16 %v782, %v781
  %v798 = vpack.c.b16 %v784, %v783
  %v799 = vpack.c.b16 %v786, %v785
  %v800 = vpack.c.b16 %v788, %v787
  %v801 = vpack.c.b16 %v790, %v789
  %v802 = vpack.c.b16 %v792, %v791
  %v803 = vpack.c.b16 %v794, %v793
  %v804 = vpack.c.b16 %v796, %v795
  %813 = vmatprep.subr.bf16.mxu0 0
  %814 = vmatpush1.bf16.msra.mxu0 %v804
  %815 = vmatprep.subr.bf16.mxu0 0
  %816 = vmatpush1.bf16.msra.mxu0 %v803
  %817 = vmatprep.subr.bf16.mxu0 0
  %818 = vmatpush1.bf16.msra.mxu0 %v802
  %819 = vmatprep.subr.bf16.mxu0 0
  %820 = vmatpush1.bf16.msra.mxu0 %v801
  %821 = vmatprep.subr.bf16.mxu0 0
  %822 = vmatpush1.bf16.msra.mxu0 %v800
  %823 = vmatprep.subr.bf16.mxu0 0
  %824 = vmatpush1.bf16.msra.mxu0 %v799
  %825 = vmatprep.subr.bf16.mxu0 0
  %826 = vmatpush1.bf16.msra.mxu0 %v798
  %827 = vmatprep.subr.bf16.mxu0 0
  %828 = vmatpush1.bf16.msra.mxu0 %v797
  %829 = vmatprep.subr.bf16.mxu0 0
  %830 = vmatpush2.bf16.msra.mxu0 0
  %831 = vmatprep.subr.bf16.mxu0 0
  %832 = vmatpush2.bf16.msra.mxu0 0
  %833 = vmatprep.subr.bf16.mxu0 0
  %834 = vmatpush2.bf16.msra.mxu0 0
  %835 = vmatprep.subr.bf16.mxu0 0
  %836 = vmatpush2.bf16.msra.mxu0 0
  %837 = vmatprep.subr.bf16.mxu0 0
  %838 = vmatpush2.bf16.msra.mxu0 0
  %839 = vmatprep.subr.bf16.mxu0 0
  %840 = vmatpush2.bf16.msra.mxu0 0
  %841 = vmatprep.subr.bf16.mxu0 0
  %842 = vmatpush2.bf16.msra.mxu0 0
  %843 = vmatprep.subr.bf16.mxu0 0
  %844 = vmatpush2.bf16.msra.mxu0 0
  %845 = vmatprep.mubr.bf16.mxu0 0
  %846 = vmatmul.mubr.bf16.gmra.mxu0 %v748
  %v847 = vpop.f32.mrf.mxu0
  %v848 = vadd.f32 0.0, %v847
  %v849 = vpop.f32.mrf.mxu0
  %v850 = vpop.f32.mrf.mxu0
  %v851 = vadd.f32 0.0, %v850
  %v852 = vpop.f32.mrf.mxu0
  %853 = vdwg.mxu0
  %v854 = vadd.f32 %v695, %v848
  %v855 = vadd.f32 %v696, %v851
  %v856 = vld [vmem:[%s1 + $0x50] sm:$0xf]
  %v857 = vld [vmem:[%s1 + $0x54] sm:$0xf]
  %v860 = vunpack.c.l.b16 %v856
  %v861 = vunpack.c.l.b16 %v857
  %v862 = vpack.c.b16 %v861, %v860
  %v864 = vsel %vm49, %v862, 0
  %866 = vmatprep.subr.bf16.mxu0 0
  %867 = vmatpush1.bf16.msra.mxu0 0
  %868 = vmatprep.subr.bf16.mxu0 0
  %869 = vmatpush1.bf16.msra.mxu0 0
  %870 = vmatprep.subr.bf16.mxu0 0
  %871 = vmatpush1.bf16.msra.mxu0 0
  %872 = vmatprep.subr.bf16.mxu0 0
  %873 = vmatpush1.bf16.msra.mxu0 0
  %874 = vmatprep.subr.bf16.mxu0 0
  %875 = vmatpush1.bf16.msra.mxu0 0
  %876 = vmatprep.subr.bf16.mxu0 0
  %877 = vmatpush1.bf16.msra.mxu0 0
  %878 = vmatprep.subr.bf16.mxu0 0
  %879 = vmatpush1.bf16.msra.mxu0 %v532
  %880 = vmatprep.subr.bf16.mxu0 0
  %881 = vmatpush1.bf16.msra.mxu0 %v531
  %882 = vmatprep.subr.bf16.mxu0 0
  %883 = vmatpush2.bf16.msra.mxu0 0
  %884 = vmatprep.subr.bf16.mxu0 0
  %885 = vmatpush2.bf16.msra.mxu0 0
  %886 = vmatprep.subr.bf16.mxu0 0
  %887 = vmatpush2.bf16.msra.mxu0 0
  %888 = vmatprep.subr.bf16.mxu0 0
  %889 = vmatpush2.bf16.msra.mxu0 0
  %890 = vmatprep.subr.bf16.mxu0 0
  %891 = vmatpush2.bf16.msra.mxu0 0
  %892 = vmatprep.subr.bf16.mxu0 0
  %893 = vmatpush2.bf16.msra.mxu0 0
  %894 = vmatprep.subr.bf16.mxu0 0
  %895 = vmatpush2.bf16.msra.mxu0 0
  %896 = vmatprep.subr.bf16.mxu0 0
  %897 = vmatpush2.bf16.msra.mxu0 0
  %898 = vmatprep.mubr.bf16.mxu0 0
  %899 = vmatmul.mubr.bf16.gmra.mxu0 %v864
  %v900 = vpop.f32.mrf.mxu0
  %v901 = vadd.f32 0.0, %v900
  %v902 = vpop.f32.mrf.mxu0
  %v903 = vpop.f32.mrf.mxu0
  %v904 = vadd.f32 0.0, %v903
  %v905 = vpop.f32.mrf.mxu0
  %906 = vdwg.mxu0
  %v907 = vpack.c.bf16 %v904, %v901
  %v908 = vld [vmem:[%s2 + $0xe0] sm:$0xf]
  %v909 = vld [vmem:[%s2 + $0xe4] sm:$0xf]
  %v910 = vld [vmem:[%s2 + $0xe8] sm:$0xf]
  %v911 = vld [vmem:[%s2 + $0xec] sm:$0xf]
  %v912 = vld [vmem:[%s2 + $0xf0] sm:$0xf]
  %v913 = vld [vmem:[%s2 + $0xf4] sm:$0xf]
  %v914 = vld [vmem:[%s2 + $0xf8] sm:$0xf]
  %v915 = vld [vmem:[%s2 + $0xfc] sm:$0xf]
  %v916 = vld [vmem:[%s2 + $0x100] sm:$0xf]
  %v917 = vld [vmem:[%s2 + $0x104] sm:$0xf]
  %v918 = vld [vmem:[%s2 + $0x108] sm:$0xf]
  %v919 = vld [vmem:[%s2 + $0x10c] sm:$0xf]
  %v920 = vld [vmem:[%s2 + $0x110] sm:$0xf]
  %v921 = vld [vmem:[%s2 + $0x114] sm:$0xf]
  %v922 = vld [vmem:[%s2 + $0x118] sm:$0xf]
  %v923 = vld [vmem:[%s2 + $0x11c] sm:$0xf]
  %v940 = vunpack.c.l.b16 %v908
  %v941 = vunpack.c.l.b16 %v909
  %v942 = vunpack.c.l.b16 %v910
  %v943 = vunpack.c.l.b16 %v911
  %v944 = vunpack.c.l.b16 %v912
  %v945 = vunpack.c.l.b16 %v913
  %v946 = vunpack.c.l.b16 %v914
  %v947 = vunpack.c.l.b16 %v915
  %v948 = vunpack.c.l.b16 %v916
  %v949 = vunpack.c.l.b16 %v917
  %v950 = vunpack.c.l.b16 %v918
  %v951 = vunpack.c.l.b16 %v919
  %v952 = vunpack.c.l.b16 %v920
  %v953 = vunpack.c.l.b16 %v921
  %v954 = vunpack.c.l.b16 %v922
  %v955 = vunpack.c.l.b16 %v923
  %v956 = vpack.c.b16 %v941, %v940
  %v957 = vpack.c.b16 %v943, %v942
  %v958 = vpack.c.b16 %v945, %v944
  %v959 = vpack.c.b16 %v947, %v946
  %v960 = vpack.c.b16 %v949, %v948
  %v961 = vpack.c.b16 %v951, %v950
  %v962 = vpack.c.b16 %v953, %v952
  %v963 = vpack.c.b16 %v955, %v954
  %972 = vmatprep.subr.bf16.mxu0 0
  %973 = vmatpush1.bf16.msra.mxu0 %v963
  %974 = vmatprep.subr.bf16.mxu0 0
  %975 = vmatpush1.bf16.msra.mxu0 %v962
  %976 = vmatprep.subr.bf16.mxu0 0
  %977 = vmatpush1.bf16.msra.mxu0 %v961
  %978 = vmatprep.subr.bf16.mxu0 0
  %979 = vmatpush1.bf16.msra.mxu0 %v960
  %980 = vmatprep.subr.bf16.mxu0 0
  %981 = vmatpush1.bf16.msra.mxu0 %v959
  %982 = vmatprep.subr.bf16.mxu0 0
  %983 = vmatpush1.bf16.msra.mxu0 %v958
  %984 = vmatprep.subr.bf16.mxu0 0
  %985 = vmatpush1.bf16.msra.mxu0 %v957
  %986 = vmatprep.subr.bf16.mxu0 0
  %987 = vmatpush1.bf16.msra.mxu0 %v956
  %988 = vmatprep.subr.bf16.mxu0 0
  %989 = vmatpush2.bf16.msra.mxu0 0
  %990 = vmatprep.subr.bf16.mxu0 0
  %991 = vmatpush2.bf16.msra.mxu0 0
  %992 = vmatprep.subr.bf16.mxu0 0
  %993 = vmatpush2.bf16.msra.mxu0 0
  %994 = vmatprep.subr.bf16.mxu0 0
  %995 = vmatpush2.bf16.msra.mxu0 0
  %996 = vmatprep.subr.bf16.mxu0 0
  %997 = vmatpush2.bf16.msra.mxu0 0
  %998 = vmatprep.subr.bf16.mxu0 0
  %999 = vmatpush2.bf16.msra.mxu0 0
  %1000 = vmatprep.subr.bf16.mxu0 0
  %1001 = vmatpush2.bf16.msra.mxu0 0
  %1002 = vmatprep.subr.bf16.mxu0 0
  %1003 = vmatpush2.bf16.msra.mxu0 0
  %1004 = vmatprep.mubr.bf16.mxu0 0
  %1005 = vmatmul.mubr.bf16.gmra.mxu0 %v907
  %v1006 = vpop.f32.mrf.mxu0
  %v1007 = vadd.f32 0.0, %v1006
  %v1008 = vpop.f32.mrf.mxu0
  %v1009 = vpop.f32.mrf.mxu0
  %v1010 = vadd.f32 0.0, %v1009
  %v1011 = vpop.f32.mrf.mxu0
  %1012 = vdwg.mxu0
  %v1013 = vadd.f32 %v854, %v1007
  %v1014 = vadd.f32 %v855, %v1010
  %v1015 = vmax.f32 %v1013, 0.0
  %v1016 = vmax.f32 %v1014, 0.0
  %v1017 = vpack.c.bf16 %v1016, %v1015
  %v1018 = vld [vmem:[%s3 + $0x10] sm:$0x1]
  %v1019 = vld [vmem:[%s1 + $0x60] sm:$0xf]
  %v1020 = vld [vmem:[%s1 + $0x64] sm:$0xf]
  %v1023 = vunpack.c.l.b16 %v1019
  %v1024 = vunpack.c.l.b16 %v1020
  %v1025 = vpack.c.b16 %v1024, %v1023
  %vm1026 = vcmask 130048
  %v1028 = vsel %vm1026, %v1025, 0
  %1030 = vmatprep.subr.bf16.mxu0 0
  %1031 = vmatpush1.bf16.msra.mxu0 0
  %1032 = vmatprep.subr.bf16.mxu0 0
  %1033 = vmatpush1.bf16.msra.mxu0 0
  %1034 = vmatprep.subr.bf16.mxu0 0
  %1035 = vmatpush1.bf16.msra.mxu0 0
  %1036 = vmatprep.subr.bf16.mxu0 0
  %1037 = vmatpush1.bf16.msra.mxu0 0
  %1038 = vmatprep.subr.bf16.mxu0 0
  %1039 = vmatpush1.bf16.msra.mxu0 0
  %1040 = vmatprep.subr.bf16.mxu0 0
  %1041 = vmatpush1.bf16.msra.mxu0 0
  %1042 = vmatprep.subr.bf16.mxu0 0
  %1043 = vmatpush1.bf16.msra.mxu0 0
  %1044 = vmatprep.subr.bf16.mxu0 0
  %1045 = vmatpush1.bf16.msra.mxu0 %v1017
  %1046 = vmatprep.subr.bf16.mxu0 0
  %1047 = vmatpush2.bf16.msra.mxu0 0
  %1048 = vmatprep.subr.bf16.mxu0 0
  %1049 = vmatpush2.bf16.msra.mxu0 0
  %1050 = vmatprep.subr.bf16.mxu0 0
  %1051 = vmatpush2.bf16.msra.mxu0 0
  %1052 = vmatprep.subr.bf16.mxu0 0
  %1053 = vmatpush2.bf16.msra.mxu0 0
  %1054 = vmatprep.subr.bf16.mxu0 0
  %1055 = vmatpush2.bf16.msra.mxu0 0
  %1056 = vmatprep.subr.bf16.mxu0 0
  %1057 = vmatpush2.bf16.msra.mxu0 0
  %1058 = vmatprep.subr.bf16.mxu0 0
  %1059 = vmatpush2.bf16.msra.mxu0 0
  %1060 = vmatprep.subr.bf16.mxu0 0
  %1061 = vmatpush2.bf16.msra.mxu0 0
  %1062 = vmatprep.mubr.bf16.mxu0 0
  %1063 = vmatmul.mubr.bf16.gmra.mxu0 %v1028
  %v1064 = vpop.f32.mrf.mxu0
  %v1065 = vadd.f32 0.0, %v1064
  %v1066 = vpop.f32.mrf.mxu0
  %v1067 = vpop.f32.mrf.mxu0
  %v1068 = vadd.f32 0.0, %v1067
  %v1069 = vpop.f32.mrf.mxu0
  %1070 = vdwg.mxu0
  %v1071 = vpack.c.bf16 %v1068, %v1065
  %v1072 = vld [vmem:[%s2 + $0x120] sm:$0xf]
  %v1073 = vld [vmem:[%s2 + $0x124] sm:$0xf]
  %v1074 = vld [vmem:[%s2 + $0x128] sm:$0xf]
  %v1075 = vld [vmem:[%s2 + $0x12c] sm:$0xf]
  %v1076 = vld [vmem:[%s2 + $0x130] sm:$0xf]
  %v1077 = vld [vmem:[%s2 + $0x134] sm:$0xf]
  %v1078 = vld [vmem:[%s2 + $0x138] sm:$0xf]
  %v1079 = vld [vmem:[%s2 + $0x13c] sm:$0xf]
  %v1088 = vunpack.c.l.b16 %v1072
  %v1089 = vunpack.c.l.b16 %v1073
  %v1090 = vunpack.c.l.b16 %v1074
  %v1091 = vunpack.c.l.b16 %v1075
  %v1092 = vunpack.c.l.b16 %v1076
  %v1093 = vunpack.c.l.b16 %v1077
  %v1094 = vunpack.c.l.b16 %v1078
  %v1095 = vunpack.c.l.b16 %v1079
  %v1096 = vpack.c.b16 %v1089, %v1088
  %v1097 = vpack.c.b16 %v1091, %v1090
  %v1098 = vpack.c.b16 %v1093, %v1092
  %v1099 = vpack.c.b16 %v1095, %v1094
  %v1105 = vsel %vm139, %v1071, 0
  %1107 = vmatprep.subr.bf16.mxu0 0
  %1108 = vmatpush1.bf16.msra.mxu0 0
  %1109 = vmatprep.subr.bf16.mxu0 0
  %1110 = vmatpush1.bf16.msra.mxu0 0
  %1111 = vmatprep.subr.bf16.mxu0 0
  %1112 = vmatpush1.bf16.msra.mxu0 0
  %1113 = vmatprep.subr.bf16.mxu0 0
  %1114 = vmatpush1.bf16.msra.mxu0 0
  %1115 = vmatprep.subr.bf16.mxu0 0
  %1116 = vmatpush1.bf16.msra.mxu0 %v1099
  %1117 = vmatprep.subr.bf16.mxu0 0
  %1118 = vmatpush1.bf16.msra.mxu0 %v1098
  %1119 = vmatprep.subr.bf16.mxu0 0
  %1120 = vmatpush1.bf16.msra.mxu0 %v1097
  %1121 = vmatprep.subr.bf16.mxu0 0
  %1122 = vmatpush1.bf16.msra.mxu0 %v1096
  %1123 = vmatprep.subr.bf16.mxu0 0
  %1124 = vmatpush2.bf16.msra.mxu0 0
  %1125 = vmatprep.subr.bf16.mxu0 0
  %1126 = vmatpush2.bf16.msra.mxu0 0
  %1127 = vmatprep.subr.bf16.mxu0 0
  %1128 = vmatpush2.bf16.msra.mxu0 0
  %1129 = vmatprep.subr.bf16.mxu0 0
  %1130 = vmatpush2.bf16.msra.mxu0 0
  %1131 = vmatprep.subr.bf16.mxu0 0
  %1132 = vmatpush2.bf16.msra.mxu0 0
  %1133 = vmatprep.subr.bf16.mxu0 0
  %1134 = vmatpush2.bf16.msra.mxu0 0
  %1135 = vmatprep.subr.bf16.mxu0 0
  %1136 = vmatpush2.bf16.msra.mxu0 0
  %1137 = vmatprep.subr.bf16.mxu0 0
  %1138 = vmatpush2.bf16.msra.mxu0 0
  %1139 = vmatprep.mubr.bf16.mxu0 0
  %1140 = vmatmul.mubr.bf16.gmra.mxu0 %v1105
  %v1141 = vpop.f32.mrf.mxu0
  %v1142 = vadd.f32 0.0, %v1141
  %v1143 = vpop.f32.mrf.mxu0
  %v1144 = vpop.f32.mrf.mxu0
  %v1145 = vadd.f32 0.0, %v1144
  %v1146 = vpop.f32.mrf.mxu0
  %1147 = vdwg.mxu0
  %v1148 = vlaneseq
  %v1149 = vshrl.u32 %v1148, 7
  %v1150 = vsub.s32 0, %v1149
  %v1151 = vrot.slane %v1018, %v1150
  %v1152 = vadd.f32 %v1151, %v1142
  %v1153 = vadd.f32 %v1151, %v1145
  %v1154 = vld [vmem:[%s1 + $0x70] sm:$0xf]
  %v1155 = vld [vmem:[%s1 + $0x74] sm:$0xf]
  %v1158 = vunpack.c.l.b16 %v1154
  %v1159 = vunpack.c.l.b16 %v1155
  %v1160 = vpack.c.b16 %v1159, %v1158
  %v1162 = vsel %vm1026, %v1160, 0
  %1164 = vmatprep.subr.bf16.mxu0 0
  %1165 = vmatpush1.bf16.msra.mxu0 0
  %1166 = vmatprep.subr.bf16.mxu0 0
  %1167 = vmatpush1.bf16.msra.mxu0 0
  %1168 = vmatprep.subr.bf16.mxu0 0
  %1169 = vmatpush1.bf16.msra.mxu0 0
  %1170 = vmatprep.subr.bf16.mxu0 0
  %1171 = vmatpush1.bf16.msra.mxu0 0
  %1172 = vmatprep.subr.bf16.mxu0 0
  %1173 = vmatpush1.bf16.msra.mxu0 0
  %1174 = vmatprep.subr.bf16.mxu0 0
  %1175 = vmatpush1.bf16.msra.mxu0 0
  %1176 = vmatprep.subr.bf16.mxu0 0
  %1177 = vmatpush1.bf16.msra.mxu0 0
  %1178 = vmatprep.subr.bf16.mxu0 0
  %1179 = vmatpush1.bf16.msra.mxu0 %v1017
  %1180 = vmatprep.subr.bf16.mxu0 0
  %1181 = vmatpush2.bf16.msra.mxu0 0
  %1182 = vmatprep.subr.bf16.mxu0 0
  %1183 = vmatpush2.bf16.msra.mxu0 0
  %1184 = vmatprep.subr.bf16.mxu0 0
  %1185 = vmatpush2.bf16.msra.mxu0 0
  %1186 = vmatprep.subr.bf16.mxu0 0
  %1187 = vmatpush2.bf16.msra.mxu0 0
  %1188 = vmatprep.subr.bf16.mxu0 0
  %1189 = vmatpush2.bf16.msra.mxu0 0
  %1190 = vmatprep.subr.bf16.mxu0 0
  %1191 = vmatpush2.bf16.msra.mxu0 0
  %1192 = vmatprep.subr.bf16.mxu0 0
  %1193 = vmatpush2.bf16.msra.mxu0 0
  %1194 = vmatprep.subr.bf16.mxu0 0
  %1195 = vmatpush2.bf16.msra.mxu0 0
  %1196 = vmatprep.mubr.bf16.mxu0 0
  %1197 = vmatmul.mubr.bf16.gmra.mxu0 %v1162
  %v1198 = vpop.f32.mrf.mxu0
  %v1199 = vadd.f32 0.0, %v1198
  %v1200 = vpop.f32.mrf.mxu0
  %v1201 = vpop.f32.mrf.mxu0
  %v1202 = vadd.f32 0.0, %v1201
  %v1203 = vpop.f32.mrf.mxu0
  %1204 = vdwg.mxu0
  %v1205 = vpack.c.bf16 %v1202, %v1199
  %v1206 = vld [vmem:[%s2 + $0x140] sm:$0xf]
  %v1207 = vld [vmem:[%s2 + $0x144] sm:$0xf]
  %v1208 = vld [vmem:[%s2 + $0x148] sm:$0xf]
  %v1209 = vld [vmem:[%s2 + $0x14c] sm:$0xf]
  %v1210 = vld [vmem:[%s2 + $0x150] sm:$0xf]
  %v1211 = vld [vmem:[%s2 + $0x154] sm:$0xf]
  %v1212 = vld [vmem:[%s2 + $0x158] sm:$0xf]
  %v1213 = vld [vmem:[%s2 + $0x15c] sm:$0xf]
  %v1222 = vunpack.c.l.b16 %v1206
  %v1223 = vunpack.c.l.b16 %v1207
  %v1224 = vunpack.c.l.b16 %v1208
  %v1225 = vunpack.c.l.b16 %v1209
  %v1226 = vunpack.c.l.b16 %v1210
  %v1227 = vunpack.c.l.b16 %v1211
  %v1228 = vunpack.c.l.b16 %v1212
  %v1229 = vunpack.c.l.b16 %v1213
  %v1230 = vpack.c.b16 %v1223, %v1222
  %v1231 = vpack.c.b16 %v1225, %v1224
  %v1232 = vpack.c.b16 %v1227, %v1226
  %v1233 = vpack.c.b16 %v1229, %v1228
  %v1239 = vsel %vm139, %v1205, 0
  %1241 = vmatprep.subr.bf16.mxu0 0
  %1242 = vmatpush1.bf16.msra.mxu0 0
  %1243 = vmatprep.subr.bf16.mxu0 0
  %1244 = vmatpush1.bf16.msra.mxu0 0
  %1245 = vmatprep.subr.bf16.mxu0 0
  %1246 = vmatpush1.bf16.msra.mxu0 0
  %1247 = vmatprep.subr.bf16.mxu0 0
  %1248 = vmatpush1.bf16.msra.mxu0 0
  %1249 = vmatprep.subr.bf16.mxu0 0
  %1250 = vmatpush1.bf16.msra.mxu0 %v1233
  %1251 = vmatprep.subr.bf16.mxu0 0
  %1252 = vmatpush1.bf16.msra.mxu0 %v1232
  %1253 = vmatprep.subr.bf16.mxu0 0
  %1254 = vmatpush1.bf16.msra.mxu0 %v1231
  %1255 = vmatprep.subr.bf16.mxu0 0
  %1256 = vmatpush1.bf16.msra.mxu0 %v1230
  %1257 = vmatprep.subr.bf16.mxu0 0
  %1258 = vmatpush2.bf16.msra.mxu0 0
  %1259 = vmatprep.subr.bf16.mxu0 0
  %1260 = vmatpush2.bf16.msra.mxu0 0
  %1261 = vmatprep.subr.bf16.mxu0 0
  %1262 = vmatpush2.bf16.msra.mxu0 0
  %1263 = vmatprep.subr.bf16.mxu0 0
  %1264 = vmatpush2.bf16.msra.mxu0 0
  %1265 = vmatprep.subr.bf16.mxu0 0
  %1266 = vmatpush2.bf16.msra.mxu0 0
  %1267 = vmatprep.subr.bf16.mxu0 0
  %1268 = vmatpush2.bf16.msra.mxu0 0
  %1269 = vmatprep.subr.bf16.mxu0 0
  %1270 = vmatpush2.bf16.msra.mxu0 0
  %1271 = vmatprep.subr.bf16.mxu0 0
  %1272 = vmatpush2.bf16.msra.mxu0 0
  %1273 = vmatprep.mubr.bf16.mxu0 0
  %1274 = vmatmul.mubr.bf16.gmra.mxu0 %v1239
  %v1275 = vpop.f32.mrf.mxu0
  %v1276 = vadd.f32 0.0, %v1275
  %v1277 = vpop.f32.mrf.mxu0
  %v1278 = vpop.f32.mrf.mxu0
  %v1279 = vadd.f32 0.0, %v1278
  %v1280 = vpop.f32.mrf.mxu0
  %1281 = vdwg.mxu0
  %v1282 = vadd.f32 %v1152, %v1276
  %v1283 = vadd.f32 %v1153, %v1279
  %v1284 = vld [vmem:[%s1 + $0x80] sm:$0xf]
  %v1285 = vld [vmem:[%s1 + $0x84] sm:$0xf]
  %v1288 = vunpack.c.l.b16 %v1284
  %v1289 = vunpack.c.l.b16 %v1285
  %v1290 = vpack.c.b16 %v1289, %v1288
  %v1292 = vsel %vm1026, %v1290, 0
  %1294 = vmatprep.subr.bf16.mxu0 0
  %1295 = vmatpush1.bf16.msra.mxu0 0
  %1296 = vmatprep.subr.bf16.mxu0 0
  %1297 = vmatpush1.bf16.msra.mxu0 0
  %1298 = vmatprep.subr.bf16.mxu0 0
  %1299 = vmatpush1.bf16.msra.mxu0 0
  %1300 = vmatprep.subr.bf16.mxu0 0
  %1301 = vmatpush1.bf16.msra.mxu0 0
  %1302 = vmatprep.subr.bf16.mxu0 0
  %1303 = vmatpush1.bf16.msra.mxu0 0
  %1304 = vmatprep.subr.bf16.mxu0 0
  %1305 = vmatpush1.bf16.msra.mxu0 0
  %1306 = vmatprep.subr.bf16.mxu0 0
  %1307 = vmatpush1.bf16.msra.mxu0 0
  %1308 = vmatprep.subr.bf16.mxu0 0
  %1309 = vmatpush1.bf16.msra.mxu0 %v1017
  %1310 = vmatprep.subr.bf16.mxu0 0
  %1311 = vmatpush2.bf16.msra.mxu0 0
  %1312 = vmatprep.subr.bf16.mxu0 0
  %1313 = vmatpush2.bf16.msra.mxu0 0
  %1314 = vmatprep.subr.bf16.mxu0 0
  %1315 = vmatpush2.bf16.msra.mxu0 0
  %1316 = vmatprep.subr.bf16.mxu0 0
  %1317 = vmatpush2.bf16.msra.mxu0 0
  %1318 = vmatprep.subr.bf16.mxu0 0
  %1319 = vmatpush2.bf16.msra.mxu0 0
  %1320 = vmatprep.subr.bf16.mxu0 0
  %1321 = vmatpush2.bf16.msra.mxu0 0
  %1322 = vmatprep.subr.bf16.mxu0 0
  %1323 = vmatpush2.bf16.msra.mxu0 0
  %1324 = vmatprep.subr.bf16.mxu0 0
  %1325 = vmatpush2.bf16.msra.mxu0 0
  %1326 = vmatprep.mubr.bf16.mxu0 0
  %1327 = vmatmul.mubr.bf16.gmra.mxu0 %v1292
  %v1328 = vpop.f32.mrf.mxu0
  %v1329 = vadd.f32 0.0, %v1328
  %v1330 = vpop.f32.mrf.mxu0
  %v1331 = vpop.f32.mrf.mxu0
  %v1332 = vadd.f32 0.0, %v1331
  %v1333 = vpop.f32.mrf.mxu0
  %1334 = vdwg.mxu0
  %v1335 = vpack.c.bf16 %v1332, %v1329
  %v1336 = vld [vmem:[%s2 + $0x160] sm:$0xf]
  %v1337 = vld [vmem:[%s2 + $0x164] sm:$0xf]
  %v1338 = vld [vmem:[%s2 + $0x168] sm:$0xf]
  %v1339 = vld [vmem:[%s2 + $0x16c] sm:$0xf]
  %v1340 = vld [vmem:[%s2 + $0x170] sm:$0xf]
  %v1341 = vld [vmem:[%s2 + $0x174] sm:$0xf]
  %v1342 = vld [vmem:[%s2 + $0x178] sm:$0xf]
  %v1343 = vld [vmem:[%s2 + $0x17c] sm:$0xf]
  %v1352 = vunpack.c.l.b16 %v1336
  %v1353 = vunpack.c.l.b16 %v1337
  %v1354 = vunpack.c.l.b16 %v1338
  %v1355 = vunpack.c.l.b16 %v1339
  %v1356 = vunpack.c.l.b16 %v1340
  %v1357 = vunpack.c.l.b16 %v1341
  %v1358 = vunpack.c.l.b16 %v1342
  %v1359 = vunpack.c.l.b16 %v1343
  %v1360 = vpack.c.b16 %v1353, %v1352
  %v1361 = vpack.c.b16 %v1355, %v1354
  %v1362 = vpack.c.b16 %v1357, %v1356
  %v1363 = vpack.c.b16 %v1359, %v1358
  %v1369 = vsel %vm139, %v1335, 0
  %1371 = vmatprep.subr.bf16.mxu0 0
  %1372 = vmatpush1.bf16.msra.mxu0 0
  %1373 = vmatprep.subr.bf16.mxu0 0
  %1374 = vmatpush1.bf16.msra.mxu0 0
  %1375 = vmatprep.subr.bf16.mxu0 0
  %1376 = vmatpush1.bf16.msra.mxu0 0
  %1377 = vmatprep.subr.bf16.mxu0 0
  %1378 = vmatpush1.bf16.msra.mxu0 0
  %1379 = vmatprep.subr.bf16.mxu0 0
  %1380 = vmatpush1.bf16.msra.mxu0 %v1363
  %1381 = vmatprep.subr.bf16.mxu0 0
  %1382 = vmatpush1.bf16.msra.mxu0 %v1362
  %1383 = vmatprep.subr.bf16.mxu0 0
  %1384 = vmatpush1.bf16.msra.mxu0 %v1361
  %1385 = vmatprep.subr.bf16.mxu0 0
  %1386 = vmatpush1.bf16.msra.mxu0 %v1360
  %1387 = vmatprep.subr.bf16.mxu0 0
  %1388 = vmatpush2.bf16.msra.mxu0 0
  %1389 = vmatprep.subr.bf16.mxu0 0
  %1390 = vmatpush2.bf16.msra.mxu0 0
  %1391 = vmatprep.subr.bf16.mxu0 0
  %1392 = vmatpush2.bf16.msra.mxu0 0
  %1393 = vmatprep.subr.bf16.mxu0 0
  %1394 = vmatpush2.bf16.msra.mxu0 0
  %1395 = vmatprep.subr.bf16.mxu0 0
  %1396 = vmatpush2.bf16.msra.mxu0 0
  %1397 = vmatprep.subr.bf16.mxu0 0
  %1398 = vmatpush2.bf16.msra.mxu0 0
  %1399 = vmatprep.subr.bf16.mxu0 0
  %1400 = vmatpush2.bf16.msra.mxu0 0
  %1401 = vmatprep.subr.bf16.mxu0 0
  %1402 = vmatpush2.bf16.msra.mxu0 0
  %1403 = vmatprep.mubr.bf16.mxu0 0
  %1404 = vmatmul.mubr.bf16.gmra.mxu0 %v1369
  %v1405 = vpop.f32.mrf.mxu0
  %v1406 = vadd.f32 0.0, %v1405
  %v1407 = vpop.f32.mrf.mxu0
  %v1408 = vpop.f32.mrf.mxu0
  %v1409 = vadd.f32 0.0, %v1408
  %v1410 = vpop.f32.mrf.mxu0
  %1411 = vdwg.mxu0
  %v1412 = vadd.f32 %v1282, %v1406
  %v1413 = vadd.f32 %v1283, %v1409
  %v1414 = vmax.f32 %v1412, 0.0
  %v1415 = vmax.f32 %v1413, 0.0
  %v1416 = vpack.c.bf16 %v1415, %v1414
  %v1417 = vld [vmem:[%s3 + $0x18] sm:$0x1]
  %v1418 = vld [vmem:[%s1 + $0x90] sm:$0xf]
  %v1420 = vsel %vm1026, %v1418, 0
  %1422 = vmatprep.subr.bf16.mxu0 0
  %1423 = vmatpush1.bf16.msra.mxu0 0
  %1424 = vmatprep.subr.bf16.mxu0 0
  %1425 = vmatpush1.bf16.msra.mxu0 0
  %1426 = vmatprep.subr.bf16.mxu0 0
  %1427 = vmatpush1.bf16.msra.mxu0 0
  %1428 = vmatprep.subr.bf16.mxu0 0
  %1429 = vmatpush1.bf16.msra.mxu0 0
  %1430 = vmatprep.subr.bf16.mxu0 0
  %1431 = vmatpush1.bf16.msra.mxu0 0
  %1432 = vmatprep.subr.bf16.mxu0 0
  %1433 = vmatpush1.bf16.msra.mxu0 0
  %1434 = vmatprep.subr.bf16.mxu0 0
  %1435 = vmatpush1.bf16.msra.mxu0 0
  %1436 = vmatprep.subr.bf16.mxu0 0
  %1437 = vmatpush1.bf16.msra.mxu0 %v1416
  %1438 = vmatprep.subr.bf16.mxu0 0
  %1439 = vmatpush2.bf16.msra.mxu0 0
  %1440 = vmatprep.subr.bf16.mxu0 0
  %1441 = vmatpush2.bf16.msra.mxu0 0
  %1442 = vmatprep.subr.bf16.mxu0 0
  %1443 = vmatpush2.bf16.msra.mxu0 0
  %1444 = vmatprep.subr.bf16.mxu0 0
  %1445 = vmatpush2.bf16.msra.mxu0 0
  %1446 = vmatprep.subr.bf16.mxu0 0
  %1447 = vmatpush2.bf16.msra.mxu0 0
  %1448 = vmatprep.subr.bf16.mxu0 0
  %1449 = vmatpush2.bf16.msra.mxu0 0
  %1450 = vmatprep.subr.bf16.mxu0 0
  %1451 = vmatpush2.bf16.msra.mxu0 0
  %1452 = vmatprep.subr.bf16.mxu0 0
  %1453 = vmatpush2.bf16.msra.mxu0 0
  %1454 = vmatprep.mubr.bf16.mxu0 0
  %1455 = vmatmul.mubr.bf16.gmra.mxu0 %v1420
  %v1456 = vpop.f32.mrf.mxu0
  %v1457 = vadd.f32 0.0, %v1456
  %v1458 = vpop.f32.mrf.mxu0
  %v1459 = vpop.f32.mrf.mxu0
  %v1460 = vpop.f32.mrf.mxu0
  %1461 = vdwg.mxu0
  %v1462 = vpack.c.bf16 %v1457, %v1457
  %v1463 = vld [vmem:[%s2 + $0x180] sm:$0xf]
  %v1464 = vld [vmem:[%s2 + $0x184] sm:$0xf]
  %v1465 = vld [vmem:[%s2 + $0x188] sm:$0xf]
  %v1466 = vld [vmem:[%s2 + $0x18c] sm:$0xf]
  %v1467 = vld [vmem:[%s2 + $0x190] sm:$0xf]
  %v1468 = vld [vmem:[%s2 + $0x194] sm:$0xf]
  %v1469 = vld [vmem:[%s2 + $0x198] sm:$0xf]
  %v1470 = vld [vmem:[%s2 + $0x19c] sm:$0xf]
  %v1471 = vld [vmem:[%s2 + $0x1a0] sm:$0xf]
  %v1472 = vld [vmem:[%s2 + $0x1a4] sm:$0xf]
  %v1473 = vld [vmem:[%s2 + $0x1a8] sm:$0xf]
  %v1474 = vld [vmem:[%s2 + $0x1ac] sm:$0xf]
  %v1475 = vld [vmem:[%s2 + $0x1b0] sm:$0xf]
  %v1476 = vld [vmem:[%s2 + $0x1b4] sm:$0xf]
  %v1477 = vld [vmem:[%s2 + $0x1b8] sm:$0xf]
  %v1478 = vld [vmem:[%s2 + $0x1bc] sm:$0xf]
  %v1495 = vunpack.c.l.b16 %v1463
  %v1496 = vunpack.c.l.b16 %v1464
  %v1497 = vunpack.c.l.b16 %v1465
  %v1498 = vunpack.c.l.b16 %v1466
  %v1499 = vunpack.c.l.b16 %v1467
  %v1500 = vunpack.c.l.b16 %v1468
  %v1501 = vunpack.c.l.b16 %v1469
  %v1502 = vunpack.c.l.b16 %v1470
  %v1503 = vunpack.c.l.b16 %v1471
  %v1504 = vunpack.c.l.b16 %v1472
  %v1505 = vunpack.c.l.b16 %v1473
  %v1506 = vunpack.c.l.b16 %v1474
  %v1507 = vunpack.c.l.b16 %v1475
  %v1508 = vunpack.c.l.b16 %v1476
  %v1509 = vunpack.c.l.b16 %v1477
  %v1510 = vunpack.c.l.b16 %v1478
  %v1511 = vpack.c.b16 %v1496, %v1495
  %v1512 = vpack.c.b16 %v1498, %v1497
  %v1513 = vpack.c.b16 %v1500, %v1499
  %v1514 = vpack.c.b16 %v1502, %v1501
  %v1515 = vpack.c.b16 %v1504, %v1503
  %v1516 = vpack.c.b16 %v1506, %v1505
  %v1517 = vpack.c.b16 %v1508, %v1507
  %v1518 = vpack.c.b16 %v1510, %v1509
  %1527 = vmatprep.subr.bf16.mxu0 0
  %1528 = vmatpush1.bf16.msra.mxu0 %v1518
  %1529 = vmatprep.subr.bf16.mxu0 0
  %1530 = vmatpush1.bf16.msra.mxu0 %v1517
  %1531 = vmatprep.subr.bf16.mxu0 0
  %1532 = vmatpush1.bf16.msra.mxu0 %v1516
  %1533 = vmatprep.subr.bf16.mxu0 0
  %1534 = vmatpush1.bf16.msra.mxu0 %v1515
  %1535 = vmatprep.subr.bf16.mxu0 0
  %1536 = vmatpush1.bf16.msra.mxu0 %v1514
  %1537 = vmatprep.subr.bf16.mxu0 0
  %1538 = vmatpush1.bf16.msra.mxu0 %v1513
  %1539 = vmatprep.subr.bf16.mxu0 0
  %1540 = vmatpush1.bf16.msra.mxu0 %v1512
  %1541 = vmatprep.subr.bf16.mxu0 0
  %1542 = vmatpush1.bf16.msra.mxu0 %v1511
  %1543 = vmatprep.subr.bf16.mxu0 0
  %1544 = vmatpush2.bf16.msra.mxu0 0
  %1545 = vmatprep.subr.bf16.mxu0 0
  %1546 = vmatpush2.bf16.msra.mxu0 0
  %1547 = vmatprep.subr.bf16.mxu0 0
  %1548 = vmatpush2.bf16.msra.mxu0 0
  %1549 = vmatprep.subr.bf16.mxu0 0
  %1550 = vmatpush2.bf16.msra.mxu0 0
  %1551 = vmatprep.subr.bf16.mxu0 0
  %1552 = vmatpush2.bf16.msra.mxu0 0
  %1553 = vmatprep.subr.bf16.mxu0 0
  %1554 = vmatpush2.bf16.msra.mxu0 0
  %1555 = vmatprep.subr.bf16.mxu0 0
  %1556 = vmatpush2.bf16.msra.mxu0 0
  %1557 = vmatprep.subr.bf16.mxu0 0
  %1558 = vmatpush2.bf16.msra.mxu0 0
  %1559 = vmatprep.mubr.bf16.mxu0 0
  %1560 = vmatmul.mubr.bf16.gmra.mxu0 %v1462
  %v1561 = vpop.f32.mrf.mxu0
  %v1562 = vadd.f32 0.0, %v1561
  %v1563 = vpop.f32.mrf.mxu0
  %v1564 = vpop.f32.mrf.mxu0
  %v1565 = vpop.f32.mrf.mxu0
  %1566 = vdwg.mxu0
  %v1567 = vlaneseq
  %v1568 = vshrl.u32 %v1567, 7
  %v1569 = vsub.s32 0, %v1568
  %v1570 = vrot.slane %v1417, %v1569
  %v1571 = vadd.f32 %v1570, %v1562
  %v1572 = vld [vmem:[%s1 + $0xa0] sm:$0xf]
  %v1574 = vsel %vm1026, %v1572, 0
  %1576 = vmatprep.subr.bf16.mxu0 0
  %1577 = vmatpush1.bf16.msra.mxu0 0
  %1578 = vmatprep.subr.bf16.mxu0 0
  %1579 = vmatpush1.bf16.msra.mxu0 0
  %1580 = vmatprep.subr.bf16.mxu0 0
  %1581 = vmatpush1.bf16.msra.mxu0 0
  %1582 = vmatprep.subr.bf16.mxu0 0
  %1583 = vmatpush1.bf16.msra.mxu0 0
  %1584 = vmatprep.subr.bf16.mxu0 0
  %1585 = vmatpush1.bf16.msra.mxu0 0
  %1586 = vmatprep.subr.bf16.mxu0 0
  %1587 = vmatpush1.bf16.msra.mxu0 0
  %1588 = vmatprep.subr.bf16.mxu0 0
  %1589 = vmatpush1.bf16.msra.mxu0 0
  %1590 = vmatprep.subr.bf16.mxu0 0
  %1591 = vmatpush1.bf16.msra.mxu0 %v1416
  %1592 = vmatprep.subr.bf16.mxu0 0
  %1593 = vmatpush2.bf16.msra.mxu0 0
  %1594 = vmatprep.subr.bf16.mxu0 0
  %1595 = vmatpush2.bf16.msra.mxu0 0
  %1596 = vmatprep.subr.bf16.mxu0 0
  %1597 = vmatpush2.bf16.msra.mxu0 0
  %1598 = vmatprep.subr.bf16.mxu0 0
  %1599 = vmatpush2.bf16.msra.mxu0 0
  %1600 = vmatprep.subr.bf16.mxu0 0
  %1601 = vmatpush2.bf16.msra.mxu0 0
  %1602 = vmatprep.subr.bf16.mxu0 0
  %1603 = vmatpush2.bf16.msra.mxu0 0
  %1604 = vmatprep.subr.bf16.mxu0 0
  %1605 = vmatpush2.bf16.msra.mxu0 0
  %1606 = vmatprep.subr.bf16.mxu0 0
  %1607 = vmatpush2.bf16.msra.mxu0 0
  %1608 = vmatprep.mubr.bf16.mxu0 0
  %1609 = vmatmul.mubr.bf16.gmra.mxu0 %v1574
  %v1610 = vpop.f32.mrf.mxu0
  %v1611 = vadd.f32 0.0, %v1610
  %v1612 = vpop.f32.mrf.mxu0
  %v1613 = vpop.f32.mrf.mxu0
  %v1614 = vpop.f32.mrf.mxu0
  %1615 = vdwg.mxu0
  %v1616 = vpack.c.bf16 %v1611, %v1611
  %v1617 = vld [vmem:[%s2 + $0x1c0] sm:$0xf]
  %v1618 = vld [vmem:[%s2 + $0x1c4] sm:$0xf]
  %v1619 = vld [vmem:[%s2 + $0x1c8] sm:$0xf]
  %v1620 = vld [vmem:[%s2 + $0x1cc] sm:$0xf]
  %v1621 = vld [vmem:[%s2 + $0x1d0] sm:$0xf]
  %v1622 = vld [vmem:[%s2 + $0x1d4] sm:$0xf]
  %v1623 = vld [vmem:[%s2 + $0x1d8] sm:$0xf]
  %v1624 = vld [vmem:[%s2 + $0x1dc] sm:$0xf]
  %v1625 = vld [vmem:[%s2 + $0x1e0] sm:$0xf]
  %v1626 = vld [vmem:[%s2 + $0x1e4] sm:$0xf]
  %v1627 = vld [vmem:[%s2 + $0x1e8] sm:$0xf]
  %v1628 = vld [vmem:[%s2 + $0x1ec] sm:$0xf]
  %v1629 = vld [vmem:[%s2 + $0x1f0] sm:$0xf]
  %v1630 = vld [vmem:[%s2 + $0x1f4] sm:$0xf]
  %v1631 = vld [vmem:[%s2 + $0x1f8] sm:$0xf]
  %v1632 = vld [vmem:[%s2 + $0x1fc] sm:$0xf]
  %v1649 = vunpack.c.l.b16 %v1617
  %v1650 = vunpack.c.l.b16 %v1618
  %v1651 = vunpack.c.l.b16 %v1619
  %v1652 = vunpack.c.l.b16 %v1620
  %v1653 = vunpack.c.l.b16 %v1621
  %v1654 = vunpack.c.l.b16 %v1622
  %v1655 = vunpack.c.l.b16 %v1623
  %v1656 = vunpack.c.l.b16 %v1624
  %v1657 = vunpack.c.l.b16 %v1625
  %v1658 = vunpack.c.l.b16 %v1626
  %v1659 = vunpack.c.l.b16 %v1627
  %v1660 = vunpack.c.l.b16 %v1628
  %v1661 = vunpack.c.l.b16 %v1629
  %v1662 = vunpack.c.l.b16 %v1630
  %v1663 = vunpack.c.l.b16 %v1631
  %v1664 = vunpack.c.l.b16 %v1632
  %v1665 = vpack.c.b16 %v1650, %v1649
  %v1666 = vpack.c.b16 %v1652, %v1651
  %v1667 = vpack.c.b16 %v1654, %v1653
  %v1668 = vpack.c.b16 %v1656, %v1655
  %v1669 = vpack.c.b16 %v1658, %v1657
  %v1670 = vpack.c.b16 %v1660, %v1659
  %v1671 = vpack.c.b16 %v1662, %v1661
  %v1672 = vpack.c.b16 %v1664, %v1663
  %1681 = vmatprep.subr.bf16.mxu0 0
  %1682 = vmatpush1.bf16.msra.mxu0 %v1672
  %1683 = vmatprep.subr.bf16.mxu0 0
  %1684 = vmatpush1.bf16.msra.mxu0 %v1671
  %1685 = vmatprep.subr.bf16.mxu0 0
  %1686 = vmatpush1.bf16.msra.mxu0 %v1670
  %1687 = vmatprep.subr.bf16.mxu0 0
  %1688 = vmatpush1.bf16.msra.mxu0 %v1669
  %1689 = vmatprep.subr.bf16.mxu0 0
  %1690 = vmatpush1.bf16.msra.mxu0 %v1668
  %1691 = vmatprep.subr.bf16.mxu0 0
  %1692 = vmatpush1.bf16.msra.mxu0 %v1667
  %1693 = vmatprep.subr.bf16.mxu0 0
  %1694 = vmatpush1.bf16.msra.mxu0 %v1666
  %1695 = vmatprep.subr.bf16.mxu0 0
  %1696 = vmatpush1.bf16.msra.mxu0 %v1665
  %1697 = vmatprep.subr.bf16.mxu0 0
  %1698 = vmatpush2.bf16.msra.mxu0 0
  %1699 = vmatprep.subr.bf16.mxu0 0
  %1700 = vmatpush2.bf16.msra.mxu0 0
  %1701 = vmatprep.subr.bf16.mxu0 0
  %1702 = vmatpush2.bf16.msra.mxu0 0
  %1703 = vmatprep.subr.bf16.mxu0 0
  %1704 = vmatpush2.bf16.msra.mxu0 0
  %1705 = vmatprep.subr.bf16.mxu0 0
  %1706 = vmatpush2.bf16.msra.mxu0 0
  %1707 = vmatprep.subr.bf16.mxu0 0
  %1708 = vmatpush2.bf16.msra.mxu0 0
  %1709 = vmatprep.subr.bf16.mxu0 0
  %1710 = vmatpush2.bf16.msra.mxu0 0
  %1711 = vmatprep.subr.bf16.mxu0 0
  %1712 = vmatpush2.bf16.msra.mxu0 0
  %1713 = vmatprep.mubr.bf16.mxu0 0
  %1714 = vmatmul.mubr.bf16.gmra.mxu0 %v1616
  %v1715 = vpop.f32.mrf.mxu0
  %v1716 = vadd.f32 0.0, %v1715
  %v1717 = vpop.f32.mrf.mxu0
  %v1718 = vpop.f32.mrf.mxu0
  %v1719 = vpop.f32.mrf.mxu0
  %1720 = vdwg.mxu0
  %v1721 = vadd.f32 %v1571, %v1716
  %v1722 = vld [vmem:[%s1 + $0xb0] sm:$0xf]
  %v1724 = vsel %vm1026, %v1722, 0
  %1726 = vmatprep.subr.bf16.mxu0 0
  %1727 = vmatpush1.bf16.msra.mxu0 0
  %1728 = vmatprep.subr.bf16.mxu0 0
  %1729 = vmatpush1.bf16.msra.mxu0 0
  %1730 = vmatprep.subr.bf16.mxu0 0
  %1731 = vmatpush1.bf16.msra.mxu0 0
  %1732 = vmatprep.subr.bf16.mxu0 0
  %1733 = vmatpush1.bf16.msra.mxu0 0
  %1734 = vmatprep.subr.bf16.mxu0 0
  %1735 = vmatpush1.bf16.msra.mxu0 0
  %1736 = vmatprep.subr.bf16.mxu0 0
  %1737 = vmatpush1.bf16.msra.mxu0 0
  %1738 = vmatprep.subr.bf16.mxu0 0
  %1739 = vmatpush1.bf16.msra.mxu0 0
  %1740 = vmatprep.subr.bf16.mxu0 0
  %1741 = vmatpush1.bf16.msra.mxu0 %v1416
  %1742 = vmatprep.subr.bf16.mxu0 0
  %1743 = vmatpush2.bf16.msra.mxu0 0
  %1744 = vmatprep.subr.bf16.mxu0 0
  %1745 = vmatpush2.bf16.msra.mxu0 0
  %1746 = vmatprep.subr.bf16.mxu0 0
  %1747 = vmatpush2.bf16.msra.mxu0 0
  %1748 = vmatprep.subr.bf16.mxu0 0
  %1749 = vmatpush2.bf16.msra.mxu0 0
  %1750 = vmatprep.subr.bf16.mxu0 0
  %1751 = vmatpush2.bf16.msra.mxu0 0
  %1752 = vmatprep.subr.bf16.mxu0 0
  %1753 = vmatpush2.bf16.msra.mxu0 0
  %1754 = vmatprep.subr.bf16.mxu0 0
  %1755 = vmatpush2.bf16.msra.mxu0 0
  %1756 = vmatprep.subr.bf16.mxu0 0
  %1757 = vmatpush2.bf16.msra.mxu0 0
  %1758 = vmatprep.mubr.bf16.mxu0 0
  %1759 = vmatmul.mubr.bf16.gmra.mxu0 %v1724
  %v1760 = vpop.f32.mrf.mxu0
  %v1761 = vadd.f32 0.0, %v1760
  %v1762 = vpop.f32.mrf.mxu0
  %v1763 = vpop.f32.mrf.mxu0
  %v1764 = vpop.f32.mrf.mxu0
  %1765 = vdwg.mxu0
  %v1766 = vpack.c.bf16 %v1761, %v1761
  %v1767 = vld [vmem:[%s2 + $0x200] sm:$0xf]
  %v1768 = vld [vmem:[%s2 + $0x204] sm:$0xf]
  %v1769 = vld [vmem:[%s2 + $0x208] sm:$0xf]
  %v1770 = vld [vmem:[%s2 + $0x20c] sm:$0xf]
  %v1771 = vld [vmem:[%s2 + $0x210] sm:$0xf]
  %v1772 = vld [vmem:[%s2 + $0x214] sm:$0xf]
  %v1773 = vld [vmem:[%s2 + $0x218] sm:$0xf]
  %v1774 = vld [vmem:[%s2 + $0x21c] sm:$0xf]
  %v1775 = vld [vmem:[%s2 + $0x220] sm:$0xf]
  %v1776 = vld [vmem:[%s2 + $0x224] sm:$0xf]
  %v1777 = vld [vmem:[%s2 + $0x228] sm:$0xf]
  %v1778 = vld [vmem:[%s2 + $0x22c] sm:$0xf]
  %v1779 = vld [vmem:[%s2 + $0x230] sm:$0xf]
  %v1780 = vld [vmem:[%s2 + $0x234] sm:$0xf]
  %v1781 = vld [vmem:[%s2 + $0x238] sm:$0xf]
  %v1782 = vld [vmem:[%s2 + $0x23c] sm:$0xf]
  %v1799 = vunpack.c.l.b16 %v1767
  %v1800 = vunpack.c.l.b16 %v1768
  %v1801 = vunpack.c.l.b16 %v1769
  %v1802 = vunpack.c.l.b16 %v1770
  %v1803 = vunpack.c.l.b16 %v1771
  %v1804 = vunpack.c.l.b16 %v1772
  %v1805 = vunpack.c.l.b16 %v1773
  %v1806 = vunpack.c.l.b16 %v1774
  %v1807 = vunpack.c.l.b16 %v1775
  %v1808 = vunpack.c.l.b16 %v1776
  %v1809 = vunpack.c.l.b16 %v1777
  %v1810 = vunpack.c.l.b16 %v1778
  %v1811 = vunpack.c.l.b16 %v1779
  %v1812 = vunpack.c.l.b16 %v1780
  %v1813 = vunpack.c.l.b16 %v1781
  %v1814 = vunpack.c.l.b16 %v1782
  %v1815 = vpack.c.b16 %v1800, %v1799
  %v1816 = vpack.c.b16 %v1802, %v1801
  %v1817 = vpack.c.b16 %v1804, %v1803
  %v1818 = vpack.c.b16 %v1806, %v1805
  %v1819 = vpack.c.b16 %v1808, %v1807
  %v1820 = vpack.c.b16 %v1810, %v1809
  %v1821 = vpack.c.b16 %v1812, %v1811
  %v1822 = vpack.c.b16 %v1814, %v1813
  %1831 = vmatprep.subr.bf16.mxu0 0
  %1832 = vmatpush1.bf16.msra.mxu0 %v1822
  %1833 = vmatprep.subr.bf16.mxu0 0
  %1834 = vmatpush1.bf16.msra.mxu0 %v1821
  %1835 = vmatprep.subr.bf16.mxu0 0
  %1836 = vmatpush1.bf16.msra.mxu0 %v1820
  %1837 = vmatprep.subr.bf16.mxu0 0
  %1838 = vmatpush1.bf16.msra.mxu0 %v1819
  %1839 = vmatprep.subr.bf16.mxu0 0
  %1840 = vmatpush1.bf16.msra.mxu0 %v1818
  %1841 = vmatprep.subr.bf16.mxu0 0
  %1842 = vmatpush1.bf16.msra.mxu0 %v1817
  %1843 = vmatprep.subr.bf16.mxu0 0
  %1844 = vmatpush1.bf16.msra.mxu0 %v1816
  %1845 = vmatprep.subr.bf16.mxu0 0
  %1846 = vmatpush1.bf16.msra.mxu0 %v1815
  %1847 = vmatprep.subr.bf16.mxu0 0
  %1848 = vmatpush2.bf16.msra.mxu0 0
  %1849 = vmatprep.subr.bf16.mxu0 0
  %1850 = vmatpush2.bf16.msra.mxu0 0
  %1851 = vmatprep.subr.bf16.mxu0 0
  %1852 = vmatpush2.bf16.msra.mxu0 0
  %1853 = vmatprep.subr.bf16.mxu0 0
  %1854 = vmatpush2.bf16.msra.mxu0 0
  %1855 = vmatprep.subr.bf16.mxu0 0
  %1856 = vmatpush2.bf16.msra.mxu0 0
  %1857 = vmatprep.subr.bf16.mxu0 0
  %1858 = vmatpush2.bf16.msra.mxu0 0
  %1859 = vmatprep.subr.bf16.mxu0 0
  %1860 = vmatpush2.bf16.msra.mxu0 0
  %1861 = vmatprep.subr.bf16.mxu0 0
  %1862 = vmatpush2.bf16.msra.mxu0 0
  %1863 = vmatprep.mubr.bf16.mxu0 0
  %1864 = vmatmul.mubr.bf16.gmra.mxu0 %v1766
  %v1865 = vpop.f32.mrf.mxu0
  %v1866 = vadd.f32 0.0, %v1865
  %v1867 = vpop.f32.mrf.mxu0
  %v1868 = vpop.f32.mrf.mxu0
  %v1869 = vpop.f32.mrf.mxu0
  %1870 = vdwg.mxu0
  %v1871 = vadd.f32 %v1721, %v1866
  %v1872 = vmax.f32 %v1871, 0.0
  %v1873 = vpack.c.bf16 %v1872, %v1872
  %v1874 = vld [vmem:[%s3 + $0x20] sm:$0x1]
  %v1875 = vld [vmem:[%s1 + $0xc0] sm:$0xf]
  %vm1876 = vcmask 64512
  %v1878 = vsel %vm1876, %v1875, 0
  %vm1880 = vcmask 1043456
  %v1882 = vsel %vm1880, %v1873, 0
  %1884 = vmatprep.subr.bf16.mxu0 0
  %1885 = vmatpush1.bf16.msra.mxu0 0
  %1886 = vmatprep.subr.bf16.mxu0 0
  %1887 = vmatpush1.bf16.msra.mxu0 0
  %1888 = vmatprep.subr.bf16.mxu0 0
  %1889 = vmatpush1.bf16.msra.mxu0 0
  %1890 = vmatprep.subr.bf16.mxu0 0
  %1891 = vmatpush1.bf16.msra.mxu0 0
  %1892 = vmatprep.subr.bf16.mxu0 0
  %1893 = vmatpush1.bf16.msra.mxu0 0
  %1894 = vmatprep.subr.bf16.mxu0 0
  %1895 = vmatpush1.bf16.msra.mxu0 0
  %1896 = vmatprep.subr.bf16.mxu0 0
  %1897 = vmatpush1.bf16.msra.mxu0 0
  %1898 = vmatprep.subr.bf16.mxu0 0
  %1899 = vmatpush1.bf16.msra.mxu0 %v1882
  %1900 = vmatprep.subr.bf16.mxu0 0
  %1901 = vmatpush2.bf16.msra.mxu0 0
  %1902 = vmatprep.subr.bf16.mxu0 0
  %1903 = vmatpush2.bf16.msra.mxu0 0
  %1904 = vmatprep.subr.bf16.mxu0 0
  %1905 = vmatpush2.bf16.msra.mxu0 0
  %1906 = vmatprep.subr.bf16.mxu0 0
  %1907 = vmatpush2.bf16.msra.mxu0 0
  %1908 = vmatprep.subr.bf16.mxu0 0
  %1909 = vmatpush2.bf16.msra.mxu0 0
  %1910 = vmatprep.subr.bf16.mxu0 0
  %1911 = vmatpush2.bf16.msra.mxu0 0
  %1912 = vmatprep.subr.bf16.mxu0 0
  %1913 = vmatpush2.bf16.msra.mxu0 0
  %1914 = vmatprep.subr.bf16.mxu0 0
  %1915 = vmatpush2.bf16.msra.mxu0 0
  %1916 = vmatprep.mubr.bf16.mxu0 0
  %1917 = vmatmul.mubr.bf16.gmra.mxu0 %v1878
  %v1918 = vpop.f32.mrf.mxu0
  %v1919 = vadd.f32 0.0, %v1918
  %v1920 = vpop.f32.mrf.mxu0
  %v1921 = vpop.f32.mrf.mxu0
  %v1922 = vpop.f32.mrf.mxu0
  %1923 = vdwg.mxu0
  %v1924 = vpack.c.bf16 %v1919, %v1919
  %v1925 = vld [vmem:[%s2 + $0x240] sm:$0xf]
  %v1926 = vld [vmem:[%s2 + $0x244] sm:$0xf]
  %v1927 = vld [vmem:[%s2 + $0x248] sm:$0xf]
  %v1928 = vld [vmem:[%s2 + $0x24c] sm:$0xf]
  %v1929 = vld [vmem:[%s2 + $0x250] sm:$0xf]
  %v1930 = vld [vmem:[%s2 + $0x254] sm:$0xf]
  %v1931 = vld [vmem:[%s2 + $0x258] sm:$0xf]
  %v1932 = vld [vmem:[%s2 + $0x25c] sm:$0xf]
  %v1941 = vunpack.c.l.b16 %v1925
  %v1942 = vunpack.c.l.b16 %v1926
  %v1943 = vunpack.c.l.b16 %v1927
  %v1944 = vunpack.c.l.b16 %v1928
  %v1945 = vunpack.c.l.b16 %v1929
  %v1946 = vunpack.c.l.b16 %v1930
  %v1947 = vunpack.c.l.b16 %v1931
  %v1948 = vunpack.c.l.b16 %v1932
  %v1949 = vpack.c.b16 %v1942, %v1941
  %v1950 = vpack.c.b16 %v1944, %v1943
  %v1951 = vpack.c.b16 %v1946, %v1945
  %v1952 = vpack.c.b16 %v1948, %v1947
  %v1958 = vsel %vm139, %v1924, 0
  %1960 = vmatprep.subr.bf16.mxu0 0
  %1961 = vmatpush1.bf16.msra.mxu0 0
  %1962 = vmatprep.subr.bf16.mxu0 0
  %1963 = vmatpush1.bf16.msra.mxu0 0
  %1964 = vmatprep.subr.bf16.mxu0 0
  %1965 = vmatpush1.bf16.msra.mxu0 0
  %1966 = vmatprep.subr.bf16.mxu0 0
  %1967 = vmatpush1.bf16.msra.mxu0 0
  %1968 = vmatprep.subr.bf16.mxu0 0
  %1969 = vmatpush1.bf16.msra.mxu0 %v1952
  %1970 = vmatprep.subr.bf16.mxu0 0
  %1971 = vmatpush1.bf16.msra.mxu0 %v1951
  %1972 = vmatprep.subr.bf16.mxu0 0
  %1973 = vmatpush1.bf16.msra.mxu0 %v1950
  %1974 = vmatprep.subr.bf16.mxu0 0
  %1975 = vmatpush1.bf16.msra.mxu0 %v1949
  %1976 = vmatprep.subr.bf16.mxu0 0
  %1977 = vmatpush2.bf16.msra.mxu0 0
  %1978 = vmatprep.subr.bf16.mxu0 0
  %1979 = vmatpush2.bf16.msra.mxu0 0
  %1980 = vmatprep.subr.bf16.mxu0 0
  %1981 = vmatpush2.bf16.msra.mxu0 0
  %1982 = vmatprep.subr.bf16.mxu0 0
  %1983 = vmatpush2.bf16.msra.mxu0 0
  %1984 = vmatprep.subr.bf16.mxu0 0
  %1985 = vmatpush2.bf16.msra.mxu0 0
  %1986 = vmatprep.subr.bf16.mxu0 0
  %1987 = vmatpush2.bf16.msra.mxu0 0
  %1988 = vmatprep.subr.bf16.mxu0 0
  %1989 = vmatpush2.bf16.msra.mxu0 0
  %1990 = vmatprep.subr.bf16.mxu0 0
  %1991 = vmatpush2.bf16.msra.mxu0 0
  %1992 = vmatprep.mubr.bf16.mxu0 0
  %1993 = vmatmul.mubr.bf16.gmra.mxu0 %v1958
  %v1994 = vpop.f32.mrf.mxu0
  %v1995 = vadd.f32 0.0, %v1994
  %v1996 = vpop.f32.mrf.mxu0
  %v1997 = vpop.f32.mrf.mxu0
  %v1998 = vpop.f32.mrf.mxu0
  %1999 = vdwg.mxu0
  %v2000 = vlaneseq
  %v2001 = vshrl.u32 %v2000, 7
  %v2002 = vsub.s32 0, %v2001
  %v2003 = vrot.slane %v1874, %v2002
  %v2004 = vadd.f32 %v2003, %v1995
  %v2005 = vld [vmem:[%s1 + $0xd0] sm:$0xf]
  %v2007 = vsel %vm1876, %v2005, 0
  %2009 = vmatprep.subr.bf16.mxu0 0
  %2010 = vmatpush1.bf16.msra.mxu0 0
  %2011 = vmatprep.subr.bf16.mxu0 0
  %2012 = vmatpush1.bf16.msra.mxu0 0
  %2013 = vmatprep.subr.bf16.mxu0 0
  %2014 = vmatpush1.bf16.msra.mxu0 0
  %2015 = vmatprep.subr.bf16.mxu0 0
  %2016 = vmatpush1.bf16.msra.mxu0 0
  %2017 = vmatprep.subr.bf16.mxu0 0
  %2018 = vmatpush1.bf16.msra.mxu0 0
  %2019 = vmatprep.subr.bf16.mxu0 0
  %2020 = vmatpush1.bf16.msra.mxu0 0
  %2021 = vmatprep.subr.bf16.mxu0 0
  %2022 = vmatpush1.bf16.msra.mxu0 0
  %2023 = vmatprep.subr.bf16.mxu0 0
  %2024 = vmatpush1.bf16.msra.mxu0 %v1882
  %2025 = vmatprep.subr.bf16.mxu0 0
  %2026 = vmatpush2.bf16.msra.mxu0 0
  %2027 = vmatprep.subr.bf16.mxu0 0
  %2028 = vmatpush2.bf16.msra.mxu0 0
  %2029 = vmatprep.subr.bf16.mxu0 0
  %2030 = vmatpush2.bf16.msra.mxu0 0
  %2031 = vmatprep.subr.bf16.mxu0 0
  %2032 = vmatpush2.bf16.msra.mxu0 0
  %2033 = vmatprep.subr.bf16.mxu0 0
  %2034 = vmatpush2.bf16.msra.mxu0 0
  %2035 = vmatprep.subr.bf16.mxu0 0
  %2036 = vmatpush2.bf16.msra.mxu0 0
  %2037 = vmatprep.subr.bf16.mxu0 0
  %2038 = vmatpush2.bf16.msra.mxu0 0
  %2039 = vmatprep.subr.bf16.mxu0 0
  %2040 = vmatpush2.bf16.msra.mxu0 0
  %2041 = vmatprep.mubr.bf16.mxu0 0
  %2042 = vmatmul.mubr.bf16.gmra.mxu0 %v2007
  %v2043 = vpop.f32.mrf.mxu0
  %v2044 = vadd.f32 0.0, %v2043
  %v2045 = vpop.f32.mrf.mxu0
  %v2046 = vpop.f32.mrf.mxu0
  %v2047 = vpop.f32.mrf.mxu0
  %2048 = vdwg.mxu0
  %v2049 = vpack.c.bf16 %v2044, %v2044
  %v2050 = vld [vmem:[%s2 + $0x260] sm:$0xf]
  %v2051 = vld [vmem:[%s2 + $0x264] sm:$0xf]
  %v2052 = vld [vmem:[%s2 + $0x268] sm:$0xf]
  %v2053 = vld [vmem:[%s2 + $0x26c] sm:$0xf]
  %v2054 = vld [vmem:[%s2 + $0x270] sm:$0xf]
  %v2055 = vld [vmem:[%s2 + $0x274] sm:$0xf]
  %v2056 = vld [vmem:[%s2 + $0x278] sm:$0xf]
  %v2057 = vld [vmem:[%s2 + $0x27c] sm:$0xf]
  %v2066 = vunpack.c.l.b16 %v2050
  %v2067 = vunpack.c.l.b16 %v2051
  %v2068 = vunpack.c.l.b16 %v2052
  %v2069 = vunpack.c.l.b16 %v2053
  %v2070 = vunpack.c.l.b16 %v2054
  %v2071 = vunpack.c.l.b16 %v2055
  %v2072 = vunpack.c.l.b16 %v2056
  %v2073 = vunpack.c.l.b16 %v2057
  %v2074 = vpack.c.b16 %v2067, %v2066
  %v2075 = vpack.c.b16 %v2069, %v2068
  %v2076 = vpack.c.b16 %v2071, %v2070
  %v2077 = vpack.c.b16 %v2073, %v2072
  %v2083 = vsel %vm139, %v2049, 0
  %2085 = vmatprep.subr.bf16.mxu0 0
  %2086 = vmatpush1.bf16.msra.mxu0 0
  %2087 = vmatprep.subr.bf16.mxu0 0
  %2088 = vmatpush1.bf16.msra.mxu0 0
  %2089 = vmatprep.subr.bf16.mxu0 0
  %2090 = vmatpush1.bf16.msra.mxu0 0
  %2091 = vmatprep.subr.bf16.mxu0 0
  %2092 = vmatpush1.bf16.msra.mxu0 0
  %2093 = vmatprep.subr.bf16.mxu0 0
  %2094 = vmatpush1.bf16.msra.mxu0 %v2077
  %2095 = vmatprep.subr.bf16.mxu0 0
  %2096 = vmatpush1.bf16.msra.mxu0 %v2076
  %2097 = vmatprep.subr.bf16.mxu0 0
  %2098 = vmatpush1.bf16.msra.mxu0 %v2075
  %2099 = vmatprep.subr.bf16.mxu0 0
  %2100 = vmatpush1.bf16.msra.mxu0 %v2074
  %2101 = vmatprep.subr.bf16.mxu0 0
  %2102 = vmatpush2.bf16.msra.mxu0 0
  %2103 = vmatprep.subr.bf16.mxu0 0
  %2104 = vmatpush2.bf16.msra.mxu0 0
  %2105 = vmatprep.subr.bf16.mxu0 0
  %2106 = vmatpush2.bf16.msra.mxu0 0
  %2107 = vmatprep.subr.bf16.mxu0 0
  %2108 = vmatpush2.bf16.msra.mxu0 0
  %2109 = vmatprep.subr.bf16.mxu0 0
  %2110 = vmatpush2.bf16.msra.mxu0 0
  %2111 = vmatprep.subr.bf16.mxu0 0
  %2112 = vmatpush2.bf16.msra.mxu0 0
  %2113 = vmatprep.subr.bf16.mxu0 0
  %2114 = vmatpush2.bf16.msra.mxu0 0
  %2115 = vmatprep.subr.bf16.mxu0 0
  %2116 = vmatpush2.bf16.msra.mxu0 0
  %2117 = vmatprep.mubr.bf16.mxu0 0
  %2118 = vmatmul.mubr.bf16.gmra.mxu0 %v2083
  %v2119 = vpop.f32.mrf.mxu0
  %v2120 = vadd.f32 0.0, %v2119
  %v2121 = vpop.f32.mrf.mxu0
  %v2122 = vpop.f32.mrf.mxu0
  %v2123 = vpop.f32.mrf.mxu0
  %2124 = vdwg.mxu0
  %v2125 = vadd.f32 %v2004, %v2120
  %v2126 = vld [vmem:[%s1 + $0xe0] sm:$0xf]
  %v2128 = vsel %vm1876, %v2126, 0
  %2130 = vmatprep.subr.bf16.mxu0 0
  %2131 = vmatpush1.bf16.msra.mxu0 0
  %2132 = vmatprep.subr.bf16.mxu0 0
  %2133 = vmatpush1.bf16.msra.mxu0 0
  %2134 = vmatprep.subr.bf16.mxu0 0
  %2135 = vmatpush1.bf16.msra.mxu0 0
  %2136 = vmatprep.subr.bf16.mxu0 0
  %2137 = vmatpush1.bf16.msra.mxu0 0
  %2138 = vmatprep.subr.bf16.mxu0 0
  %2139 = vmatpush1.bf16.msra.mxu0 0
  %2140 = vmatprep.subr.bf16.mxu0 0
  %2141 = vmatpush1.bf16.msra.mxu0 0
  %2142 = vmatprep.subr.bf16.mxu0 0
  %2143 = vmatpush1.bf16.msra.mxu0 0
  %2144 = vmatprep.subr.bf16.mxu0 0
  %2145 = vmatpush1.bf16.msra.mxu0 %v1882
  %2146 = vmatprep.subr.bf16.mxu0 0
  %2147 = vmatpush2.bf16.msra.mxu0 0
  %2148 = vmatprep.subr.bf16.mxu0 0
  %2149 = vmatpush2.bf16.msra.mxu0 0
  %2150 = vmatprep.subr.bf16.mxu0 0
  %2151 = vmatpush2.bf16.msra.mxu0 0
  %2152 = vmatprep.subr.bf16.mxu0 0
  %2153 = vmatpush2.bf16.msra.mxu0 0
  %2154 = vmatprep.subr.bf16.mxu0 0
  %2155 = vmatpush2.bf16.msra.mxu0 0
  %2156 = vmatprep.subr.bf16.mxu0 0
  %2157 = vmatpush2.bf16.msra.mxu0 0
  %2158 = vmatprep.subr.bf16.mxu0 0
  %2159 = vmatpush2.bf16.msra.mxu0 0
  %2160 = vmatprep.subr.bf16.mxu0 0
  %2161 = vmatpush2.bf16.msra.mxu0 0
  %2162 = vmatprep.mubr.bf16.mxu0 0
  %2163 = vmatmul.mubr.bf16.gmra.mxu0 %v2128
  %v2164 = vpop.f32.mrf.mxu0
  %v2165 = vadd.f32 0.0, %v2164
  %v2166 = vpop.f32.mrf.mxu0
  %v2167 = vpop.f32.mrf.mxu0
  %v2168 = vpop.f32.mrf.mxu0
  %2169 = vdwg.mxu0
  %v2170 = vpack.c.bf16 %v2165, %v2165
  %v2171 = vld [vmem:[%s2 + $0x280] sm:$0xf]
  %v2172 = vld [vmem:[%s2 + $0x284] sm:$0xf]
  %v2173 = vld [vmem:[%s2 + $0x288] sm:$0xf]
  %v2174 = vld [vmem:[%s2 + $0x28c] sm:$0xf]
  %v2175 = vld [vmem:[%s2 + $0x290] sm:$0xf]
  %v2176 = vld [vmem:[%s2 + $0x294] sm:$0xf]
  %v2177 = vld [vmem:[%s2 + $0x298] sm:$0xf]
  %v2178 = vld [vmem:[%s2 + $0x29c] sm:$0xf]
  %v2187 = vunpack.c.l.b16 %v2171
  %v2188 = vunpack.c.l.b16 %v2172
  %v2189 = vunpack.c.l.b16 %v2173
  %v2190 = vunpack.c.l.b16 %v2174
  %v2191 = vunpack.c.l.b16 %v2175
  %v2192 = vunpack.c.l.b16 %v2176
  %v2193 = vunpack.c.l.b16 %v2177
  %v2194 = vunpack.c.l.b16 %v2178
  %v2195 = vpack.c.b16 %v2188, %v2187
  %v2196 = vpack.c.b16 %v2190, %v2189
  %v2197 = vpack.c.b16 %v2192, %v2191
  %v2198 = vpack.c.b16 %v2194, %v2193
  %v2204 = vsel %vm139, %v2170, 0
  %2206 = vmatprep.subr.bf16.mxu0 0
  %2207 = vmatpush1.bf16.msra.mxu0 0
  %2208 = vmatprep.subr.bf16.mxu0 0
  %2209 = vmatpush1.bf16.msra.mxu0 0
  %2210 = vmatprep.subr.bf16.mxu0 0
  %2211 = vmatpush1.bf16.msra.mxu0 0
  %2212 = vmatprep.subr.bf16.mxu0 0
  %2213 = vmatpush1.bf16.msra.mxu0 0
  %2214 = vmatprep.subr.bf16.mxu0 0
  %2215 = vmatpush1.bf16.msra.mxu0 %v2198
  %2216 = vmatprep.subr.bf16.mxu0 0
  %2217 = vmatpush1.bf16.msra.mxu0 %v2197
  %2218 = vmatprep.subr.bf16.mxu0 0
  %2219 = vmatpush1.bf16.msra.mxu0 %v2196
  %2220 = vmatprep.subr.bf16.mxu0 0
  %2221 = vmatpush1.bf16.msra.mxu0 %v2195
  %2222 = vmatprep.subr.bf16.mxu0 0
  %2223 = vmatpush2.bf16.msra.mxu0 0
  %2224 = vmatprep.subr.bf16.mxu0 0
  %2225 = vmatpush2.bf16.msra.mxu0 0
  %2226 = vmatprep.subr.bf16.mxu0 0
  %2227 = vmatpush2.bf16.msra.mxu0 0
  %2228 = vmatprep.subr.bf16.mxu0 0
  %2229 = vmatpush2.bf16.msra.mxu0 0
  %2230 = vmatprep.subr.bf16.mxu0 0
  %2231 = vmatpush2.bf16.msra.mxu0 0
  %2232 = vmatprep.subr.bf16.mxu0 0
  %2233 = vmatpush2.bf16.msra.mxu0 0
  %2234 = vmatprep.subr.bf16.mxu0 0
  %2235 = vmatpush2.bf16.msra.mxu0 0
  %2236 = vmatprep.subr.bf16.mxu0 0
  %2237 = vmatpush2.bf16.msra.mxu0 0
  %2238 = vmatprep.mubr.bf16.mxu0 0
  %2239 = vmatmul.mubr.bf16.gmra.mxu0 %v2204
  %v2240 = vpop.f32.mrf.mxu0
  %v2241 = vadd.f32 0.0, %v2240
  %v2242 = vpop.f32.mrf.mxu0
  %v2243 = vpop.f32.mrf.mxu0
  %v2244 = vpop.f32.mrf.mxu0
  %2245 = vdwg.mxu0
  %v2246 = vadd.f32 %v2125, %v2241
  %v2247 = vmax.f32 %v2246, 0.0
  %v2248 = vpack.c.bf16 %v2247, %v2247
  %v2249 = vld [vmem:[%s3 + $0x28] sm:$0x1]
  %v2250 = vld [vmem:[%s1 + $0xf0] sm:$0xf]
  %v2252 = vsel %vm1876, %v2250, 0
  %v2255 = vsel %vm1880, %v2248, 0
  %2257 = vmatprep.subr.bf16.mxu0 0
  %2258 = vmatpush1.bf16.msra.mxu0 0
  %2259 = vmatprep.subr.bf16.mxu0 0
  %2260 = vmatpush1.bf16.msra.mxu0 0
  %2261 = vmatprep.subr.bf16.mxu0 0
  %2262 = vmatpush1.bf16.msra.mxu0 0
  %2263 = vmatprep.subr.bf16.mxu0 0
  %2264 = vmatpush1.bf16.msra.mxu0 0
  %2265 = vmatprep.subr.bf16.mxu0 0
  %2266 = vmatpush1.bf16.msra.mxu0 0
  %2267 = vmatprep.subr.bf16.mxu0 0
  %2268 = vmatpush1.bf16.msra.mxu0 0
  %2269 = vmatprep.subr.bf16.mxu0 0
  %2270 = vmatpush1.bf16.msra.mxu0 0
  %2271 = vmatprep.subr.bf16.mxu0 0
  %2272 = vmatpush1.bf16.msra.mxu0 %v2255
  %2273 = vmatprep.subr.bf16.mxu0 0
  %2274 = vmatpush2.bf16.msra.mxu0 0
  %2275 = vmatprep.subr.bf16.mxu0 0
  %2276 = vmatpush2.bf16.msra.mxu0 0
  %2277 = vmatprep.subr.bf16.mxu0 0
  %2278 = vmatpush2.bf16.msra.mxu0 0
  %2279 = vmatprep.subr.bf16.mxu0 0
  %2280 = vmatpush2.bf16.msra.mxu0 0
  %2281 = vmatprep.subr.bf16.mxu0 0
  %2282 = vmatpush2.bf16.msra.mxu0 0
  %2283 = vmatprep.subr.bf16.mxu0 0
  %2284 = vmatpush2.bf16.msra.mxu0 0
  %2285 = vmatprep.subr.bf16.mxu0 0
  %2286 = vmatpush2.bf16.msra.mxu0 0
  %2287 = vmatprep.subr.bf16.mxu0 0
  %2288 = vmatpush2.bf16.msra.mxu0 0
  %2289 = vmatprep.mubr.bf16.mxu0 0
  %2290 = vmatmul.mubr.bf16.gmra.mxu0 %v2252
  %v2291 = vpop.f32.mrf.mxu0
  %v2292 = vadd.f32 0.0, %v2291
  %v2293 = vpop.f32.mrf.mxu0
  %v2294 = vpop.f32.mrf.mxu0
  %v2295 = vpop.f32.mrf.mxu0
  %2296 = vdwg.mxu0
  %v2297 = vpack.c.bf16 %v2292, %v2292
  %v2298 = vld [vmem:[%s2 + $0x2a0] sm:$0xf]
  %v2299 = vld [vmem:[%s2 + $0x2a4] sm:$0xf]
  %v2300 = vld [vmem:[%s2 + $0x2a8] sm:$0xf]
  %v2301 = vld [vmem:[%s2 + $0x2ac] sm:$0xf]
  %v2306 = vunpack.c.l.b16 %v2298
  %v2307 = vunpack.c.l.b16 %v2299
  %v2308 = vunpack.c.l.b16 %v2300
  %v2309 = vunpack.c.l.b16 %v2301
  %v2310 = vpack.c.b16 %v2307, %v2306
  %v2311 = vpack.c.b16 %v2309, %v2308
  %v2315 = vsel %vm49, %v2297, 0
  %2317 = vmatprep.subr.bf16.mxu0 0
  %2318 = vmatpush1.bf16.msra.mxu0 0
  %2319 = vmatprep.subr.bf16.mxu0 0
  %2320 = vmatpush1.bf16.msra.mxu0 0
  %2321 = vmatprep.subr.bf16.mxu0 0
  %2322 = vmatpush1.bf16.msra.mxu0 0
  %2323 = vmatprep.subr.bf16.mxu0 0
  %2324 = vmatpush1.bf16.msra.mxu0 0
  %2325 = vmatprep.subr.bf16.mxu0 0
  %2326 = vmatpush1.bf16.msra.mxu0 0
  %2327 = vmatprep.subr.bf16.mxu0 0
  %2328 = vmatpush1.bf16.msra.mxu0 0
  %2329 = vmatprep.subr.bf16.mxu0 0
  %2330 = vmatpush1.bf16.msra.mxu0 %v2311
  %2331 = vmatprep.subr.bf16.mxu0 0
  %2332 = vmatpush1.bf16.msra.mxu0 %v2310
  %2333 = vmatprep.subr.bf16.mxu0 0
  %2334 = vmatpush2.bf16.msra.mxu0 0
  %2335 = vmatprep.subr.bf16.mxu0 0
  %2336 = vmatpush2.bf16.msra.mxu0 0
  %2337 = vmatprep.subr.bf16.mxu0 0
  %2338 = vmatpush2.bf16.msra.mxu0 0
  %2339 = vmatprep.subr.bf16.mxu0 0
  %2340 = vmatpush2.bf16.msra.mxu0 0
  %2341 = vmatprep.subr.bf16.mxu0 0
  %2342 = vmatpush2.bf16.msra.mxu0 0
  %2343 = vmatprep.subr.bf16.mxu0 0
  %2344 = vmatpush2.bf16.msra.mxu0 0
  %2345 = vmatprep.subr.bf16.mxu0 0
  %2346 = vmatpush2.bf16.msra.mxu0 0
  %2347 = vmatprep.subr.bf16.mxu0 0
  %2348 = vmatpush2.bf16.msra.mxu0 0
  %2349 = vmatprep.mubr.bf16.mxu0 0
  %2350 = vmatmul.mubr.bf16.gmra.mxu0 %v2315
  %v2351 = vpop.f32.mrf.mxu0
  %v2352 = vadd.f32 0.0, %v2351
  %v2353 = vpop.f32.mrf.mxu0
  %v2354 = vpop.f32.mrf.mxu0
  %v2355 = vpop.f32.mrf.mxu0
  %2356 = vdwg.mxu0
  %v2357 = vlaneseq
  %v2358 = vshrl.u32 %v2357, 7
  %v2359 = vsub.s32 0, %v2358
  %v2360 = vrot.slane %v2249, %v2359
  %v2361 = vadd.f32 %v2360, %v2352
  %v2362 = vld [vmem:[%s1 + $0x100] sm:$0xf]
  %v2364 = vsel %vm1876, %v2362, 0
  %2366 = vmatprep.subr.bf16.mxu0 0
  %2367 = vmatpush1.bf16.msra.mxu0 0
  %2368 = vmatprep.subr.bf16.mxu0 0
  %2369 = vmatpush1.bf16.msra.mxu0 0
  %2370 = vmatprep.subr.bf16.mxu0 0
  %2371 = vmatpush1.bf16.msra.mxu0 0
  %2372 = vmatprep.subr.bf16.mxu0 0
  %2373 = vmatpush1.bf16.msra.mxu0 0
  %2374 = vmatprep.subr.bf16.mxu0 0
  %2375 = vmatpush1.bf16.msra.mxu0 0
  %2376 = vmatprep.subr.bf16.mxu0 0
  %2377 = vmatpush1.bf16.msra.mxu0 0
  %2378 = vmatprep.subr.bf16.mxu0 0
  %2379 = vmatpush1.bf16.msra.mxu0 0
  %2380 = vmatprep.subr.bf16.mxu0 0
  %2381 = vmatpush1.bf16.msra.mxu0 %v2255
  %2382 = vmatprep.subr.bf16.mxu0 0
  %2383 = vmatpush2.bf16.msra.mxu0 0
  %2384 = vmatprep.subr.bf16.mxu0 0
  %2385 = vmatpush2.bf16.msra.mxu0 0
  %2386 = vmatprep.subr.bf16.mxu0 0
  %2387 = vmatpush2.bf16.msra.mxu0 0
  %2388 = vmatprep.subr.bf16.mxu0 0
  %2389 = vmatpush2.bf16.msra.mxu0 0
  %2390 = vmatprep.subr.bf16.mxu0 0
  %2391 = vmatpush2.bf16.msra.mxu0 0
  %2392 = vmatprep.subr.bf16.mxu0 0
  %2393 = vmatpush2.bf16.msra.mxu0 0
  %2394 = vmatprep.subr.bf16.mxu0 0
  %2395 = vmatpush2.bf16.msra.mxu0 0
  %2396 = vmatprep.subr.bf16.mxu0 0
  %2397 = vmatpush2.bf16.msra.mxu0 0
  %2398 = vmatprep.mubr.bf16.mxu0 0
  %2399 = vmatmul.mubr.bf16.gmra.mxu0 %v2364
  %v2400 = vpop.f32.mrf.mxu0
  %v2401 = vadd.f32 0.0, %v2400
  %v2402 = vpop.f32.mrf.mxu0
  %v2403 = vpop.f32.mrf.mxu0
  %v2404 = vpop.f32.mrf.mxu0
  %2405 = vdwg.mxu0
  %v2406 = vpack.c.bf16 %v2401, %v2401
  %v2407 = vld [vmem:[%s2 + $0x2b0] sm:$0xf]
  %v2408 = vld [vmem:[%s2 + $0x2b4] sm:$0xf]
  %v2409 = vld [vmem:[%s2 + $0x2b8] sm:$0xf]
  %v2410 = vld [vmem:[%s2 + $0x2bc] sm:$0xf]
  %v2415 = vunpack.c.l.b16 %v2407
  %v2416 = vunpack.c.l.b16 %v2408
  %v2417 = vunpack.c.l.b16 %v2409
  %v2418 = vunpack.c.l.b16 %v2410
  %v2419 = vpack.c.b16 %v2416, %v2415
  %v2420 = vpack.c.b16 %v2418, %v2417
  %v2424 = vsel %vm49, %v2406, 0
  %2426 = vmatprep.subr.bf16.mxu0 0
  %2427 = vmatpush1.bf16.msra.mxu0 0
  %2428 = vmatprep.subr.bf16.mxu0 0
  %2429 = vmatpush1.bf16.msra.mxu0 0
  %2430 = vmatprep.subr.bf16.mxu0 0
  %2431 = vmatpush1.bf16.msra.mxu0 0
  %2432 = vmatprep.subr.bf16.mxu0 0
  %2433 = vmatpush1.bf16.msra.mxu0 0
  %2434 = vmatprep.subr.bf16.mxu0 0
  %2435 = vmatpush1.bf16.msra.mxu0 0
  %2436 = vmatprep.subr.bf16.mxu0 0
  %2437 = vmatpush1.bf16.msra.mxu0 0
  %2438 = vmatprep.subr.bf16.mxu0 0
  %2439 = vmatpush1.bf16.msra.mxu0 %v2420
  %2440 = vmatprep.subr.bf16.mxu0 0
  %2441 = vmatpush1.bf16.msra.mxu0 %v2419
  %2442 = vmatprep.subr.bf16.mxu0 0
  %2443 = vmatpush2.bf16.msra.mxu0 0
  %2444 = vmatprep.subr.bf16.mxu0 0
  %2445 = vmatpush2.bf16.msra.mxu0 0
  %2446 = vmatprep.subr.bf16.mxu0 0
  %2447 = vmatpush2.bf16.msra.mxu0 0
  %2448 = vmatprep.subr.bf16.mxu0 0
  %2449 = vmatpush2.bf16.msra.mxu0 0
  %2450 = vmatprep.subr.bf16.mxu0 0
  %2451 = vmatpush2.bf16.msra.mxu0 0
  %2452 = vmatprep.subr.bf16.mxu0 0
  %2453 = vmatpush2.bf16.msra.mxu0 0
  %2454 = vmatprep.subr.bf16.mxu0 0
  %2455 = vmatpush2.bf16.msra.mxu0 0
  %2456 = vmatprep.subr.bf16.mxu0 0
  %2457 = vmatpush2.bf16.msra.mxu0 0
  %2458 = vmatprep.mubr.bf16.mxu0 0
  %2459 = vmatmul.mubr.bf16.gmra.mxu0 %v2424
  %v2460 = vpop.f32.mrf.mxu0
  %v2461 = vadd.f32 0.0, %v2460
  %v2462 = vpop.f32.mrf.mxu0
  %v2463 = vpop.f32.mrf.mxu0
  %v2464 = vpop.f32.mrf.mxu0
  %2465 = vdwg.mxu0
  %v2466 = vadd.f32 %v2361, %v2461
  %v2467 = vmax.f32 %v2466, 0.0
  %v2468 = vpack.c.bf16 %v2467, %v2467
  %v2469 = vld [vmem:[%s3 + $0x30] sm:$0x1]
  %v2470 = vld [vmem:[%s1 + $0x110] sm:$0xf]
  %v2471 = vld [vmem:[%s1 + $0x114] sm:$0xf]
  %v2474 = vunpack.c.l.b16 %v2470
  %v2475 = vunpack.c.l.b16 %v2471
  %v2476 = vpack.c.b16 %v2475, %v2474
  %v2478 = vsel %vm1026, %v2476, 0
  %2480 = vmatprep.subr.bf16.mxu0 0
  %2481 = vmatpush1.bf16.msra.mxu0 0
  %2482 = vmatprep.subr.bf16.mxu0 0
  %2483 = vmatpush1.bf16.msra.mxu0 0
  %2484 = vmatprep.subr.bf16.mxu0 0
  %2485 = vmatpush1.bf16.msra.mxu0 0
  %2486 = vmatprep.subr.bf16.mxu0 0
  %2487 = vmatpush1.bf16.msra.mxu0 0
  %2488 = vmatprep.subr.bf16.mxu0 0
  %2489 = vmatpush1.bf16.msra.mxu0 0
  %2490 = vmatprep.subr.bf16.mxu0 0
  %2491 = vmatpush1.bf16.msra.mxu0 0
  %2492 = vmatprep.subr.bf16.mxu0 0
  %2493 = vmatpush1.bf16.msra.mxu0 0
  %2494 = vmatprep.subr.bf16.mxu0 0
  %2495 = vmatpush1.bf16.msra.mxu0 %v1017
  %2496 = vmatprep.subr.bf16.mxu0 0
  %2497 = vmatpush2.bf16.msra.mxu0 0
  %2498 = vmatprep.subr.bf16.mxu0 0
  %2499 = vmatpush2.bf16.msra.mxu0 0
  %2500 = vmatprep.subr.bf16.mxu0 0
  %2501 = vmatpush2.bf16.msra.mxu0 0
  %2502 = vmatprep.subr.bf16.mxu0 0
  %2503 = vmatpush2.bf16.msra.mxu0 0
  %2504 = vmatprep.subr.bf16.mxu0 0
  %2505 = vmatpush2.bf16.msra.mxu0 0
  %2506 = vmatprep.subr.bf16.mxu0 0
  %2507 = vmatpush2.bf16.msra.mxu0 0
  %2508 = vmatprep.subr.bf16.mxu0 0
  %2509 = vmatpush2.bf16.msra.mxu0 0
  %2510 = vmatprep.subr.bf16.mxu0 0
  %2511 = vmatpush2.bf16.msra.mxu0 0
  %2512 = vmatprep.mubr.bf16.mxu0 0
  %2513 = vmatmul.mubr.bf16.gmra.mxu0 %v2478
  %v2514 = vpop.f32.mrf.mxu0
  %v2515 = vadd.f32 0.0, %v2514
  %v2516 = vpop.f32.mrf.mxu0
  %v2517 = vpop.f32.mrf.mxu0
  %v2518 = vadd.f32 0.0, %v2517
  %v2519 = vpop.f32.mrf.mxu0
  %2520 = vdwg.mxu0
  %v2521 = vpack.c.bf16 %v2518, %v2515
  %v2522 = vld [vmem:[%s2 + $0x2c0] sm:$0xf]
  %v2523 = vld [vmem:[%s2 + $0x2c4] sm:$0xf]
  %v2524 = vld [vmem:[%s2 + $0x2c8] sm:$0xf]
  %v2525 = vld [vmem:[%s2 + $0x2cc] sm:$0xf]
  %v2526 = vld [vmem:[%s2 + $0x2d0] sm:$0xf]
  %v2527 = vld [vmem:[%s2 + $0x2d4] sm:$0xf]
  %v2528 = vld [vmem:[%s2 + $0x2d8] sm:$0xf]
  %v2529 = vld [vmem:[%s2 + $0x2dc] sm:$0xf]
  %v2538 = vunpack.c.l.b16 %v2522
  %v2539 = vunpack.c.l.b16 %v2523
  %v2540 = vunpack.c.l.b16 %v2524
  %v2541 = vunpack.c.l.b16 %v2525
  %v2542 = vunpack.c.l.b16 %v2526
  %v2543 = vunpack.c.l.b16 %v2527
  %v2544 = vunpack.c.l.b16 %v2528
  %v2545 = vunpack.c.l.b16 %v2529
  %v2546 = vpack.c.b16 %v2539, %v2538
  %v2547 = vpack.c.b16 %v2541, %v2540
  %v2548 = vpack.c.b16 %v2543, %v2542
  %v2549 = vpack.c.b16 %v2545, %v2544
  %v2555 = vsel %vm139, %v2521, 0
  %2557 = vmatprep.subr.bf16.mxu0 0
  %2558 = vmatpush1.bf16.msra.mxu0 0
  %2559 = vmatprep.subr.bf16.mxu0 0
  %2560 = vmatpush1.bf16.msra.mxu0 0
  %2561 = vmatprep.subr.bf16.mxu0 0
  %2562 = vmatpush1.bf16.msra.mxu0 0
  %2563 = vmatprep.subr.bf16.mxu0 0
  %2564 = vmatpush1.bf16.msra.mxu0 0
  %2565 = vmatprep.subr.bf16.mxu0 0
  %2566 = vmatpush1.bf16.msra.mxu0 %v2549
  %2567 = vmatprep.subr.bf16.mxu0 0
  %2568 = vmatpush1.bf16.msra.mxu0 %v2548
  %2569 = vmatprep.subr.bf16.mxu0 0
  %2570 = vmatpush1.bf16.msra.mxu0 %v2547
  %2571 = vmatprep.subr.bf16.mxu0 0
  %2572 = vmatpush1.bf16.msra.mxu0 %v2546
  %2573 = vmatprep.subr.bf16.mxu0 0
  %2574 = vmatpush2.bf16.msra.mxu0 0
  %2575 = vmatprep.subr.bf16.mxu0 0
  %2576 = vmatpush2.bf16.msra.mxu0 0
  %2577 = vmatprep.subr.bf16.mxu0 0
  %2578 = vmatpush2.bf16.msra.mxu0 0
  %2579 = vmatprep.subr.bf16.mxu0 0
  %2580 = vmatpush2.bf16.msra.mxu0 0
  %2581 = vmatprep.subr.bf16.mxu0 0
  %2582 = vmatpush2.bf16.msra.mxu0 0
  %2583 = vmatprep.subr.bf16.mxu0 0
  %2584 = vmatpush2.bf16.msra.mxu0 0
  %2585 = vmatprep.subr.bf16.mxu0 0
  %2586 = vmatpush2.bf16.msra.mxu0 0
  %2587 = vmatprep.subr.bf16.mxu0 0
  %2588 = vmatpush2.bf16.msra.mxu0 0
  %2589 = vmatprep.mubr.bf16.mxu0 0
  %2590 = vmatmul.mubr.bf16.gmra.mxu0 %v2555
  %v2591 = vpop.f32.mrf.mxu0
  %v2592 = vadd.f32 0.0, %v2591
  %v2593 = vpop.f32.mrf.mxu0
  %v2594 = vpop.f32.mrf.mxu0
  %v2595 = vadd.f32 0.0, %v2594
  %v2596 = vpop.f32.mrf.mxu0
  %2597 = vdwg.mxu0
  %v2598 = vlaneseq
  %v2599 = vshrl.u32 %v2598, 7
  %v2600 = vsub.s32 0, %v2599
  %v2601 = vrot.slane %v2469, %v2600
  %v2602 = vadd.f32 %v2601, %v2592
  %v2603 = vadd.f32 %v2601, %v2595
  %v2604 = vld [vmem:[%s1 + $0x120] sm:$0xf]
  %v2605 = vld [vmem:[%s1 + $0x124] sm:$0xf]
  %v2608 = vunpack.c.l.b16 %v2604
  %v2609 = vunpack.c.l.b16 %v2605
  %v2610 = vpack.c.b16 %v2609, %v2608
  %v2612 = vsel %vm1026, %v2610, 0
  %2614 = vmatprep.subr.bf16.mxu0 0
  %2615 = vmatpush1.bf16.msra.mxu0 0
  %2616 = vmatprep.subr.bf16.mxu0 0
  %2617 = vmatpush1.bf16.msra.mxu0 0
  %2618 = vmatprep.subr.bf16.mxu0 0
  %2619 = vmatpush1.bf16.msra.mxu0 0
  %2620 = vmatprep.subr.bf16.mxu0 0
  %2621 = vmatpush1.bf16.msra.mxu0 0
  %2622 = vmatprep.subr.bf16.mxu0 0
  %2623 = vmatpush1.bf16.msra.mxu0 0
  %2624 = vmatprep.subr.bf16.mxu0 0
  %2625 = vmatpush1.bf16.msra.mxu0 0
  %2626 = vmatprep.subr.bf16.mxu0 0
  %2627 = vmatpush1.bf16.msra.mxu0 0
  %2628 = vmatprep.subr.bf16.mxu0 0
  %2629 = vmatpush1.bf16.msra.mxu0 %v1017
  %2630 = vmatprep.subr.bf16.mxu0 0
  %2631 = vmatpush2.bf16.msra.mxu0 0
  %2632 = vmatprep.subr.bf16.mxu0 0
  %2633 = vmatpush2.bf16.msra.mxu0 0
  %2634 = vmatprep.subr.bf16.mxu0 0
  %2635 = vmatpush2.bf16.msra.mxu0 0
  %2636 = vmatprep.subr.bf16.mxu0 0
  %2637 = vmatpush2.bf16.msra.mxu0 0
  %2638 = vmatprep.subr.bf16.mxu0 0
  %2639 = vmatpush2.bf16.msra.mxu0 0
  %2640 = vmatprep.subr.bf16.mxu0 0
  %2641 = vmatpush2.bf16.msra.mxu0 0
  %2642 = vmatprep.subr.bf16.mxu0 0
  %2643 = vmatpush2.bf16.msra.mxu0 0
  %2644 = vmatprep.subr.bf16.mxu0 0
  %2645 = vmatpush2.bf16.msra.mxu0 0
  %2646 = vmatprep.mubr.bf16.mxu0 0
  %2647 = vmatmul.mubr.bf16.gmra.mxu0 %v2612
  %v2648 = vpop.f32.mrf.mxu0
  %v2649 = vadd.f32 0.0, %v2648
  %v2650 = vpop.f32.mrf.mxu0
  %v2651 = vpop.f32.mrf.mxu0
  %v2652 = vadd.f32 0.0, %v2651
  %v2653 = vpop.f32.mrf.mxu0
  %2654 = vdwg.mxu0
  %v2655 = vpack.c.bf16 %v2652, %v2649
  %v2656 = vld [vmem:[%s2 + $0x2e0] sm:$0xf]
  %v2657 = vld [vmem:[%s2 + $0x2e4] sm:$0xf]
  %v2658 = vld [vmem:[%s2 + $0x2e8] sm:$0xf]
  %v2659 = vld [vmem:[%s2 + $0x2ec] sm:$0xf]
  %v2660 = vld [vmem:[%s2 + $0x2f0] sm:$0xf]
  %v2661 = vld [vmem:[%s2 + $0x2f4] sm:$0xf]
  %v2662 = vld [vmem:[%s2 + $0x2f8] sm:$0xf]
  %v2663 = vld [vmem:[%s2 + $0x2fc] sm:$0xf]
  %v2672 = vunpack.c.l.b16 %v2656
  %v2673 = vunpack.c.l.b16 %v2657
  %v2674 = vunpack.c.l.b16 %v2658
  %v2675 = vunpack.c.l.b16 %v2659
  %v2676 = vunpack.c.l.b16 %v2660
  %v2677 = vunpack.c.l.b16 %v2661
  %v2678 = vunpack.c.l.b16 %v2662
  %v2679 = vunpack.c.l.b16 %v2663
  %v2680 = vpack.c.b16 %v2673, %v2672
  %v2681 = vpack.c.b16 %v2675, %v2674
  %v2682 = vpack.c.b16 %v2677, %v2676
  %v2683 = vpack.c.b16 %v2679, %v2678
  %v2689 = vsel %vm139, %v2655, 0
  %2691 = vmatprep.subr.bf16.mxu0 0
  %2692 = vmatpush1.bf16.msra.mxu0 0
  %2693 = vmatprep.subr.bf16.mxu0 0
  %2694 = vmatpush1.bf16.msra.mxu0 0
  %2695 = vmatprep.subr.bf16.mxu0 0
  %2696 = vmatpush1.bf16.msra.mxu0 0
  %2697 = vmatprep.subr.bf16.mxu0 0
  %2698 = vmatpush1.bf16.msra.mxu0 0
  %2699 = vmatprep.subr.bf16.mxu0 0
  %2700 = vmatpush1.bf16.msra.mxu0 %v2683
  %2701 = vmatprep.subr.bf16.mxu0 0
  %2702 = vmatpush1.bf16.msra.mxu0 %v2682
  %2703 = vmatprep.subr.bf16.mxu0 0
  %2704 = vmatpush1.bf16.msra.mxu0 %v2681
  %2705 = vmatprep.subr.bf16.mxu0 0
  %2706 = vmatpush1.bf16.msra.mxu0 %v2680
  %2707 = vmatprep.subr.bf16.mxu0 0
  %2708 = vmatpush2.bf16.msra.mxu0 0
  %2709 = vmatprep.subr.bf16.mxu0 0
  %2710 = vmatpush2.bf16.msra.mxu0 0
  %2711 = vmatprep.subr.bf16.mxu0 0
  %2712 = vmatpush2.bf16.msra.mxu0 0
  %2713 = vmatprep.subr.bf16.mxu0 0
  %2714 = vmatpush2.bf16.msra.mxu0 0
  %2715 = vmatprep.subr.bf16.mxu0 0
  %2716 = vmatpush2.bf16.msra.mxu0 0
  %2717 = vmatprep.subr.bf16.mxu0 0
  %2718 = vmatpush2.bf16.msra.mxu0 0
  %2719 = vmatprep.subr.bf16.mxu0 0
  %2720 = vmatpush2.bf16.msra.mxu0 0
  %2721 = vmatprep.subr.bf16.mxu0 0
  %2722 = vmatpush2.bf16.msra.mxu0 0
  %2723 = vmatprep.mubr.bf16.mxu0 0
  %2724 = vmatmul.mubr.bf16.gmra.mxu0 %v2689
  %v2725 = vpop.f32.mrf.mxu0
  %v2726 = vadd.f32 0.0, %v2725
  %v2727 = vpop.f32.mrf.mxu0
  %v2728 = vpop.f32.mrf.mxu0
  %v2729 = vadd.f32 0.0, %v2728
  %v2730 = vpop.f32.mrf.mxu0
  %2731 = vdwg.mxu0
  %v2732 = vadd.f32 %v2602, %v2726
  %v2733 = vadd.f32 %v2603, %v2729
  %v2734 = vld [vmem:[%s1 + $0x130] sm:$0xf]
  %v2735 = vld [vmem:[%s1 + $0x134] sm:$0xf]
  %v2738 = vunpack.c.l.b16 %v2734
  %v2739 = vunpack.c.l.b16 %v2735
  %v2740 = vpack.c.b16 %v2739, %v2738
  %v2742 = vsel %vm1026, %v2740, 0
  %2744 = vmatprep.subr.bf16.mxu0 0
  %2745 = vmatpush1.bf16.msra.mxu0 0
  %2746 = vmatprep.subr.bf16.mxu0 0
  %2747 = vmatpush1.bf16.msra.mxu0 0
  %2748 = vmatprep.subr.bf16.mxu0 0
  %2749 = vmatpush1.bf16.msra.mxu0 0
  %2750 = vmatprep.subr.bf16.mxu0 0
  %2751 = vmatpush1.bf16.msra.mxu0 0
  %2752 = vmatprep.subr.bf16.mxu0 0
  %2753 = vmatpush1.bf16.msra.mxu0 0
  %2754 = vmatprep.subr.bf16.mxu0 0
  %2755 = vmatpush1.bf16.msra.mxu0 0
  %2756 = vmatprep.subr.bf16.mxu0 0
  %2757 = vmatpush1.bf16.msra.mxu0 0
  %2758 = vmatprep.subr.bf16.mxu0 0
  %2759 = vmatpush1.bf16.msra.mxu0 %v1017
  %2760 = vmatprep.subr.bf16.mxu0 0
  %2761 = vmatpush2.bf16.msra.mxu0 0
  %2762 = vmatprep.subr.bf16.mxu0 0
  %2763 = vmatpush2.bf16.msra.mxu0 0
  %2764 = vmatprep.subr.bf16.mxu0 0
  %2765 = vmatpush2.bf16.msra.mxu0 0
  %2766 = vmatprep.subr.bf16.mxu0 0
  %2767 = vmatpush2.bf16.msra.mxu0 0
  %2768 = vmatprep.subr.bf16.mxu0 0
  %2769 = vmatpush2.bf16.msra.mxu0 0
  %2770 = vmatprep.subr.bf16.mxu0 0
  %2771 = vmatpush2.bf16.msra.mxu0 0
  %2772 = vmatprep.subr.bf16.mxu0 0
  %2773 = vmatpush2.bf16.msra.mxu0 0
  %2774 = vmatprep.subr.bf16.mxu0 0
  %2775 = vmatpush2.bf16.msra.mxu0 0
  %2776 = vmatprep.mubr.bf16.mxu0 0
  %2777 = vmatmul.mubr.bf16.gmra.mxu0 %v2742
  %v2778 = vpop.f32.mrf.mxu0
  %v2779 = vadd.f32 0.0, %v2778
  %v2780 = vpop.f32.mrf.mxu0
  %v2781 = vpop.f32.mrf.mxu0
  %v2782 = vadd.f32 0.0, %v2781
  %v2783 = vpop.f32.mrf.mxu0
  %2784 = vdwg.mxu0
  %v2785 = vpack.c.bf16 %v2782, %v2779
  %v2786 = vld [vmem:[%s2 + $0x300] sm:$0xf]
  %v2787 = vld [vmem:[%s2 + $0x304] sm:$0xf]
  %v2788 = vld [vmem:[%s2 + $0x308] sm:$0xf]
  %v2789 = vld [vmem:[%s2 + $0x30c] sm:$0xf]
  %v2790 = vld [vmem:[%s2 + $0x310] sm:$0xf]
  %v2791 = vld [vmem:[%s2 + $0x314] sm:$0xf]
  %v2792 = vld [vmem:[%s2 + $0x318] sm:$0xf]
  %v2793 = vld [vmem:[%s2 + $0x31c] sm:$0xf]
  %v2802 = vunpack.c.l.b16 %v2786
  %v2803 = vunpack.c.l.b16 %v2787
  %v2804 = vunpack.c.l.b16 %v2788
  %v2805 = vunpack.c.l.b16 %v2789
  %v2806 = vunpack.c.l.b16 %v2790
  %v2807 = vunpack.c.l.b16 %v2791
  %v2808 = vunpack.c.l.b16 %v2792
  %v2809 = vunpack.c.l.b16 %v2793
  %v2810 = vpack.c.b16 %v2803, %v2802
  %v2811 = vpack.c.b16 %v2805, %v2804
  %v2812 = vpack.c.b16 %v2807, %v2806
  %v2813 = vpack.c.b16 %v2809, %v2808
  %v2819 = vsel %vm139, %v2785, 0
  %2821 = vmatprep.subr.bf16.mxu0 0
  %2822 = vmatpush1.bf16.msra.mxu0 0
  %2823 = vmatprep.subr.bf16.mxu0 0
  %2824 = vmatpush1.bf16.msra.mxu0 0
  %2825 = vmatprep.subr.bf16.mxu0 0
  %2826 = vmatpush1.bf16.msra.mxu0 0
  %2827 = vmatprep.subr.bf16.mxu0 0
  %2828 = vmatpush1.bf16.msra.mxu0 0
  %2829 = vmatprep.subr.bf16.mxu0 0
  %2830 = vmatpush1.bf16.msra.mxu0 %v2813
  %2831 = vmatprep.subr.bf16.mxu0 0
  %2832 = vmatpush1.bf16.msra.mxu0 %v2812
  %2833 = vmatprep.subr.bf16.mxu0 0
  %2834 = vmatpush1.bf16.msra.mxu0 %v2811
  %2835 = vmatprep.subr.bf16.mxu0 0
  %2836 = vmatpush1.bf16.msra.mxu0 %v2810
  %2837 = vmatprep.subr.bf16.mxu0 0
  %2838 = vmatpush2.bf16.msra.mxu0 0
  %2839 = vmatprep.subr.bf16.mxu0 0
  %2840 = vmatpush2.bf16.msra.mxu0 0
  %2841 = vmatprep.subr.bf16.mxu0 0
  %2842 = vmatpush2.bf16.msra.mxu0 0
  %2843 = vmatprep.subr.bf16.mxu0 0
  %2844 = vmatpush2.bf16.msra.mxu0 0
  %2845 = vmatprep.subr.bf16.mxu0 0
  %2846 = vmatpush2.bf16.msra.mxu0 0
  %2847 = vmatprep.subr.bf16.mxu0 0
  %2848 = vmatpush2.bf16.msra.mxu0 0
  %2849 = vmatprep.subr.bf16.mxu0 0
  %2850 = vmatpush2.bf16.msra.mxu0 0
  %2851 = vmatprep.subr.bf16.mxu0 0
  %2852 = vmatpush2.bf16.msra.mxu0 0
  %2853 = vmatprep.mubr.bf16.mxu0 0
  %2854 = vmatmul.mubr.bf16.gmra.mxu0 %v2819
  %v2855 = vpop.f32.mrf.mxu0
  %v2856 = vadd.f32 0.0, %v2855
  %v2857 = vpop.f32.mrf.mxu0
  %v2858 = vpop.f32.mrf.mxu0
  %v2859 = vadd.f32 0.0, %v2858
  %v2860 = vpop.f32.mrf.mxu0
  %2861 = vdwg.mxu0
  %v2862 = vadd.f32 %v2732, %v2856
  %v2863 = vadd.f32 %v2733, %v2859
  %2864 = vst [vmem:[%s4] sm:$0xff] %v2862
  %2865 = vst [vmem:[%s4 + $0x8] sm:$0xff] %v2863
  %v2866 = vld [vmem:[%s3 + $0x38] sm:$0x1]
  %v2867 = vld [vmem:[%s1 + $0x140] sm:$0xf]
  %v2869 = vsel %vm1876, %v2867, 0
  %2871 = vmatprep.subr.bf16.mxu0 0
  %2872 = vmatpush1.bf16.msra.mxu0 0
  %2873 = vmatprep.subr.bf16.mxu0 0
  %2874 = vmatpush1.bf16.msra.mxu0 0
  %2875 = vmatprep.subr.bf16.mxu0 0
  %2876 = vmatpush1.bf16.msra.mxu0 0
  %2877 = vmatprep.subr.bf16.mxu0 0
  %2878 = vmatpush1.bf16.msra.mxu0 0
  %2879 = vmatprep.subr.bf16.mxu0 0
  %2880 = vmatpush1.bf16.msra.mxu0 0
  %2881 = vmatprep.subr.bf16.mxu0 0
  %2882 = vmatpush1.bf16.msra.mxu0 0
  %2883 = vmatprep.subr.bf16.mxu0 0
  %2884 = vmatpush1.bf16.msra.mxu0 0
  %2885 = vmatprep.subr.bf16.mxu0 0
  %2886 = vmatpush1.bf16.msra.mxu0 %v1882
  %2887 = vmatprep.subr.bf16.mxu0 0
  %2888 = vmatpush2.bf16.msra.mxu0 0
  %2889 = vmatprep.subr.bf16.mxu0 0
  %2890 = vmatpush2.bf16.msra.mxu0 0
  %2891 = vmatprep.subr.bf16.mxu0 0
  %2892 = vmatpush2.bf16.msra.mxu0 0
  %2893 = vmatprep.subr.bf16.mxu0 0
  %2894 = vmatpush2.bf16.msra.mxu0 0
  %2895 = vmatprep.subr.bf16.mxu0 0
  %2896 = vmatpush2.bf16.msra.mxu0 0
  %2897 = vmatprep.subr.bf16.mxu0 0
  %2898 = vmatpush2.bf16.msra.mxu0 0
  %2899 = vmatprep.subr.bf16.mxu0 0
  %2900 = vmatpush2.bf16.msra.mxu0 0
  %2901 = vmatprep.subr.bf16.mxu0 0
  %2902 = vmatpush2.bf16.msra.mxu0 0
  %2903 = vmatprep.mubr.bf16.mxu0 0
  %2904 = vmatmul.mubr.bf16.gmra.mxu0 %v2869
  %v2905 = vpop.f32.mrf.mxu0
  %v2906 = vadd.f32 0.0, %v2905
  %v2907 = vpop.f32.mrf.mxu0
  %v2908 = vpop.f32.mrf.mxu0
  %v2909 = vpop.f32.mrf.mxu0
  %2910 = vdwg.mxu0
  %v2911 = vpack.c.bf16 %v2906, %v2906
  %v2912 = vld [vmem:[%s2 + $0x320] sm:$0xf]
  %v2913 = vld [vmem:[%s2 + $0x324] sm:$0xf]
  %v2914 = vld [vmem:[%s2 + $0x328] sm:$0xf]
  %v2915 = vld [vmem:[%s2 + $0x32c] sm:$0xf]
  %v2916 = vld [vmem:[%s2 + $0x330] sm:$0xf]
  %v2917 = vld [vmem:[%s2 + $0x334] sm:$0xf]
  %v2918 = vld [vmem:[%s2 + $0x338] sm:$0xf]
  %v2919 = vld [vmem:[%s2 + $0x33c] sm:$0xf]
  %v2928 = vunpack.c.l.b16 %v2912
  %v2929 = vunpack.c.l.b16 %v2913
  %v2930 = vunpack.c.l.b16 %v2914
  %v2931 = vunpack.c.l.b16 %v2915
  %v2932 = vunpack.c.l.b16 %v2916
  %v2933 = vunpack.c.l.b16 %v2917
  %v2934 = vunpack.c.l.b16 %v2918
  %v2935 = vunpack.c.l.b16 %v2919
  %v2936 = vpack.c.b16 %v2929, %v2928
  %v2937 = vpack.c.b16 %v2931, %v2930
  %v2938 = vpack.c.b16 %v2933, %v2932
  %v2939 = vpack.c.b16 %v2935, %v2934
  %v2945 = vsel %vm139, %v2911, 0
  %2947 = vmatprep.subr.bf16.mxu0 0
  %2948 = vmatpush1.bf16.msra.mxu0 0
  %2949 = vmatprep.subr.bf16.mxu0 0
  %2950 = vmatpush1.bf16.msra.mxu0 0
  %2951 = vmatprep.subr.bf16.mxu0 0
  %2952 = vmatpush1.bf16.msra.mxu0 0
  %2953 = vmatprep.subr.bf16.mxu0 0
  %2954 = vmatpush1.bf16.msra.mxu0 0
  %2955 = vmatprep.subr.bf16.mxu0 0
  %2956 = vmatpush1.bf16.msra.mxu0 %v2939
  %2957 = vmatprep.subr.bf16.mxu0 0
  %2958 = vmatpush1.bf16.msra.mxu0 %v2938
  %2959 = vmatprep.subr.bf16.mxu0 0
  %2960 = vmatpush1.bf16.msra.mxu0 %v2937
  %2961 = vmatprep.subr.bf16.mxu0 0
  %2962 = vmatpush1.bf16.msra.mxu0 %v2936
  %2963 = vmatprep.subr.bf16.mxu0 0
  %2964 = vmatpush2.bf16.msra.mxu0 0
  %2965 = vmatprep.subr.bf16.mxu0 0
  %2966 = vmatpush2.bf16.msra.mxu0 0
  %2967 = vmatprep.subr.bf16.mxu0 0
  %2968 = vmatpush2.bf16.msra.mxu0 0
  %2969 = vmatprep.subr.bf16.mxu0 0
  %2970 = vmatpush2.bf16.msra.mxu0 0
  %2971 = vmatprep.subr.bf16.mxu0 0
  %2972 = vmatpush2.bf16.msra.mxu0 0
  %2973 = vmatprep.subr.bf16.mxu0 0
  %2974 = vmatpush2.bf16.msra.mxu0 0
  %2975 = vmatprep.subr.bf16.mxu0 0
  %2976 = vmatpush2.bf16.msra.mxu0 0
  %2977 = vmatprep.subr.bf16.mxu0 0
  %2978 = vmatpush2.bf16.msra.mxu0 0
  %2979 = vmatprep.mubr.bf16.mxu0 0
  %2980 = vmatmul.mubr.bf16.gmra.mxu0 %v2945
  %v2981 = vpop.f32.mrf.mxu0
  %v2982 = vadd.f32 0.0, %v2981
  %v2983 = vpop.f32.mrf.mxu0
  %v2984 = vpop.f32.mrf.mxu0
  %v2985 = vpop.f32.mrf.mxu0
  %2986 = vdwg.mxu0
  %v2987 = vlaneseq
  %v2988 = vshrl.u32 %v2987, 7
  %v2989 = vsub.s32 0, %v2988
  %v2990 = vrot.slane %v2866, %v2989
  %v2991 = vadd.f32 %v2990, %v2982
  %v2992 = vld [vmem:[%s1 + $0x150] sm:$0xf]
  %v2994 = vsel %vm1876, %v2992, 0
  %2996 = vmatprep.subr.bf16.mxu0 0
  %2997 = vmatpush1.bf16.msra.mxu0 0
  %2998 = vmatprep.subr.bf16.mxu0 0
  %2999 = vmatpush1.bf16.msra.mxu0 0
  %3000 = vmatprep.subr.bf16.mxu0 0
  %3001 = vmatpush1.bf16.msra.mxu0 0
  %3002 = vmatprep.subr.bf16.mxu0 0
  %3003 = vmatpush1.bf16.msra.mxu0 0
  %3004 = vmatprep.subr.bf16.mxu0 0
  %3005 = vmatpush1.bf16.msra.mxu0 0
  %3006 = vmatprep.subr.bf16.mxu0 0
  %3007 = vmatpush1.bf16.msra.mxu0 0
  %3008 = vmatprep.subr.bf16.mxu0 0
  %3009 = vmatpush1.bf16.msra.mxu0 0
  %3010 = vmatprep.subr.bf16.mxu0 0
  %3011 = vmatpush1.bf16.msra.mxu0 %v1882
  %3012 = vmatprep.subr.bf16.mxu0 0
  %3013 = vmatpush2.bf16.msra.mxu0 0
  %3014 = vmatprep.subr.bf16.mxu0 0
  %3015 = vmatpush2.bf16.msra.mxu0 0
  %3016 = vmatprep.subr.bf16.mxu0 0
  %3017 = vmatpush2.bf16.msra.mxu0 0
  %3018 = vmatprep.subr.bf16.mxu0 0
  %3019 = vmatpush2.bf16.msra.mxu0 0
  %3020 = vmatprep.subr.bf16.mxu0 0
  %3021 = vmatpush2.bf16.msra.mxu0 0
  %3022 = vmatprep.subr.bf16.mxu0 0
  %3023 = vmatpush2.bf16.msra.mxu0 0
  %3024 = vmatprep.subr.bf16.mxu0 0
  %3025 = vmatpush2.bf16.msra.mxu0 0
  %3026 = vmatprep.subr.bf16.mxu0 0
  %3027 = vmatpush2.bf16.msra.mxu0 0
  %3028 = vmatprep.mubr.bf16.mxu0 0
  %3029 = vmatmul.mubr.bf16.gmra.mxu0 %v2994
  %v3030 = vpop.f32.mrf.mxu0
  %v3031 = vadd.f32 0.0, %v3030
  %v3032 = vpop.f32.mrf.mxu0
  %v3033 = vpop.f32.mrf.mxu0
  %v3034 = vpop.f32.mrf.mxu0
  %3035 = vdwg.mxu0
  %v3036 = vpack.c.bf16 %v3031, %v3031
  %v3037 = vld [vmem:[%s2 + $0x340] sm:$0xf]
  %v3038 = vld [vmem:[%s2 + $0x344] sm:$0xf]
  %v3039 = vld [vmem:[%s2 + $0x348] sm:$0xf]
  %v3040 = vld [vmem:[%s2 + $0x34c] sm:$0xf]
  %v3041 = vld [vmem:[%s2 + $0x350] sm:$0xf]
  %v3042 = vld [vmem:[%s2 + $0x354] sm:$0xf]
  %v3043 = vld [vmem:[%s2 + $0x358] sm:$0xf]
  %v3044 = vld [vmem:[%s2 + $0x35c] sm:$0xf]
  %v3053 = vunpack.c.l.b16 %v3037
  %v3054 = vunpack.c.l.b16 %v3038
  %v3055 = vunpack.c.l.b16 %v3039
  %v3056 = vunpack.c.l.b16 %v3040
  %v3057 = vunpack.c.l.b16 %v3041
  %v3058 = vunpack.c.l.b16 %v3042
  %v3059 = vunpack.c.l.b16 %v3043
  %v3060 = vunpack.c.l.b16 %v3044
  %v3061 = vpack.c.b16 %v3054, %v3053
  %v3062 = vpack.c.b16 %v3056, %v3055
  %v3063 = vpack.c.b16 %v3058, %v3057
  %v3064 = vpack.c.b16 %v3060, %v3059
  %v3070 = vsel %vm139, %v3036, 0
  %3072 = vmatprep.subr.bf16.mxu0 0
  %3073 = vmatpush1.bf16.msra.mxu0 0
  %3074 = vmatprep.subr.bf16.mxu0 0
  %3075 = vmatpush1.bf16.msra.mxu0 0
  %3076 = vmatprep.subr.bf16.mxu0 0
  %3077 = vmatpush1.bf16.msra.mxu0 0
  %3078 = vmatprep.subr.bf16.mxu0 0
  %3079 = vmatpush1.bf16.msra.mxu0 0
  %3080 = vmatprep.subr.bf16.mxu0 0
  %3081 = vmatpush1.bf16.msra.mxu0 %v3064
  %3082 = vmatprep.subr.bf16.mxu0 0
  %3083 = vmatpush1.bf16.msra.mxu0 %v3063
  %3084 = vmatprep.subr.bf16.mxu0 0
  %3085 = vmatpush1.bf16.msra.mxu0 %v3062
  %3086 = vmatprep.subr.bf16.mxu0 0
  %3087 = vmatpush1.bf16.msra.mxu0 %v3061
  %3088 = vmatprep.subr.bf16.mxu0 0
  %3089 = vmatpush2.bf16.msra.mxu0 0
  %3090 = vmatprep.subr.bf16.mxu0 0
  %3091 = vmatpush2.bf16.msra.mxu0 0
  %3092 = vmatprep.subr.bf16.mxu0 0
  %3093 = vmatpush2.bf16.msra.mxu0 0
  %3094 = vmatprep.subr.bf16.mxu0 0
  %3095 = vmatpush2.bf16.msra.mxu0 0
  %3096 = vmatprep.subr.bf16.mxu0 0
  %3097 = vmatpush2.bf16.msra.mxu0 0
  %3098 = vmatprep.subr.bf16.mxu0 0
  %3099 = vmatpush2.bf16.msra.mxu0 0
  %3100 = vmatprep.subr.bf16.mxu0 0
  %3101 = vmatpush2.bf16.msra.mxu0 0
  %3102 = vmatprep.subr.bf16.mxu0 0
  %3103 = vmatpush2.bf16.msra.mxu0 0
  %3104 = vmatprep.mubr.bf16.mxu0 0
  %3105 = vmatmul.mubr.bf16.gmra.mxu0 %v3070
  %v3106 = vpop.f32.mrf.mxu0
  %v3107 = vadd.f32 0.0, %v3106
  %v3108 = vpop.f32.mrf.mxu0
  %v3109 = vpop.f32.mrf.mxu0
  %v3110 = vpop.f32.mrf.mxu0
  %3111 = vdwg.mxu0
  %v3112 = vadd.f32 %v2991, %v3107
  %v3113 = vld [vmem:[%s1 + $0x160] sm:$0xf]
  %v3115 = vsel %vm1876, %v3113, 0
  %3117 = vmatprep.subr.bf16.mxu0 0
  %3118 = vmatpush1.bf16.msra.mxu0 0
  %3119 = vmatprep.subr.bf16.mxu0 0
  %3120 = vmatpush1.bf16.msra.mxu0 0
  %3121 = vmatprep.subr.bf16.mxu0 0
  %3122 = vmatpush1.bf16.msra.mxu0 0
  %3123 = vmatprep.subr.bf16.mxu0 0
  %3124 = vmatpush1.bf16.msra.mxu0 0
  %3125 = vmatprep.subr.bf16.mxu0 0
  %3126 = vmatpush1.bf16.msra.mxu0 0
  %3127 = vmatprep.subr.bf16.mxu0 0
  %3128 = vmatpush1.bf16.msra.mxu0 0
  %3129 = vmatprep.subr.bf16.mxu0 0
  %3130 = vmatpush1.bf16.msra.mxu0 0
  %3131 = vmatprep.subr.bf16.mxu0 0
  %3132 = vmatpush1.bf16.msra.mxu0 %v1882
  %3133 = vmatprep.subr.bf16.mxu0 0
  %3134 = vmatpush2.bf16.msra.mxu0 0
  %3135 = vmatprep.subr.bf16.mxu0 0
  %3136 = vmatpush2.bf16.msra.mxu0 0
  %3137 = vmatprep.subr.bf16.mxu0 0
  %3138 = vmatpush2.bf16.msra.mxu0 0
  %3139 = vmatprep.subr.bf16.mxu0 0
  %3140 = vmatpush2.bf16.msra.mxu0 0
  %3141 = vmatprep.subr.bf16.mxu0 0
  %3142 = vmatpush2.bf16.msra.mxu0 0
  %3143 = vmatprep.subr.bf16.mxu0 0
  %3144 = vmatpush2.bf16.msra.mxu0 0
  %3145 = vmatprep.subr.bf16.mxu0 0
  %3146 = vmatpush2.bf16.msra.mxu0 0
  %3147 = vmatprep.subr.bf16.mxu0 0
  %3148 = vmatpush2.bf16.msra.mxu0 0
  %3149 = vmatprep.mubr.bf16.mxu0 0
  %3150 = vmatmul.mubr.bf16.gmra.mxu0 %v3115
  %v3151 = vpop.f32.mrf.mxu0
  %v3152 = vadd.f32 0.0, %v3151
  %v3153 = vpop.f32.mrf.mxu0
  %v3154 = vpop.f32.mrf.mxu0
  %v3155 = vpop.f32.mrf.mxu0
  %3156 = vdwg.mxu0
  %v3157 = vpack.c.bf16 %v3152, %v3152
  %v3158 = vld [vmem:[%s2 + $0x360] sm:$0xf]
  %v3159 = vld [vmem:[%s2 + $0x364] sm:$0xf]
  %v3160 = vld [vmem:[%s2 + $0x368] sm:$0xf]
  %v3161 = vld [vmem:[%s2 + $0x36c] sm:$0xf]
  %v3162 = vld [vmem:[%s2 + $0x370] sm:$0xf]
  %v3163 = vld [vmem:[%s2 + $0x374] sm:$0xf]
  %v3164 = vld [vmem:[%s2 + $0x378] sm:$0xf]
  %v3165 = vld [vmem:[%s2 + $0x37c] sm:$0xf]
  %v3174 = vunpack.c.l.b16 %v3158
  %v3175 = vunpack.c.l.b16 %v3159
  %v3176 = vunpack.c.l.b16 %v3160
  %v3177 = vunpack.c.l.b16 %v3161
  %v3178 = vunpack.c.l.b16 %v3162
  %v3179 = vunpack.c.l.b16 %v3163
  %v3180 = vunpack.c.l.b16 %v3164
  %v3181 = vunpack.c.l.b16 %v3165
  %v3182 = vpack.c.b16 %v3175, %v3174
  %v3183 = vpack.c.b16 %v3177, %v3176
  %v3184 = vpack.c.b16 %v3179, %v3178
  %v3185 = vpack.c.b16 %v3181, %v3180
  %v3191 = vsel %vm139, %v3157, 0
  %3193 = vmatprep.subr.bf16.mxu0 0
  %3194 = vmatpush1.bf16.msra.mxu0 0
  %3195 = vmatprep.subr.bf16.mxu0 0
  %3196 = vmatpush1.bf16.msra.mxu0 0
  %3197 = vmatprep.subr.bf16.mxu0 0
  %3198 = vmatpush1.bf16.msra.mxu0 0
  %3199 = vmatprep.subr.bf16.mxu0 0
  %3200 = vmatpush1.bf16.msra.mxu0 0
  %3201 = vmatprep.subr.bf16.mxu0 0
  %3202 = vmatpush1.bf16.msra.mxu0 %v3185
  %3203 = vmatprep.subr.bf16.mxu0 0
  %3204 = vmatpush1.bf16.msra.mxu0 %v3184
  %3205 = vmatprep.subr.bf16.mxu0 0
  %3206 = vmatpush1.bf16.msra.mxu0 %v3183
  %3207 = vmatprep.subr.bf16.mxu0 0
  %3208 = vmatpush1.bf16.msra.mxu0 %v3182
  %3209 = vmatprep.subr.bf16.mxu0 0
  %3210 = vmatpush2.bf16.msra.mxu0 0
  %3211 = vmatprep.subr.bf16.mxu0 0
  %3212 = vmatpush2.bf16.msra.mxu0 0
  %3213 = vmatprep.subr.bf16.mxu0 0
  %3214 = vmatpush2.bf16.msra.mxu0 0
  %3215 = vmatprep.subr.bf16.mxu0 0
  %3216 = vmatpush2.bf16.msra.mxu0 0
  %3217 = vmatprep.subr.bf16.mxu0 0
  %3218 = vmatpush2.bf16.msra.mxu0 0
  %3219 = vmatprep.subr.bf16.mxu0 0
  %3220 = vmatpush2.bf16.msra.mxu0 0
  %3221 = vmatprep.subr.bf16.mxu0 0
  %3222 = vmatpush2.bf16.msra.mxu0 0
  %3223 = vmatprep.subr.bf16.mxu0 0
  %3224 = vmatpush2.bf16.msra.mxu0 0
  %3225 = vmatprep.mubr.bf16.mxu0 0
  %3226 = vmatmul.mubr.bf16.gmra.mxu0 %v3191
  %v3227 = vpop.f32.mrf.mxu0
  %v3228 = vadd.f32 0.0, %v3227
  %v3229 = vpop.f32.mrf.mxu0
  %v3230 = vpop.f32.mrf.mxu0
  %v3231 = vpop.f32.mrf.mxu0
  %3232 = vdwg.mxu0
  %v3233 = vadd.f32 %v3112, %v3228
  %3234 = vst [vmem:[%s4 + $0x10] sm:$0xff] %v3233
  %v3235 = vld [vmem:[%s3 + $0x40] sm:$0x1]
  %v3236 = vld [vmem:[%s1 + $0x170] sm:$0xf]
  %v3238 = vsel %vm1876, %v3236, 0
  %3240 = vmatprep.subr.bf16.mxu0 0
  %3241 = vmatpush1.bf16.msra.mxu0 0
  %3242 = vmatprep.subr.bf16.mxu0 0
  %3243 = vmatpush1.bf16.msra.mxu0 0
  %3244 = vmatprep.subr.bf16.mxu0 0
  %3245 = vmatpush1.bf16.msra.mxu0 0
  %3246 = vmatprep.subr.bf16.mxu0 0
  %3247 = vmatpush1.bf16.msra.mxu0 0
  %3248 = vmatprep.subr.bf16.mxu0 0
  %3249 = vmatpush1.bf16.msra.mxu0 0
  %3250 = vmatprep.subr.bf16.mxu0 0
  %3251 = vmatpush1.bf16.msra.mxu0 0
  %3252 = vmatprep.subr.bf16.mxu0 0
  %3253 = vmatpush1.bf16.msra.mxu0 0
  %3254 = vmatprep.subr.bf16.mxu0 0
  %3255 = vmatpush1.bf16.msra.mxu0 %v2255
  %3256 = vmatprep.subr.bf16.mxu0 0
  %3257 = vmatpush2.bf16.msra.mxu0 0
  %3258 = vmatprep.subr.bf16.mxu0 0
  %3259 = vmatpush2.bf16.msra.mxu0 0
  %3260 = vmatprep.subr.bf16.mxu0 0
  %3261 = vmatpush2.bf16.msra.mxu0 0
  %3262 = vmatprep.subr.bf16.mxu0 0
  %3263 = vmatpush2.bf16.msra.mxu0 0
  %3264 = vmatprep.subr.bf16.mxu0 0
  %3265 = vmatpush2.bf16.msra.mxu0 0
  %3266 = vmatprep.subr.bf16.mxu0 0
  %3267 = vmatpush2.bf16.msra.mxu0 0
  %3268 = vmatprep.subr.bf16.mxu0 0
  %3269 = vmatpush2.bf16.msra.mxu0 0
  %3270 = vmatprep.subr.bf16.mxu0 0
  %3271 = vmatpush2.bf16.msra.mxu0 0
  %3272 = vmatprep.mubr.bf16.mxu0 0
  %3273 = vmatmul.mubr.bf16.gmra.mxu0 %v3238
  %v3274 = vpop.f32.mrf.mxu0
  %v3275 = vadd.f32 0.0, %v3274
  %v3276 = vpop.f32.mrf.mxu0
  %v3277 = vpop.f32.mrf.mxu0
  %v3278 = vpop.f32.mrf.mxu0
  %3279 = vdwg.mxu0
  %v3280 = vpack.c.bf16 %v3275, %v3275
  %v3281 = vld [vmem:[%s2 + $0x380] sm:$0xf]
  %v3282 = vld [vmem:[%s2 + $0x384] sm:$0xf]
  %v3283 = vld [vmem:[%s2 + $0x388] sm:$0xf]
  %v3284 = vld [vmem:[%s2 + $0x38c] sm:$0xf]
  %v3289 = vunpack.c.l.b16 %v3281
  %v3290 = vunpack.c.l.b16 %v3282
  %v3291 = vunpack.c.l.b16 %v3283
  %v3292 = vunpack.c.l.b16 %v3284
  %v3293 = vpack.c.b16 %v3290, %v3289
  %v3294 = vpack.c.b16 %v3292, %v3291
  %v3298 = vsel %vm49, %v3280, 0
  %3300 = vmatprep.subr.bf16.mxu0 0
  %3301 = vmatpush1.bf16.msra.mxu0 0
  %3302 = vmatprep.subr.bf16.mxu0 0
  %3303 = vmatpush1.bf16.msra.mxu0 0
  %3304 = vmatprep.subr.bf16.mxu0 0
  %3305 = vmatpush1.bf16.msra.mxu0 0
  %3306 = vmatprep.subr.bf16.mxu0 0
  %3307 = vmatpush1.bf16.msra.mxu0 0
  %3308 = vmatprep.subr.bf16.mxu0 0
  %3309 = vmatpush1.bf16.msra.mxu0 0
  %3310 = vmatprep.subr.bf16.mxu0 0
  %3311 = vmatpush1.bf16.msra.mxu0 0
  %3312 = vmatprep.subr.bf16.mxu0 0
  %3313 = vmatpush1.bf16.msra.mxu0 %v3294
  %3314 = vmatprep.subr.bf16.mxu0 0
  %3315 = vmatpush1.bf16.msra.mxu0 %v3293
  %3316 = vmatprep.subr.bf16.mxu0 0
  %3317 = vmatpush2.bf16.msra.mxu0 0
  %3318 = vmatprep.subr.bf16.mxu0 0
  %3319 = vmatpush2.bf16.msra.mxu0 0
  %3320 = vmatprep.subr.bf16.mxu0 0
  %3321 = vmatpush2.bf16.msra.mxu0 0
  %3322 = vmatprep.subr.bf16.mxu0 0
  %3323 = vmatpush2.bf16.msra.mxu0 0
  %3324 = vmatprep.subr.bf16.mxu0 0
  %3325 = vmatpush2.bf16.msra.mxu0 0
  %3326 = vmatprep.subr.bf16.mxu0 0
  %3327 = vmatpush2.bf16.msra.mxu0 0
  %3328 = vmatprep.subr.bf16.mxu0 0
  %3329 = vmatpush2.bf16.msra.mxu0 0
  %3330 = vmatprep.subr.bf16.mxu0 0
  %3331 = vmatpush2.bf16.msra.mxu0 0
  %3332 = vmatprep.mubr.bf16.mxu0 0
  %3333 = vmatmul.mubr.bf16.gmra.mxu0 %v3298
  %v3334 = vpop.f32.mrf.mxu0
  %v3335 = vadd.f32 0.0, %v3334
  %v3336 = vpop.f32.mrf.mxu0
  %v3337 = vpop.f32.mrf.mxu0
  %v3338 = vpop.f32.mrf.mxu0
  %3339 = vdwg.mxu0
  %v3340 = vlaneseq
  %v3341 = vshrl.u32 %v3340, 7
  %v3342 = vsub.s32 0, %v3341
  %v3343 = vrot.slane %v3235, %v3342
  %v3344 = vadd.f32 %v3343, %v3335
  %v3345 = vld [vmem:[%s1 + $0x180] sm:$0xf]
  %v3347 = vsel %vm1876, %v3345, 0
  %3349 = vmatprep.subr.bf16.mxu0 0
  %3350 = vmatpush1.bf16.msra.mxu0 0
  %3351 = vmatprep.subr.bf16.mxu0 0
  %3352 = vmatpush1.bf16.msra.mxu0 0
  %3353 = vmatprep.subr.bf16.mxu0 0
  %3354 = vmatpush1.bf16.msra.mxu0 0
  %3355 = vmatprep.subr.bf16.mxu0 0
  %3356 = vmatpush1.bf16.msra.mxu0 0
  %3357 = vmatprep.subr.bf16.mxu0 0
  %3358 = vmatpush1.bf16.msra.mxu0 0
  %3359 = vmatprep.subr.bf16.mxu0 0
  %3360 = vmatpush1.bf16.msra.mxu0 0
  %3361 = vmatprep.subr.bf16.mxu0 0
  %3362 = vmatpush1.bf16.msra.mxu0 0
  %3363 = vmatprep.subr.bf16.mxu0 0
  %3364 = vmatpush1.bf16.msra.mxu0 %v2255
  %3365 = vmatprep.subr.bf16.mxu0 0
  %3366 = vmatpush2.bf16.msra.mxu0 0
  %3367 = vmatprep.subr.bf16.mxu0 0
  %3368 = vmatpush2.bf16.msra.mxu0 0
  %3369 = vmatprep.subr.bf16.mxu0 0
  %3370 = vmatpush2.bf16.msra.mxu0 0
  %3371 = vmatprep.subr.bf16.mxu0 0
  %3372 = vmatpush2.bf16.msra.mxu0 0
  %3373 = vmatprep.subr.bf16.mxu0 0
  %3374 = vmatpush2.bf16.msra.mxu0 0
  %3375 = vmatprep.subr.bf16.mxu0 0
  %3376 = vmatpush2.bf16.msra.mxu0 0
  %3377 = vmatprep.subr.bf16.mxu0 0
  %3378 = vmatpush2.bf16.msra.mxu0 0
  %3379 = vmatprep.subr.bf16.mxu0 0
  %3380 = vmatpush2.bf16.msra.mxu0 0
  %3381 = vmatprep.mubr.bf16.mxu0 0
  %3382 = vmatmul.mubr.bf16.gmra.mxu0 %v3347
  %v3383 = vpop.f32.mrf.mxu0
  %v3384 = vadd.f32 0.0, %v3383
  %v3385 = vpop.f32.mrf.mxu0
  %v3386 = vpop.f32.mrf.mxu0
  %v3387 = vpop.f32.mrf.mxu0
  %3388 = vdwg.mxu0
  %v3389 = vpack.c.bf16 %v3384, %v3384
  %v3390 = vld [vmem:[%s2 + $0x390] sm:$0xf]
  %v3391 = vld [vmem:[%s2 + $0x394] sm:$0xf]
  %v3392 = vld [vmem:[%s2 + $0x398] sm:$0xf]
  %v3393 = vld [vmem:[%s2 + $0x39c] sm:$0xf]
  %v3398 = vunpack.c.l.b16 %v3390
  %v3399 = vunpack.c.l.b16 %v3391
  %v3400 = vunpack.c.l.b16 %v3392
  %v3401 = vunpack.c.l.b16 %v3393
  %v3402 = vpack.c.b16 %v3399, %v3398
  %v3403 = vpack.c.b16 %v3401, %v3400
  %v3407 = vsel %vm49, %v3389, 0
  %3409 = vmatprep.subr.bf16.mxu0 0
  %3410 = vmatpush1.bf16.msra.mxu0 0
  %3411 = vmatprep.subr.bf16.mxu0 0
  %3412 = vmatpush1.bf16.msra.mxu0 0
  %3413 = vmatprep.subr.bf16.mxu0 0
  %3414 = vmatpush1.bf16.msra.mxu0 0
  %3415 = vmatprep.subr.bf16.mxu0 0
  %3416 = vmatpush1.bf16.msra.mxu0 0
  %3417 = vmatprep.subr.bf16.mxu0 0
  %3418 = vmatpush1.bf16.msra.mxu0 0
  %3419 = vmatprep.subr.bf16.mxu0 0
  %3420 = vmatpush1.bf16.msra.mxu0 0
  %3421 = vmatprep.subr.bf16.mxu0 0
  %3422 = vmatpush1.bf16.msra.mxu0 %v3403
  %3423 = vmatprep.subr.bf16.mxu0 0
  %3424 = vmatpush1.bf16.msra.mxu0 %v3402
  %3425 = vmatprep.subr.bf16.mxu0 0
  %3426 = vmatpush2.bf16.msra.mxu0 0
  %3427 = vmatprep.subr.bf16.mxu0 0
  %3428 = vmatpush2.bf16.msra.mxu0 0
  %3429 = vmatprep.subr.bf16.mxu0 0
  %3430 = vmatpush2.bf16.msra.mxu0 0
  %3431 = vmatprep.subr.bf16.mxu0 0
  %3432 = vmatpush2.bf16.msra.mxu0 0
  %3433 = vmatprep.subr.bf16.mxu0 0
  %3434 = vmatpush2.bf16.msra.mxu0 0
  %3435 = vmatprep.subr.bf16.mxu0 0
  %3436 = vmatpush2.bf16.msra.mxu0 0
  %3437 = vmatprep.subr.bf16.mxu0 0
  %3438 = vmatpush2.bf16.msra.mxu0 0
  %3439 = vmatprep.subr.bf16.mxu0 0
  %3440 = vmatpush2.bf16.msra.mxu0 0
  %3441 = vmatprep.mubr.bf16.mxu0 0
  %3442 = vmatmul.mubr.bf16.gmra.mxu0 %v3407
  %v3443 = vpop.f32.mrf.mxu0
  %v3444 = vadd.f32 0.0, %v3443
  %v3445 = vpop.f32.mrf.mxu0
  %v3446 = vpop.f32.mrf.mxu0
  %v3447 = vpop.f32.mrf.mxu0
  %3448 = vdwg.mxu0
  %v3449 = vadd.f32 %v3344, %v3444
  %v3450 = vld [vmem:[%s1 + $0x190] sm:$0xf]
  %v3452 = vsel %vm1876, %v3450, 0
  %3454 = vmatprep.subr.bf16.mxu0 0
  %3455 = vmatpush1.bf16.msra.mxu0 0
  %3456 = vmatprep.subr.bf16.mxu0 0
  %3457 = vmatpush1.bf16.msra.mxu0 0
  %3458 = vmatprep.subr.bf16.mxu0 0
  %3459 = vmatpush1.bf16.msra.mxu0 0
  %3460 = vmatprep.subr.bf16.mxu0 0
  %3461 = vmatpush1.bf16.msra.mxu0 0
  %3462 = vmatprep.subr.bf16.mxu0 0
  %3463 = vmatpush1.bf16.msra.mxu0 0
  %3464 = vmatprep.subr.bf16.mxu0 0
  %3465 = vmatpush1.bf16.msra.mxu0 0
  %3466 = vmatprep.subr.bf16.mxu0 0
  %3467 = vmatpush1.bf16.msra.mxu0 0
  %3468 = vmatprep.subr.bf16.mxu0 0
  %3469 = vmatpush1.bf16.msra.mxu0 %v2255
  %3470 = vmatprep.subr.bf16.mxu0 0
  %3471 = vmatpush2.bf16.msra.mxu0 0
  %3472 = vmatprep.subr.bf16.mxu0 0
  %3473 = vmatpush2.bf16.msra.mxu0 0
  %3474 = vmatprep.subr.bf16.mxu0 0
  %3475 = vmatpush2.bf16.msra.mxu0 0
  %3476 = vmatprep.subr.bf16.mxu0 0
  %3477 = vmatpush2.bf16.msra.mxu0 0
  %3478 = vmatprep.subr.bf16.mxu0 0
  %3479 = vmatpush2.bf16.msra.mxu0 0
  %3480 = vmatprep.subr.bf16.mxu0 0
  %3481 = vmatpush2.bf16.msra.mxu0 0
  %3482 = vmatprep.subr.bf16.mxu0 0
  %3483 = vmatpush2.bf16.msra.mxu0 0
  %3484 = vmatprep.subr.bf16.mxu0 0
  %3485 = vmatpush2.bf16.msra.mxu0 0
  %3486 = vmatprep.mubr.bf16.mxu0 0
  %3487 = vmatmul.mubr.bf16.gmra.mxu0 %v3452
  %v3488 = vpop.f32.mrf.mxu0
  %v3489 = vadd.f32 0.0, %v3488
  %v3490 = vpop.f32.mrf.mxu0
  %v3491 = vpop.f32.mrf.mxu0
  %v3492 = vpop.f32.mrf.mxu0
  %3493 = vdwg.mxu0
  %v3494 = vpack.c.bf16 %v3489, %v3489
  %v3495 = vld [vmem:[%s2 + $0x3a0] sm:$0xf]
  %v3496 = vld [vmem:[%s2 + $0x3a4] sm:$0xf]
  %v3497 = vld [vmem:[%s2 + $0x3a8] sm:$0xf]
  %v3498 = vld [vmem:[%s2 + $0x3ac] sm:$0xf]
  %v3503 = vunpack.c.l.b16 %v3495
  %v3504 = vunpack.c.l.b16 %v3496
  %v3505 = vunpack.c.l.b16 %v3497
  %v3506 = vunpack.c.l.b16 %v3498
  %v3507 = vpack.c.b16 %v3504, %v3503
  %v3508 = vpack.c.b16 %v3506, %v3505
  %v3512 = vsel %vm49, %v3494, 0
  %3514 = vmatprep.subr.bf16.mxu0 0
  %3515 = vmatpush1.bf16.msra.mxu0 0
  %3516 = vmatprep.subr.bf16.mxu0 0
  %3517 = vmatpush1.bf16.msra.mxu0 0
  %3518 = vmatprep.subr.bf16.mxu0 0
  %3519 = vmatpush1.bf16.msra.mxu0 0
  %3520 = vmatprep.subr.bf16.mxu0 0
  %3521 = vmatpush1.bf16.msra.mxu0 0
  %3522 = vmatprep.subr.bf16.mxu0 0
  %3523 = vmatpush1.bf16.msra.mxu0 0
  %3524 = vmatprep.subr.bf16.mxu0 0
  %3525 = vmatpush1.bf16.msra.mxu0 0
  %3526 = vmatprep.subr.bf16.mxu0 0
  %3527 = vmatpush1.bf16.msra.mxu0 %v3508
  %3528 = vmatprep.subr.bf16.mxu0 0
  %3529 = vmatpush1.bf16.msra.mxu0 %v3507
  %3530 = vmatprep.subr.bf16.mxu0 0
  %3531 = vmatpush2.bf16.msra.mxu0 0
  %3532 = vmatprep.subr.bf16.mxu0 0
  %3533 = vmatpush2.bf16.msra.mxu0 0
  %3534 = vmatprep.subr.bf16.mxu0 0
  %3535 = vmatpush2.bf16.msra.mxu0 0
  %3536 = vmatprep.subr.bf16.mxu0 0
  %3537 = vmatpush2.bf16.msra.mxu0 0
  %3538 = vmatprep.subr.bf16.mxu0 0
  %3539 = vmatpush2.bf16.msra.mxu0 0
  %3540 = vmatprep.subr.bf16.mxu0 0
  %3541 = vmatpush2.bf16.msra.mxu0 0
  %3542 = vmatprep.subr.bf16.mxu0 0
  %3543 = vmatpush2.bf16.msra.mxu0 0
  %3544 = vmatprep.subr.bf16.mxu0 0
  %3545 = vmatpush2.bf16.msra.mxu0 0
  %3546 = vmatprep.mubr.bf16.mxu0 0
  %3547 = vmatmul.mubr.bf16.gmra.mxu0 %v3512
  %v3548 = vpop.f32.mrf.mxu0
  %v3549 = vadd.f32 0.0, %v3548
  %v3550 = vpop.f32.mrf.mxu0
  %v3551 = vpop.f32.mrf.mxu0
  %v3552 = vpop.f32.mrf.mxu0
  %3553 = vdwg.mxu0
  %v3554 = vadd.f32 %v3449, %v3549
  %3555 = vst [vmem:[%s4 + $0x18] sm:$0xff] %v3554
  %v3556 = vld [vmem:[%s3 + $0x48] sm:$0x1]
  %v3557 = vld [vmem:[%s1 + $0x1a0] sm:$0xf]
  %v3559 = vsel %vm1876, %v3557, 0
  %v3562 = vsel %vm1880, %v2468, 0
  %3564 = vmatprep.subr.bf16.mxu0 0
  %3565 = vmatpush1.bf16.msra.mxu0 0
  %3566 = vmatprep.subr.bf16.mxu0 0
  %3567 = vmatpush1.bf16.msra.mxu0 0
  %3568 = vmatprep.subr.bf16.mxu0 0
  %3569 = vmatpush1.bf16.msra.mxu0 0
  %3570 = vmatprep.subr.bf16.mxu0 0
  %3571 = vmatpush1.bf16.msra.mxu0 0
  %3572 = vmatprep.subr.bf16.mxu0 0
  %3573 = vmatpush1.bf16.msra.mxu0 0
  %3574 = vmatprep.subr.bf16.mxu0 0
  %3575 = vmatpush1.bf16.msra.mxu0 0
  %3576 = vmatprep.subr.bf16.mxu0 0
  %3577 = vmatpush1.bf16.msra.mxu0 0
  %3578 = vmatprep.subr.bf16.mxu0 0
  %3579 = vmatpush1.bf16.msra.mxu0 %v3562
  %3580 = vmatprep.subr.bf16.mxu0 0
  %3581 = vmatpush2.bf16.msra.mxu0 0
  %3582 = vmatprep.subr.bf16.mxu0 0
  %3583 = vmatpush2.bf16.msra.mxu0 0
  %3584 = vmatprep.subr.bf16.mxu0 0
  %3585 = vmatpush2.bf16.msra.mxu0 0
  %3586 = vmatprep.subr.bf16.mxu0 0
  %3587 = vmatpush2.bf16.msra.mxu0 0
  %3588 = vmatprep.subr.bf16.mxu0 0
  %3589 = vmatpush2.bf16.msra.mxu0 0
  %3590 = vmatprep.subr.bf16.mxu0 0
  %3591 = vmatpush2.bf16.msra.mxu0 0
  %3592 = vmatprep.subr.bf16.mxu0 0
  %3593 = vmatpush2.bf16.msra.mxu0 0
  %3594 = vmatprep.subr.bf16.mxu0 0
  %3595 = vmatpush2.bf16.msra.mxu0 0
  %3596 = vmatprep.mubr.bf16.mxu0 0
  %3597 = vmatmul.mubr.bf16.gmra.mxu0 %v3559
  %v3598 = vpop.f32.mrf.mxu0
  %v3599 = vadd.f32 0.0, %v3598
  %v3600 = vpop.f32.mrf.mxu0
  %v3601 = vpop.f32.mrf.mxu0
  %v3602 = vpop.f32.mrf.mxu0
  %3603 = vdwg.mxu0
  %v3604 = vpack.c.bf16 %v3599, %v3599
  %v3605 = vld [vmem:[%s2 + $0x3b0] sm:$0xf]
  %v3606 = vld [vmem:[%s2 + $0x3b4] sm:$0xf]
  %v3609 = vunpack.c.l.b16 %v3605
  %v3610 = vunpack.c.l.b16 %v3606
  %v3611 = vpack.c.b16 %v3610, %v3609
  %v3614 = vsel %vm1026, %v3604, 0
  %3616 = vmatprep.subr.bf16.mxu0 0
  %3617 = vmatpush1.bf16.msra.mxu0 0
  %3618 = vmatprep.subr.bf16.mxu0 0
  %3619 = vmatpush1.bf16.msra.mxu0 0
  %3620 = vmatprep.subr.bf16.mxu0 0
  %3621 = vmatpush1.bf16.msra.mxu0 0
  %3622 = vmatprep.subr.bf16.mxu0 0
  %3623 = vmatpush1.bf16.msra.mxu0 0
  %3624 = vmatprep.subr.bf16.mxu0 0
  %3625 = vmatpush1.bf16.msra.mxu0 0
  %3626 = vmatprep.subr.bf16.mxu0 0
  %3627 = vmatpush1.bf16.msra.mxu0 0
  %3628 = vmatprep.subr.bf16.mxu0 0
  %3629 = vmatpush1.bf16.msra.mxu0 0
  %3630 = vmatprep.subr.bf16.mxu0 0
  %3631 = vmatpush1.bf16.msra.mxu0 %v3611
  %3632 = vmatprep.subr.bf16.mxu0 0
  %3633 = vmatpush2.bf16.msra.mxu0 0
  %3634 = vmatprep.subr.bf16.mxu0 0
  %3635 = vmatpush2.bf16.msra.mxu0 0
  %3636 = vmatprep.subr.bf16.mxu0 0
  %3637 = vmatpush2.bf16.msra.mxu0 0
  %3638 = vmatprep.subr.bf16.mxu0 0
  %3639 = vmatpush2.bf16.msra.mxu0 0
  %3640 = vmatprep.subr.bf16.mxu0 0
  %3641 = vmatpush2.bf16.msra.mxu0 0
  %3642 = vmatprep.subr.bf16.mxu0 0
  %3643 = vmatpush2.bf16.msra.mxu0 0
  %3644 = vmatprep.subr.bf16.mxu0 0
  %3645 = vmatpush2.bf16.msra.mxu0 0
  %3646 = vmatprep.subr.bf16.mxu0 0
  %3647 = vmatpush2.bf16.msra.mxu0 0
  %3648 = vmatprep.mubr.bf16.mxu0 0
  %3649 = vmatmul.mubr.bf16.gmra.mxu0 %v3614
  %v3650 = vpop.f32.mrf.mxu0
  %v3651 = vadd.f32 0.0, %v3650
  %v3652 = vpop.f32.mrf.mxu0
  %v3653 = vpop.f32.mrf.mxu0
  %v3654 = vpop.f32.mrf.mxu0
  %3655 = vdwg.mxu0
  %v3656 = vlaneseq
  %v3657 = vshrl.u32 %v3656, 7
  %v3658 = vsub.s32 0, %v3657
  %v3659 = vrot.slane %v3556, %v3658
  %v3660 = vadd.f32 %v3659, %v3651
  %3661 = vst [vmem:[%s4 + $0x20] sm:$0xff] %v3660
  // Predicated region
  $region18: #{ssd_forward.1} parent=0 // pred_check
    _
  $region19: #{ssd_forward.1} parent=0 // pred_check_branch
    %3663 = sbr.rel (0) target = $region21
  $region20: #{ssd_forward.1} parent=0 // pred_region
    _
  $region21: #{ssd_forward.1} parent=0 // pred_fallthru
    _
  // Predicated region
  $region22: #{ssd_forward.1} parent=0 // pred_check
    _
  $region23: #{ssd_forward.1} parent=0 // pred_check_branch
    %3665 = sbr.rel (0) target = $region25
  $region24: #{ssd_forward.1} parent=0 // pred_region
    _
  $region25: #{ssd_forward.1} parent=0 // pred_fallthru
    _

</llo_original>
